<compile_context>
chip_gen: v6e
topology: v6e:2x2x1
jax: 0.10.0
libtpu: 0.0.40
codegen_flags: <defaults>
</compile_context>

<pallas_src>
import jax
import jax.numpy as jnp
from jax.experimental import pallas as pl
from jax.experimental.pallas import tpu as pltpu

LANE = 128
SUB = 8


def _ceil_to(x, m):
    return ((x + m - 1) // m) * m


def _pad2(a, rows, cols, dtype=None):
    out = jnp.pad(a, ((0, rows - a.shape[0]), (0, cols - a.shape[1])))
    if dtype is not None:
        out = out.astype(dtype)
    return out


# ----------------------------------------------------------------------------
# Fused forward kernel (single invocation, everything resident in VMEM)
# ----------------------------------------------------------------------------
def _gcnn_fused_kernel(
    cf_ref, rf_ref, ef_ref,
    idx_1e_ref, ridx_e1_ref, cidx_e1_ref,
    col_w_ref, row_w_ref,
    w_colboth_ref, w_edgeboth_ref, w_hid_ref,
    bias_ref, out_w_ref,
    o_ref,
):
    f32 = jnp.float32
    bf16 = jnp.bfloat16
    Hp = bias_ref.shape[1]

    # ---- packed parameters (static sublane slices) ----
    col_b = bias_ref[0:1, :]
    row_b = bias_ref[1:2, :]
    v2c_b1 = bias_ref[2:3, :]
    v2c_b2 = bias_ref[3:4, :]
    c2v_b1 = bias_ref[4:5, :]
    c2v_b2 = bias_ref[5:6, :]
    out_b = bias_ref[6:7, 0:1]                      # [1, 1] scalar bias

    v2c_wr = w_hid_ref[0 * Hp:1 * Hp, :]
    c2v_wr = w_hid_ref[1 * Hp:2 * Hp, :]
    v2c_w2 = w_hid_ref[2 * Hp:3 * Hp, :]
    c2v_w2 = w_hid_ref[3 * Hp:4 * Hp, :]

    # ---- node embeddings: relu(x @ W + b); bf16 operands, f32 accumulate ----
    ce = jnp.maximum(
        jnp.dot(cf_ref[...], col_w_ref[...], preferred_element_type=f32) + col_b, 0.0)
    re = jnp.maximum(
        jnp.dot(rf_ref[...], row_w_ref[...], preferred_element_type=f32) + row_b, 0.0)

    n_cols = ce.shape[0]
    n_rows = re.shape[0]
    n_edges = ridx_e1_ref.shape[0]

    ridx_1e = idx_1e_ref[0:1, :]
    cidx_1e = idx_1e_ref[1:2, :]

    # ---- in-kernel one-hot selection tiles (padded edges idx == -1 → zero) --
    # [E, N]: edge e selects node idx[e]      (gathers, MXU)
    # [N, E]: node n accumulates edges idx==n (scatter-add, MXU)
    sel_c_en = (jax.lax.broadcasted_iota(jnp.int32, (n_edges, n_cols), 1)
                == cidx_e1_ref[...]).astype(bf16)
    sel_c_ne = (jax.lax.broadcasted_iota(jnp.int32, (n_cols, n_edges), 0)
                == cidx_1e).astype(bf16)
    sel_r_en = (jax.lax.broadcasted_iota(jnp.int32, (n_edges, n_rows), 1)
                == ridx_e1_ref[...]).astype(bf16)
    sel_r_ne = (jax.lax.broadcasted_iota(jnp.int32, (n_rows, n_edges), 0)
                == ridx_1e).astype(bf16)

    # edge degree per node (exact integer counts in f32) for the reassociated
    # W2 bias term: scatter(h @ W2 + b2) == (scatter h) @ W2 + deg * b2
    deg_r = jnp.sum(sel_r_ne.astype(f32), axis=1, keepdims=True)     # [Rp, 1]
    deg_c = jnp.sum(sel_c_ne.astype(f32), axis=1, keepdims=True)     # [Cp, 1]

    ef = ef_ref[...]                                                  # [Ep, Ke] bf16
    ce_b = ce.astype(bf16)
    re_b = re.astype(bf16)

    # ---- per-edge gathers (one-hot @ embeds on the MXU) ----
    col_g = jnp.dot(sel_c_en, ce_b, preferred_element_type=f32)       # [Ep, Hp]
    row_g = jnp.dot(sel_r_en, re_b, preferred_element_type=f32)       # [Ep, Hp]

    # ---- shared-LHS weight matmuls fused to N = 2*Hp (full MXU width) ----
    col_both = jnp.dot(col_g.astype(bf16), w_colboth_ref[...],
                       preferred_element_type=f32)                     # [Ep, 2Hp]
    ef_both = jnp.dot(ef, w_edgeboth_ref[...],
                      preferred_element_type=f32)                      # [Ep, 2Hp]

    # ---- variables -> constraints ----
    h = (col_both[:, :Hp] + ef_both[:, :Hp]
         + jnp.dot(row_g.astype(bf16), v2c_wr, preferred_element_type=f32)
         + v2c_b1)
    h = jnp.maximum(h, 0.0)                                            # [Ep, Hp]

    # reassociated scatter: aggregate per row node, then node-sized W2 matmul
    agg_h_r = jnp.dot(sel_r_ne, h.astype(bf16), preferred_element_type=f32)   # [Rp, Hp]
    new_re = (re
              + jnp.dot(agg_h_r.astype(bf16), v2c_w2, preferred_element_type=f32)
              + deg_r * v2c_b2)

    # ---- constraints -> variables ----
    nrow_g = jnp.dot(sel_r_en, new_re.astype(bf16), preferred_element_type=f32)  # [Ep, Hp]
    h2 = (jnp.dot(nrow_g.astype(bf16), c2v_wr, preferred_element_type=f32)
          + ef_both[:, Hp:] + col_both[:, Hp:]
          + c2v_b1)
    h2 = jnp.maximum(h2, 0.0)

    agg_h2_c = jnp.dot(sel_c_ne, h2.astype(bf16), preferred_element_type=f32)    # [Cp, Hp]
    new_ce = (ce
              + jnp.dot(agg_h2_c.astype(bf16), c2v_w2, preferred_element_type=f32)
              + deg_c * c2v_b2)

    # ---- output head folded into epilogue: lane-dense [1, Cp] score row ----
    # (NT contraction; at worst one 128x128 XLU tile transpose of new_ce.)
    scores = jax.lax.dot_general(
        out_w_ref[...], new_ce.astype(bf16),
        (((1,), (1,)), ((), ())), preferred_element_type=f32) + out_b
    o_ref[...] = scores


# ----------------------------------------------------------------------------
# Parameter construction (PyTorch nn.Linear init, float32 "master" params)
# ----------------------------------------------------------------------------
def init_params(key, col_dim, row_dim, edge_dim, hidden_dim):
    def lin(k, fan_in, fan_out):
        kw, kb = jax.random.split(k)
        bound = 1.0 / jnp.sqrt(fan_in)
        w = jax.random.uniform(kw, (fan_in, fan_out), jnp.float32, -bound, bound)
        b = jax.random.uniform(kb, (1, fan_out), jnp.float32, -bound, bound)
        return w, b

    ks = jax.random.split(key, 7)
    p = {}
    p["col_w"], p["col_b"] = lin(ks[0], col_dim, hidden_dim)
    p["row_w"], p["row_b"] = lin(ks[1], row_dim, hidden_dim)
    p["v2c_w1"], p["v2c_b1"] = lin(ks[2], hidden_dim * 2 + edge_dim, hidden_dim)
    p["v2c_w2"], p["v2c_b2"] = lin(ks[3], hidden_dim, hidden_dim)
    p["c2v_w1"], p["c2v_b1"] = lin(ks[4], hidden_dim * 2 + edge_dim, hidden_dim)
    p["c2v_w2"], p["c2v_b2"] = lin(ks[5], hidden_dim, hidden_dim)
    p["out_w"], p["out_b"] = lin(ks[6], hidden_dim, 1)
    return p


def prep_params(params, col_dim, row_dim, edge_dim, hidden_dim):
    """One-time: split/fuse/stack/zero-pad weights, cast matmul operands to bf16."""
    bf16, f32 = jnp.bfloat16, jnp.float32
    H, E = hidden_dim, edge_dim
    Hp = _ceil_to(hidden_dim, LANE)
    Kc = _ceil_to(col_dim, SUB)
    Kr = _ceil_to(row_dim, SUB)
    Ke = _ceil_to(edge_dim, SUB)

    def split_w1(w1):
        # concat layout along fan-in: [first H block, edge E block, last H block]
        return w1[:H], w1[H:H + E], w1[H + E:]

    v2c_wc, v2c_we, v2c_wr = split_w1(params["v2c_w1"])   # (col, edge, row)
    c2v_wr, c2v_we, c2v_wc = split_w1(params["c2v_w1"])   # (row, edge, col)

    p = {}
    p["col_w"] = _pad2(params["col_w"], Kc, Hp, bf16)
    p["row_w"] = _pad2(params["row_w"], Kr, Hp, bf16)

    # Shared-LHS weights fused to N = 2*Hp (one matmul from col_g, one from ef).
    p["w_colboth"] = jnp.concatenate(
        [_pad2(v2c_wc, Hp, Hp), _pad2(c2v_wc, Hp, Hp)], axis=1).astype(bf16)
    p["w_edgeboth"] = jnp.concatenate(
        [_pad2(v2c_we, Ke, Hp), _pad2(c2v_we, Ke, Hp)], axis=1).astype(bf16)

    # Remaining [Hp,Hp] blocks stacked into one ref (static sublane slices).
    p["w_hid"] = jnp.concatenate(
        [_pad2(v2c_wr, Hp, Hp), _pad2(c2v_wr, Hp, Hp),
         _pad2(params["v2c_w2"], Hp, Hp), _pad2(params["c2v_w2"], Hp, Hp)],
        axis=0).astype(bf16)

    # All biases packed in one (8, Hp) f32 tile.  Row 6 = output bias.
    def brow(b):
        return _pad2(b.reshape(1, -1).astype(f32), 1, Hp)
    p["biases"] = jnp.concatenate(
        [brow(params["col_b"]), brow(params["row_b"]),
         brow(params["v2c_b1"]), brow(params["v2c_b2"]),
         brow(params["c2v_b1"]), brow(params["c2v_b2"]),
         jnp.broadcast_to(params["out_b"].astype(f32), (1, Hp)),
         jnp.zeros((1, Hp), f32)], axis=0)

    p["out_w"] = _pad2(params["out_w"].T, 1, Hp, bf16)       # [1, Hp]
    p["dims"] = (col_dim, row_dim, edge_dim, hidden_dim)
    p["hp"] = Hp
    return p


# ----------------------------------------------------------------------------
# VMEM budgeting (single-buffered, generation-aware cap)
# ----------------------------------------------------------------------------
def _estimate_vmem_bytes(Cp, Rp, Ep, Hp, Kc, Kr, Ke):
    F32, BF16, I32 = 4, 2, 4
    inputs = (Cp * Kc + Rp * Kr + Ep * Ke) * BF16                 # features
    inputs += 4 * Ep * I32                                        # edge indices
    inputs += (Kc * Hp + Kr * Hp + 2 * Hp * Hp + 2 * Ke * Hp
               + 4 * Hp * Hp + Hp) * BF16 + 8 * Hp * F32          # weights / biases
    sel = 2 * Ep * (Cp + Rp) * BF16                               # one-hot tiles
    node = 4 * (Cp + Rp) * Hp * F32                               # ce/re/new + casts
    edge = Ep * (6 * Hp * F32 + 4 * Hp * BF16 + 4 * Hp * F32)     # per-edge activations
    return inputs + sel + node + edge + Cp * F32


def _vmem_budget_bytes(est_bytes):
    # Size from the real single-buffered footprint with headroom for Mosaic
    # internal scratch; cap at ~60% of physical VMEM (v7x has only 64 MiB;
    # v5e/v6e have 128 MiB) so the limit never overshoots the chip.
    try:
        phys = getattr(pltpu.get_tpu_info(), "vmem_capacity_bytes", 64 << 20)
    except Exception:
        phys = 64 << 20
    cap = int(phys * 5 // 8)
    return int(min(max(2 * est_bytes + (4 << 20), 16 << 20), cap))


# ----------------------------------------------------------------------------
# Forward pass (wrapper: padding/packing + single grid-less pallas_call)
# ----------------------------------------------------------------------------
def gcnn_forward(pp, state):
    col_dim, row_dim, edge_dim, _ = pp["dims"]
    Hp = pp["hp"]
    bf16 = jnp.bfloat16

    cf = state["col_features"]
    rf = state["row_features"]
    ef = state["edge_features"]
    ei = state["edge_indices"].reshape(2, -1)

    n_cols, n_rows, n_edges = cf.shape[0], rf.shape[0], ef.shape[0]
    Cp = _ceil_to(max(n_cols, 1), LANE)      # lane width of the score row
    Rp = _ceil_to(max(n_rows, 1), LANE)      # lane-dense sel_r / full-depth contraction
    Ep = _ceil_to(max(n_edges, 1), LANE)
    Kc = _ceil_to(col_dim, SUB)
    Kr = _ceil_to(row_dim, SUB)
    Ke = _ceil_to(edge_dim, SUB)

    cf_p = _pad2(cf, Cp, Kc, bf16)
    rf_p = _pad2(rf, Rp, Kr, bf16)
    ef_p = _pad2(ef, Ep, Ke, bf16)

    # Padded edge slots get index -1: they gather zero rows and scatter into
    # no node (also exactly reproduces the zero-edge branch of the module).
    ridx_p = jnp.pad(ei[0].astype(jnp.int32), (0, Ep - n_edges), constant_values=-1)
    cidx_p = jnp.pad(ei[1].astype(jnp.int32), (0, Ep - n_edges), constant_values=-1)
    idx_1e = jnp.stack([ridx_p, cidx_p])                 # [2, Ep]
    ridx_e1 = ridx_p.reshape(Ep, 1)
    cidx_e1 = cidx_p.reshape(Ep, 1)

    args = (
        cf_p, rf_p, ef_p,
        idx_1e, ridx_e1, cidx_e1,
        pp["col_w"], pp["row_w"],
        pp["w_colboth"], pp["w_edgeboth"], pp["w_hid"],
        pp["biases"], pp["out_w"],
    )

    vmem_bytes = _vmem_budget_bytes(_estimate_vmem_bytes(Cp, Rp, Ep, Hp, Kc, Kr, Ke))

    # Grid-less call: full arrays, single-buffered VMEM refs (nothing to pipeline).
    vmem_spec = pl.BlockSpec(memory_space=pltpu.MemorySpace.VMEM)
    scores_row = pl.pallas_call(
        _gcnn_fused_kernel,
        out_shape=jax.ShapeDtypeStruct((1, Cp), jnp.float32),
        in_specs=[vmem_spec] * len(args),
        out_specs=vmem_spec,
        compiler_params=pltpu.CompilerParams(vmem_limit_bytes=vmem_bytes),
    )(*args)
    return scores_row[0, :n_cols]


# ----------------------------------------------------------------------------
# Pure-JAX references
# ----------------------------------------------------------------------------
def gcnn_forward_ref(params, state):
    """float32 reference mirroring the PyTorch module exactly."""
    cf, rf = state["col_features"], state["row_features"]
    ef, ei = state["edge_features"], state["edge_indices"].reshape(2, -1)
    ce = jnp.maximum(cf @ params["col_w"] + params["col_b"], 0.0)
    re = jnp.maximum(rf @ params["row_w"] + params["row_b"], 0.0)
    if ei.shape[1] > 0:
        ri, ci = ei[0], ei[1]
        v2c = jnp.concatenate([ce[ci], ef, re[ri]], axis=1)
        m = (jnp.maximum(v2c @ params["v2c_w1"] + params["v2c_b1"], 0.0)
             @ params["v2c_w2"] + params["v2c_b2"])
        nre = re.at[ri].add(m)
        c2v = jnp.concatenate([nre[ri], ef, ce[ci]], axis=1)
        m2 = (jnp.maximum(c2v @ params["c2v_w1"] + params["c2v_b1"], 0.0)
              @ params["c2v_w2"] + params["c2v_b2"])
        nce = ce.at[ci].add(m2)
    else:
        nce = ce
    return (nce @ params["out_w"] + params["out_b"])[:, 0]


def gcnn_forward_ref_bf16(params, state):
    """Reference with the same bf16 operand rounding / f32 accumulation AND the
    same W2-after-scatter reassociation as the Pallas kernel (tight check)."""
    bf16, f32 = jnp.bfloat16, jnp.float32

    def mm(a, b):
        return jnp.dot(a.astype(bf16), b.astype(bf16), preferred_element_type=f32)

    cf, rf = state["col_features"], state["row_features"]
    ef, ei = state["edge_features"], state["edge_indices"].reshape(2, -1)
    H = params["col_w"].shape[1]
    E = ef.shape[1]

    ce = jnp.maximum(mm(cf, params["col_w"]) + params["col_b"], 0.0)
    re = jnp.maximum(mm(rf, params["row_w"]) + params["row_b"], 0.0)
    if ei.shape[1] > 0:
        ri, ci = ei[0], ei[1]
        ce_b = ce.astype(bf16).astype(f32)
        re_b = re.astype(bf16).astype(f32)
        col_g, row_g = ce_b[ci], re_b[ri]

        w1 = params["v2c_w1"]
        h = jnp.maximum(mm(col_g, w1[:H]) + mm(ef, w1[H:H + E])
                        + mm(row_g, w1[H + E:]) + params["v2c_b1"], 0.0)
        # reassociated: aggregate h per row node, then node-sized W2 matmul
        agg_h = jnp.zeros((re.shape[0], H), f32).at[ri].add(h.astype(bf16).astype(f32))
        deg_r = jnp.zeros((re.shape[0], 1), f32).at[ri].add(1.0)
        nre = re + mm(agg_h, params["v2c_w2"]) + deg_r * params["v2c_b2"]

        nre_b = nre.astype(bf16).astype(f32)
        w1 = params["c2v_w1"]
        h2 = jnp.maximum(mm(nre_b[ri], w1[:H]) + mm(ef, w1[H:H + E])
                         + mm(col_g, w1[H + E:]) + params["c2v_b1"], 0.0)
        agg_h2 = jnp.zeros((ce.shape[0], H), f32).at[ci].add(h2.astype(bf16).astype(f32))
        deg_c = jnp.zeros((ce.shape[0], 1), f32).at[ci].add(1.0)
        nce = ce + mm(agg_h2, params["c2v_w2"]) + deg_c * params["c2v_b2"]
    else:
        nce = ce
    return (mm(nce, params["out_w"]) + params["out_b"])[:, 0]


if __name__ == "__main__":
    col_dim, row_dim, edge_dim, hidden_dim = 19, 14, 1, 64
    n_cols, n_rows, n_edges = 24, 16, 48

    key = jax.random.PRNGKey(0)
    k_param, k_cf, k_rf, k_ef, k_er, k_ec = jax.random.split(key, 6)

    params = init_params(k_param, col_dim, row_dim, edge_dim, hidden_dim)
    pp = prep_params(params, col_dim, row_dim, edge_dim, hidden_dim)

    state = {
        "col_features": jax.random.normal(k_cf, (n_cols, col_dim), jnp.float32),
        "row_features": jax.random.normal(k_rf, (n_rows, row_dim), jnp.float32),
        "edge_features": jax.random.normal(k_ef, (n_edges, edge_dim), jnp.float32),
        "edge_indices": jnp.stack([
            jax.random.randint(k_er, (n_edges,), 0, n_rows),
            jax.random.randint(k_ec, (n_edges,), 0, n_cols),
        ]).astype(jnp.int32),
        # branchable_mask is accepted by the PyTorch module but unused in forward
        "branchable_mask": jnp.ones((n_cols,), jnp.bool_),
    }

    scores = jax.block_until_ready(gcnn_forward(pp, state))
    assert scores.shape == (n_cols,)

    # tight check vs. bf16/reassociation-matched reference; loose check vs. float32 reference
    ref_bf = gcnn_forward_ref_bf16(params, state)
    ref_f32 = gcnn_forward_ref(params, state)
    assert jnp.allclose(scores, ref_bf, atol=2e-3, rtol=2e-3), "mismatch vs bf16 reference"
    assert jnp.allclose(scores, ref_f32, atol=1e-1, rtol=1e-1), "mismatch vs f32 reference"

    # zero-edge branch: padded (-1) edge slots must reproduce new_col_embeds == col_embeds
    state0 = dict(state)
    state0["edge_features"] = jnp.zeros((0, edge_dim), jnp.float32)
    state0["edge_indices"] = jnp.zeros((2, 0), jnp.int32)
    scores0 = jax.block_until_ready(gcnn_forward(pp, state0))
    assert jnp.allclose(scores0, gcnn_forward_ref_bf16(params, state0), atol=2e-3, rtol=2e-3)
    assert jnp.allclose(scores0, gcnn_forward_ref(params, state0), atol=1e-1, rtol=1e-1)

    print("KERNEL_OK")
</pallas_src>

<mosaic_0001>
module attributes {stable_mosaic.version = 11 : i64} {
  func.func @_gcnn_fused_kernel(%arg0: memref<128x24xbf16, #tpu.memory_space<vmem>>, %arg1: memref<128x16xbf16, #tpu.memory_space<vmem>>, %arg2: memref<128x8xbf16, #tpu.memory_space<vmem>>, %arg3: memref<2x128xi32, #tpu.memory_space<vmem>>, %arg4: memref<128x1xi32, #tpu.memory_space<vmem>>, %arg5: memref<128x1xi32, #tpu.memory_space<vmem>>, %arg6: memref<24x128xbf16, #tpu.memory_space<vmem>>, %arg7: memref<16x128xbf16, #tpu.memory_space<vmem>>, %arg8: memref<128x256xbf16, #tpu.memory_space<vmem>>, %arg9: memref<8x256xbf16, #tpu.memory_space<vmem>>, %arg10: memref<512x128xbf16, #tpu.memory_space<vmem>>, %arg11: memref<8x128xf32, #tpu.memory_space<vmem>>, %arg12: memref<1x128xbf16, #tpu.memory_space<vmem>>, %arg13: memref<1x128xf32, #tpu.memory_space<vmem>>) attributes {dimension_semantics = [], scalar_prefetch = 0 : i64, scratch_operands = 0 : i64, tpu.core_type = #tpu.core_type<tc>} {
    %c0 = arith.constant 0 : index
    %c0_0 = arith.constant 0 : index
    %0 = vector.load %arg11[%c0, %c0_0] : memref<8x128xf32, #tpu.memory_space<vmem>>, vector<1x128xf32>
    %c1 = arith.constant 1 : index
    %c0_1 = arith.constant 0 : index
    %1 = vector.load %arg11[%c1, %c0_1] : memref<8x128xf32, #tpu.memory_space<vmem>>, vector<1x128xf32>
    %c2 = arith.constant 2 : index
    %c0_2 = arith.constant 0 : index
    %2 = vector.load %arg11[%c2, %c0_2] : memref<8x128xf32, #tpu.memory_space<vmem>>, vector<1x128xf32>
    %c3 = arith.constant 3 : index
    %c0_3 = arith.constant 0 : index
    %3 = vector.load %arg11[%c3, %c0_3] : memref<8x128xf32, #tpu.memory_space<vmem>>, vector<1x128xf32>
    %c4 = arith.constant 4 : index
    %c0_4 = arith.constant 0 : index
    %4 = vector.load %arg11[%c4, %c0_4] : memref<8x128xf32, #tpu.memory_space<vmem>>, vector<1x128xf32>
    %c5 = arith.constant 5 : index
    %c0_5 = arith.constant 0 : index
    %5 = vector.load %arg11[%c5, %c0_5] : memref<8x128xf32, #tpu.memory_space<vmem>>, vector<1x128xf32>
    %c6 = arith.constant 6 : index
    %c0_6 = arith.constant 0 : index
    %6 = vector.load %arg11[%c6, %c0_6] : memref<8x128xf32, #tpu.memory_space<vmem>>, vector<1x1xf32>
    %c0_7 = arith.constant 0 : index
    %c0_8 = arith.constant 0 : index
    %7 = vector.load %arg10[%c0_7, %c0_8] : memref<512x128xbf16, #tpu.memory_space<vmem>>, vector<128x128xbf16>
    %c128 = arith.constant 128 : index
    %c0_9 = arith.constant 0 : index
    %8 = vector.load %arg10[%c128, %c0_9] : memref<512x128xbf16, #tpu.memory_space<vmem>>, vector<128x128xbf16>
    %c256 = arith.constant 256 : index
    %c0_10 = arith.constant 0 : index
    %9 = vector.load %arg10[%c256, %c0_10] : memref<512x128xbf16, #tpu.memory_space<vmem>>, vector<128x128xbf16>
    %c384 = arith.constant 384 : index
    %c0_11 = arith.constant 0 : index
    %10 = vector.load %arg10[%c384, %c0_11] : memref<512x128xbf16, #tpu.memory_space<vmem>>, vector<128x128xbf16>
    %c0_12 = arith.constant 0 : index
    %c0_13 = arith.constant 0 : index
    %11 = vector.load %arg0[%c0_12, %c0_13] : memref<128x24xbf16, #tpu.memory_space<vmem>>, vector<128x24xbf16>
    %c0_14 = arith.constant 0 : index
    %c0_15 = arith.constant 0 : index
    %12 = vector.load %arg6[%c0_14, %c0_15] : memref<24x128xbf16, #tpu.memory_space<vmem>>, vector<24x128xbf16>
    %cst = arith.constant dense<0.000000e+00> : vector<128x128xf32>
    %13 = tpu.matmul %11, %12, %cst {dimension_numbers = #tpu.dot_dimension_numbers<[1], [0], [0], [1], [0, 0, 1, 1], [], []>} : vector<128x24xbf16>, vector<24x128xbf16>, vector<128x128xf32> -> vector<128x128xf32>
    %14 = vector.broadcast %0 : vector<1x128xf32> to vector<128x128xf32>
    %15 = arith.addf %13, %14 : vector<128x128xf32>
    %cst_16 = arith.constant 0.000000e+00 : f32
    %16 = vector.broadcast %cst_16 : f32 to vector<128x128xf32>
    %17 = arith.maximumf %15, %16 : vector<128x128xf32>
    %c0_17 = arith.constant 0 : index
    %c0_18 = arith.constant 0 : index
    %18 = vector.load %arg1[%c0_17, %c0_18] : memref<128x16xbf16, #tpu.memory_space<vmem>>, vector<128x16xbf16>
    %c0_19 = arith.constant 0 : index
    %c0_20 = arith.constant 0 : index
    %19 = vector.load %arg7[%c0_19, %c0_20] : memref<16x128xbf16, #tpu.memory_space<vmem>>, vector<16x128xbf16>
    %cst_21 = arith.constant dense<0.000000e+00> : vector<128x128xf32>
    %20 = tpu.matmul %18, %19, %cst_21 {dimension_numbers = #tpu.dot_dimension_numbers<[1], [0], [0], [1], [0, 0, 1, 1], [], []>} : vector<128x16xbf16>, vector<16x128xbf16>, vector<128x128xf32> -> vector<128x128xf32>
    %21 = vector.broadcast %1 : vector<1x128xf32> to vector<128x128xf32>
    %22 = arith.addf %20, %21 : vector<128x128xf32>
    %cst_22 = arith.constant 0.000000e+00 : f32
    %23 = vector.broadcast %cst_22 : f32 to vector<128x128xf32>
    %24 = arith.maximumf %22, %23 : vector<128x128xf32>
    %c0_23 = arith.constant 0 : index
    %c0_24 = arith.constant 0 : index
    %25 = vector.load %arg3[%c0_23, %c0_24] : memref<2x128xi32, #tpu.memory_space<vmem>>, vector<1x128xi32>
    %c1_25 = arith.constant 1 : index
    %c0_26 = arith.constant 0 : index
    %26 = vector.load %arg3[%c1_25, %c0_26] : memref<2x128xi32, #tpu.memory_space<vmem>>, vector<1x128xi32>
    %27 = tpu.iota {dimensions = array<i32: 1>} : vector<128x128xi32>
    %c0_27 = arith.constant 0 : index
    %c0_28 = arith.constant 0 : index
    %28 = vector.load %arg5[%c0_27, %c0_28] : memref<128x1xi32, #tpu.memory_space<vmem>>, vector<128x1xi32>
    %29 = vector.broadcast %28 : vector<128x1xi32> to vector<128x128xi32>
    %30 = arith.cmpi eq, %27, %29 : vector<128x128xi32>
    %31 = arith.extui %30 : vector<128x128xi1> to vector<128x128xi32>
    %32 = arith.sitofp %31 : vector<128x128xi32> to vector<128x128xf32>
    %33 = arith.truncf %32 : vector<128x128xf32> to vector<128x128xbf16>
    %34 = tpu.iota {dimensions = array<i32: 0>} : vector<128x128xi32>
    %35 = vector.broadcast %26 : vector<1x128xi32> to vector<128x128xi32>
    %36 = arith.cmpi eq, %34, %35 : vector<128x128xi32>
    %37 = arith.extui %36 : vector<128x128xi1> to vector<128x128xi32>
    %38 = arith.sitofp %37 : vector<128x128xi32> to vector<128x128xf32>
    %39 = arith.truncf %38 : vector<128x128xf32> to vector<128x128xbf16>
    %40 = tpu.iota {dimensions = array<i32: 1>} : vector<128x128xi32>
    %c0_29 = arith.constant 0 : index
    %c0_30 = arith.constant 0 : index
    %41 = vector.load %arg4[%c0_29, %c0_30] : memref<128x1xi32, #tpu.memory_space<vmem>>, vector<128x1xi32>
    %42 = vector.broadcast %41 : vector<128x1xi32> to vector<128x128xi32>
    %43 = arith.cmpi eq, %40, %42 : vector<128x128xi32>
    %44 = arith.extui %43 : vector<128x128xi1> to vector<128x128xi32>
    %45 = arith.sitofp %44 : vector<128x128xi32> to vector<128x128xf32>
    %46 = arith.truncf %45 : vector<128x128xf32> to vector<128x128xbf16>
    %47 = tpu.iota {dimensions = array<i32: 0>} : vector<128x128xi32>
    %48 = vector.broadcast %25 : vector<1x128xi32> to vector<128x128xi32>
    %49 = arith.cmpi eq, %47, %48 : vector<128x128xi32>
    %50 = arith.extui %49 : vector<128x128xi1> to vector<128x128xi32>
    %51 = arith.sitofp %50 : vector<128x128xi32> to vector<128x128xf32>
    %52 = arith.truncf %51 : vector<128x128xf32> to vector<128x128xbf16>
    %53 = arith.extf %52 : vector<128x128xbf16> to vector<128x128xf32>
    %cst_31 = arith.constant dense<0.000000e+00> : vector<128xf32>
    %54 = vector.multi_reduction <add>, %53, %cst_31 [1] : vector<128x128xf32> to vector<128xf32>
    %55 = vector.shape_cast %54 : vector<128xf32> to vector<128x1xf32>
    %56 = arith.extf %39 : vector<128x128xbf16> to vector<128x128xf32>
    %cst_32 = arith.constant dense<0.000000e+00> : vector<128xf32>
    %57 = vector.multi_reduction <add>, %56, %cst_32 [1] : vector<128x128xf32> to vector<128xf32>
    %58 = vector.shape_cast %57 : vector<128xf32> to vector<128x1xf32>
    %c0_33 = arith.constant 0 : index
    %c0_34 = arith.constant 0 : index
    %59 = vector.load %arg2[%c0_33, %c0_34] : memref<128x8xbf16, #tpu.memory_space<vmem>>, vector<128x8xbf16>
    %60 = arith.truncf %17 : vector<128x128xf32> to vector<128x128xbf16>
    %61 = arith.truncf %24 : vector<128x128xf32> to vector<128x128xbf16>
    %cst_35 = arith.constant dense<0.000000e+00> : vector<128x128xf32>
    %62 = tpu.matmul %33, %60, %cst_35 {dimension_numbers = #tpu.dot_dimension_numbers<[1], [0], [0], [1], [0, 0, 1, 1], [], []>} : vector<128x128xbf16>, vector<128x128xbf16>, vector<128x128xf32> -> vector<128x128xf32>
    %cst_36 = arith.constant dense<0.000000e+00> : vector<128x128xf32>
    %63 = tpu.matmul %46, %61, %cst_36 {dimension_numbers = #tpu.dot_dimension_numbers<[1], [0], [0], [1], [0, 0, 1, 1], [], []>} : vector<128x128xbf16>, vector<128x128xbf16>, vector<128x128xf32> -> vector<128x128xf32>
    %64 = arith.truncf %62 : vector<128x128xf32> to vector<128x128xbf16>
    %c0_37 = arith.constant 0 : index
    %c0_38 = arith.constant 0 : index
    %65 = vector.load %arg8[%c0_37, %c0_38] : memref<128x256xbf16, #tpu.memory_space<vmem>>, vector<128x256xbf16>
    %cst_39 = arith.constant dense<0.000000e+00> : vector<128x256xf32>
    %66 = tpu.matmul %64, %65, %cst_39 {dimension_numbers = #tpu.dot_dimension_numbers<[1], [0], [0], [1], [0, 0, 1, 1], [], []>} : vector<128x128xbf16>, vector<128x256xbf16>, vector<128x256xf32> -> vector<128x256xf32>
    %c0_40 = arith.constant 0 : index
    %c0_41 = arith.constant 0 : index
    %67 = vector.load %arg9[%c0_40, %c0_41] : memref<8x256xbf16, #tpu.memory_space<vmem>>, vector<8x256xbf16>
    %cst_42 = arith.constant dense<0.000000e+00> : vector<128x256xf32>
    %68 = tpu.matmul %59, %67, %cst_42 {dimension_numbers = #tpu.dot_dimension_numbers<[1], [0], [0], [1], [0, 0, 1, 1], [], []>} : vector<128x8xbf16>, vector<8x256xbf16>, vector<128x256xf32> -> vector<128x256xf32>
    %69 = vector.extract_strided_slice %66 {offsets = [0, 0], sizes = [128, 128], strides = [1, 1]} : vector<128x256xf32> to vector<128x128xf32>
    %70 = vector.extract_strided_slice %68 {offsets = [0, 0], sizes = [128, 128], strides = [1, 1]} : vector<128x256xf32> to vector<128x128xf32>
    %71 = arith.addf %69, %70 : vector<128x128xf32>
    %72 = arith.truncf %63 : vector<128x128xf32> to vector<128x128xbf16>
    %cst_43 = arith.constant dense<0.000000e+00> : vector<128x128xf32>
    %73 = tpu.matmul %72, %7, %cst_43 {dimension_numbers = #tpu.dot_dimension_numbers<[1], [0], [0], [1], [0, 0, 1, 1], [], []>} : vector<128x128xbf16>, vector<128x128xbf16>, vector<128x128xf32> -> vector<128x128xf32>
    %74 = arith.addf %71, %73 : vector<128x128xf32>
    %75 = vector.broadcast %2 : vector<1x128xf32> to vector<128x128xf32>
    %76 = arith.addf %74, %75 : vector<128x128xf32>
    %cst_44 = arith.constant 0.000000e+00 : f32
    %77 = vector.broadcast %cst_44 : f32 to vector<128x128xf32>
    %78 = arith.maximumf %76, %77 : vector<128x128xf32>
    %79 = arith.truncf %78 : vector<128x128xf32> to vector<128x128xbf16>
    %cst_45 = arith.constant dense<0.000000e+00> : vector<128x128xf32>
    %80 = tpu.matmul %52, %79, %cst_45 {dimension_numbers = #tpu.dot_dimension_numbers<[1], [0], [0], [1], [0, 0, 1, 1], [], []>} : vector<128x128xbf16>, vector<128x128xbf16>, vector<128x128xf32> -> vector<128x128xf32>
    %81 = arith.truncf %80 : vector<128x128xf32> to vector<128x128xbf16>
    %cst_46 = arith.constant dense<0.000000e+00> : vector<128x128xf32>
    %82 = tpu.matmul %81, %9, %cst_46 {dimension_numbers = #tpu.dot_dimension_numbers<[1], [0], [0], [1], [0, 0, 1, 1], [], []>} : vector<128x128xbf16>, vector<128x128xbf16>, vector<128x128xf32> -> vector<128x128xf32>
    %83 = arith.addf %24, %82 : vector<128x128xf32>
    %84 = vector.broadcast %55 : vector<128x1xf32> to vector<128x128xf32>
    %85 = vector.broadcast %3 : vector<1x128xf32> to vector<128x128xf32>
    %86 = arith.mulf %84, %85 : vector<128x128xf32>
    %87 = arith.addf %83, %86 : vector<128x128xf32>
    %88 = arith.truncf %87 : vector<128x128xf32> to vector<128x128xbf16>
    %cst_47 = arith.constant dense<0.000000e+00> : vector<128x128xf32>
    %89 = tpu.matmul %46, %88, %cst_47 {dimension_numbers = #tpu.dot_dimension_numbers<[1], [0], [0], [1], [0, 0, 1, 1], [], []>} : vector<128x128xbf16>, vector<128x128xbf16>, vector<128x128xf32> -> vector<128x128xf32>
    %90 = arith.truncf %89 : vector<128x128xf32> to vector<128x128xbf16>
    %cst_48 = arith.constant dense<0.000000e+00> : vector<128x128xf32>
    %91 = tpu.matmul %90, %8, %cst_48 {dimension_numbers = #tpu.dot_dimension_numbers<[1], [0], [0], [1], [0, 0, 1, 1], [], []>} : vector<128x128xbf16>, vector<128x128xbf16>, vector<128x128xf32> -> vector<128x128xf32>
    %92 = vector.extract_strided_slice %68 {offsets = [0, 128], sizes = [128, 128], strides = [1, 1]} : vector<128x256xf32> to vector<128x128xf32>
    %93 = arith.addf %91, %92 : vector<128x128xf32>
    %94 = vector.extract_strided_slice %66 {offsets = [0, 128], sizes = [128, 128], strides = [1, 1]} : vector<128x256xf32> to vector<128x128xf32>
    %95 = arith.addf %93, %94 : vector<128x128xf32>
    %96 = vector.broadcast %4 : vector<1x128xf32> to vector<128x128xf32>
    %97 = arith.addf %95, %96 : vector<128x128xf32>
    %cst_49 = arith.constant 0.000000e+00 : f32
    %98 = vector.broadcast %cst_49 : f32 to vector<128x128xf32>
    %99 = arith.maximumf %97, %98 : vector<128x128xf32>
    %100 = arith.truncf %99 : vector<128x128xf32> to vector<128x128xbf16>
    %cst_50 = arith.constant dense<0.000000e+00> : vector<128x128xf32>
    %101 = tpu.matmul %39, %100, %cst_50 {dimension_numbers = #tpu.dot_dimension_numbers<[1], [0], [0], [1], [0, 0, 1, 1], [], []>} : vector<128x128xbf16>, vector<128x128xbf16>, vector<128x128xf32> -> vector<128x128xf32>
    %102 = arith.truncf %101 : vector<128x128xf32> to vector<128x128xbf16>
    %cst_51 = arith.constant dense<0.000000e+00> : vector<128x128xf32>
    %103 = tpu.matmul %102, %10, %cst_51 {dimension_numbers = #tpu.dot_dimension_numbers<[1], [0], [0], [1], [0, 0, 1, 1], [], []>} : vector<128x128xbf16>, vector<128x128xbf16>, vector<128x128xf32> -> vector<128x128xf32>
    %104 = arith.addf %17, %103 : vector<128x128xf32>
    %105 = vector.broadcast %58 : vector<128x1xf32> to vector<128x128xf32>
    %106 = vector.broadcast %5 : vector<1x128xf32> to vector<128x128xf32>
    %107 = arith.mulf %105, %106 : vector<128x128xf32>
    %108 = arith.addf %104, %107 : vector<128x128xf32>
    %c0_52 = arith.constant 0 : index
    %c0_53 = arith.constant 0 : index
    %109 = vector.load %arg12[%c0_52, %c0_53] : memref<1x128xbf16, #tpu.memory_space<vmem>>, vector<1x128xbf16>
    %110 = arith.truncf %108 : vector<128x128xf32> to vector<128x128xbf16>
    %cst_54 = arith.constant dense<0.000000e+00> : vector<1x128xf32>
    %111 = tpu.matmul %109, %110, %cst_54 {dimension_numbers = #tpu.dot_dimension_numbers<[1], [1], [0], [0], [0, 0, 1, 0], [], []>} : vector<1x128xbf16>, vector<128x128xbf16>, vector<1x128xf32> -> vector<1x128xf32>
    %112 = vector.broadcast %6 : vector<1x1xf32> to vector<1x128xf32>
    %113 = arith.addf %111, %112 : vector<1x128xf32>
    %c0_55 = arith.constant 0 : index
    %c0_56 = arith.constant 0 : index
    %114 = vector.load %arg13[%c0_55, %c0_56] : memref<1x128xf32, #tpu.memory_space<vmem>>, vector<1x128xf32>
    tpu.vector_store %arg13[%c0_55, %c0_56], %113 {strides = array<i32>} : memref<1x128xf32, #tpu.memory_space<vmem>>, vector<1x128xf32>,
    return
  }
}

</mosaic_0001>

<llo_original>
// kernel: tpu_custom_call.1
$region0: #{tpu_custom_call.1}
  #allocation0 [shape = 'u32[]', space=smem, size = 0x4, offset = 0x4, fixed_abs, tag = 'smem constant byte address 0x4 - core index']
  #allocation1 [shape = 'u32[144,128]{1,0:T(1,128)}', space=vmem, size = 0x12000, scoped, tag = 'internal scratch']
  %s0 = inlined_call_operand.vmem [shape: bf16[128,24], index: 0, kind: input, shape index: {}]
  %s1 = inlined_call_operand.vmem [shape: bf16[128,16], index: 1, kind: input, shape index: {}]
  %s2 = inlined_call_operand.vmem [shape: bf16[128,8], index: 2, kind: input, shape index: {}]
  %s3 = inlined_call_operand.vmem [shape: s32[2,128], index: 3, kind: input, shape index: {}]
  %s4 = inlined_call_operand.vmem [shape: s32[128,1], index: 4, kind: input, shape index: {}]
  %s5 = inlined_call_operand.vmem [shape: s32[128,1], index: 5, kind: input, shape index: {}]
  %s6 = inlined_call_operand.vmem [shape: bf16[24,128], index: 6, kind: input, shape index: {}]
  %s7 = inlined_call_operand.vmem [shape: bf16[16,128], index: 7, kind: input, shape index: {}]
  %s8 = inlined_call_operand.vmem [shape: bf16[128,256], index: 8, kind: input, shape index: {}]
  %s9 = inlined_call_operand.vmem [shape: bf16[8,256], index: 9, kind: input, shape index: {}]
  %s10 = inlined_call_operand.vmem [shape: bf16[512,128], index: 10, kind: input, shape index: {}]
  %s11 = inlined_call_operand.vmem [shape: f32[8,128], index: 11, kind: input, shape index: {}]
  %s12 = inlined_call_operand.vmem [shape: bf16[1,128], index: 12, kind: input, shape index: {}]
  %s13 = inlined_call_operand.hbm [shape: f32[1,128], index: 13, kind: output, shape index: {}]
  %s14 = sld [smem:[#allocation0]]
  $region62: #{tpu_custom_call.1} parent=0
    _
  %s16 = ssub.s32 1, %s14
  %s17 = scalar_select 0, %s16, %s14
  $region1: #{tpu_custom_call.1} parent=0
    #allocation2 [shape = 'u8[512]{0}', space=vmem, size = 0x400, scoped, tag = 'output window, operand 0, single buffered']
    #allocation3 [shape = 's32[1]{0}', space=sflag, size = 0x4, scoped, tag = 'scoped memory for tpu_custom_call.1']
    %18 = vsyncpa [#allocation3], 0
    // Predicated region
    $region2: #{tpu_custom_call.1} parent=1 // pred_check
      _
    $region3: #{tpu_custom_call.1} parent=1 // pred_check_branch
      %20 = sbr.rel (0) target = $region5
    $region4: #{tpu_custom_call.1} parent=1 // pred_region
      _
    $region5: #{tpu_custom_call.1} parent=1 // pred_fallthru
      _
    // Predicated region
    $region6: #{tpu_custom_call.1} parent=1 // pred_check
      _
    $region7: #{tpu_custom_call.1} parent=1 // pred_check_branch
      %22 = sbr.rel (0) target = $region9
    $region8: #{tpu_custom_call.1} parent=1 // pred_region
      _
    $region9: #{tpu_custom_call.1} parent=1 // pred_fallthru
      _
    // Predicated region
    $region10: #{tpu_custom_call.1} parent=1 // pred_check
      _
    $region11: #{tpu_custom_call.1} parent=1 // pred_check_branch
      %24 = sbr.rel (0) target = $region13
    $region12: #{tpu_custom_call.1} parent=1 // pred_region
      _
    $region13: #{tpu_custom_call.1} parent=1 // pred_fallthru
      _
    // Predicated region
    $region14: #{tpu_custom_call.1} parent=1 // pred_check
      _
    $region15: #{tpu_custom_call.1} parent=1 // pred_check_branch
      %26 = sbr.rel (0) target = $region17
    $region16: #{tpu_custom_call.1} parent=1 // pred_region
      _
    $region17: #{tpu_custom_call.1} parent=1 // pred_fallthru
      _
    // Predicated region
    $region18: #{tpu_custom_call.1} parent=1 // pred_check
      _
    $region19: #{tpu_custom_call.1} parent=1 // pred_check_branch
      %28 = sbr.rel (0) target = $region21
    $region20: #{tpu_custom_call.1} parent=1 // pred_region
      _
    $region21: #{tpu_custom_call.1} parent=1 // pred_fallthru
      _
    // Predicated region
    $region22: #{tpu_custom_call.1} parent=1 // pred_check
      _
    $region23: #{tpu_custom_call.1} parent=1 // pred_check_branch
      %30 = sbr.rel (0) target = $region25
    $region24: #{tpu_custom_call.1} parent=1 // pred_region
      _
    $region25: #{tpu_custom_call.1} parent=1 // pred_fallthru
      _
    // Predicated region
    $region26: #{tpu_custom_call.1} parent=1 // pred_check
      _
    $region27: #{tpu_custom_call.1} parent=1 // pred_check_branch
      %32 = sbr.rel (0) target = $region29
    $region28: #{tpu_custom_call.1} parent=1 // pred_region
      _
    $region29: #{tpu_custom_call.1} parent=1 // pred_fallthru
      _
    // Predicated region
    $region30: #{tpu_custom_call.1} parent=1 // pred_check
      _
    $region31: #{tpu_custom_call.1} parent=1 // pred_check_branch
      %34 = sbr.rel (0) target = $region33
    $region32: #{tpu_custom_call.1} parent=1 // pred_region
      _
    $region33: #{tpu_custom_call.1} parent=1 // pred_fallthru
      _
    // Predicated region
    $region34: #{tpu_custom_call.1} parent=1 // pred_check
      _
    $region35: #{tpu_custom_call.1} parent=1 // pred_check_branch
      %36 = sbr.rel (0) target = $region37
    $region36: #{tpu_custom_call.1} parent=1 // pred_region
      _
    $region37: #{tpu_custom_call.1} parent=1 // pred_fallthru
      _
    // Predicated region
    $region38: #{tpu_custom_call.1} parent=1 // pred_check
      _
    $region39: #{tpu_custom_call.1} parent=1 // pred_check_branch
      %38 = sbr.rel (0) target = $region41
    $region40: #{tpu_custom_call.1} parent=1 // pred_region
      _
    $region41: #{tpu_custom_call.1} parent=1 // pred_fallthru
      _
    // Predicated region
    $region42: #{tpu_custom_call.1} parent=1 // pred_check
      _
    $region43: #{tpu_custom_call.1} parent=1 // pred_check_branch
      %40 = sbr.rel (0) target = $region45
    $region44: #{tpu_custom_call.1} parent=1 // pred_region
      _
    $region45: #{tpu_custom_call.1} parent=1 // pred_fallthru
      _
    // Predicated region
    $region46: #{tpu_custom_call.1} parent=1 // pred_check
      _
    $region47: #{tpu_custom_call.1} parent=1 // pred_check_branch
      %42 = sbr.rel (0) target = $region49
    $region48: #{tpu_custom_call.1} parent=1 // pred_region
      _
    $region49: #{tpu_custom_call.1} parent=1 // pred_fallthru
      _
    // Predicated region
    $region50: #{tpu_custom_call.1} parent=1 // pred_check
      _
    $region51: #{tpu_custom_call.1} parent=1 // pred_check_branch
      %44 = sbr.rel (0) target = $region53
    $region52: #{tpu_custom_call.1} parent=1 // pred_region
      _
    $region53: #{tpu_custom_call.1} parent=1 // pred_fallthru
      _
    %v46 = vld [vmem:[%s11] sm:$0x1]
    %v47 = vld [vmem:[%s11 + $0x1] sm:$0x1]
    %v48 = vld [vmem:[%s11 + $0x2] sm:$0x1]
    %v49 = vld [vmem:[%s11 + $0x3] sm:$0x1]
    %v50 = vld [vmem:[%s11 + $0x4] sm:$0x1]
    %v51 = vld [vmem:[%s11 + $0x5] sm:$0x1]
    %v52 = vld [vmem:[%s11 + $0x6] sm:$0x1]
    %v53 = vld [vmem:[%s10] sm:$0xf]
    %v54 = vld [vmem:[%s10 + $0x4] sm:$0xf]
    %v55 = vld [vmem:[%s10 + $0x8] sm:$0xf]
    %v56 = vld [vmem:[%s10 + $0xc] sm:$0xf]
    %v57 = vld [vmem:[%s10 + $0x10] sm:$0xf]
    %v58 = vld [vmem:[%s10 + $0x14] sm:$0xf]
    %v59 = vld [vmem:[%s10 + $0x18] sm:$0xf]
    %v60 = vld [vmem:[%s10 + $0x1c] sm:$0xf]
    %v61 = vld [vmem:[%s10 + $0x20] sm:$0xf]
    %v62 = vld [vmem:[%s10 + $0x24] sm:$0xf]
    %v63 = vld [vmem:[%s10 + $0x28] sm:$0xf]
    %v64 = vld [vmem:[%s10 + $0x2c] sm:$0xf]
    %v65 = vld [vmem:[%s10 + $0x30] sm:$0xf]
    %v66 = vld [vmem:[%s10 + $0x34] sm:$0xf]
    %v67 = vld [vmem:[%s10 + $0x38] sm:$0xf]
    %v68 = vld [vmem:[%s10 + $0x3c] sm:$0xf]
    %v69 = vld [vmem:[%s10 + $0x40] sm:$0xf]
    %v70 = vld [vmem:[%s10 + $0x44] sm:$0xf]
    %v71 = vld [vmem:[%s10 + $0x48] sm:$0xf]
    %v72 = vld [vmem:[%s10 + $0x4c] sm:$0xf]
    %v73 = vld [vmem:[%s10 + $0x50] sm:$0xf]
    %v74 = vld [vmem:[%s10 + $0x54] sm:$0xf]
    %v75 = vld [vmem:[%s10 + $0x58] sm:$0xf]
    %v76 = vld [vmem:[%s10 + $0x5c] sm:$0xf]
    %v77 = vld [vmem:[%s10 + $0x60] sm:$0xf]
    %v78 = vld [vmem:[%s10 + $0x64] sm:$0xf]
    %v79 = vld [vmem:[%s10 + $0x68] sm:$0xf]
    %v80 = vld [vmem:[%s10 + $0x6c] sm:$0xf]
    %v81 = vld [vmem:[%s10 + $0x70] sm:$0xf]
    %v82 = vld [vmem:[%s10 + $0x74] sm:$0xf]
    %v83 = vld [vmem:[%s10 + $0x78] sm:$0xf]
    %v84 = vld [vmem:[%s10 + $0x7c] sm:$0xf]
    %v85 = vld [vmem:[%s10 + $0x80] sm:$0xf]
    %v86 = vld [vmem:[%s10 + $0x84] sm:$0xf]
    %v87 = vld [vmem:[%s10 + $0x88] sm:$0xf]
    %v88 = vld [vmem:[%s10 + $0x8c] sm:$0xf]
    %v89 = vld [vmem:[%s10 + $0x90] sm:$0xf]
    %v90 = vld [vmem:[%s10 + $0x94] sm:$0xf]
    %v91 = vld [vmem:[%s10 + $0x98] sm:$0xf]
    %v92 = vld [vmem:[%s10 + $0x9c] sm:$0xf]
    %v93 = vld [vmem:[%s10 + $0xa0] sm:$0xf]
    %v94 = vld [vmem:[%s10 + $0xa4] sm:$0xf]
    %v95 = vld [vmem:[%s10 + $0xa8] sm:$0xf]
    %v96 = vld [vmem:[%s10 + $0xac] sm:$0xf]
    %v97 = vld [vmem:[%s10 + $0xb0] sm:$0xf]
    %v98 = vld [vmem:[%s10 + $0xb4] sm:$0xf]
    %v99 = vld [vmem:[%s10 + $0xb8] sm:$0xf]
    %v100 = vld [vmem:[%s10 + $0xbc] sm:$0xf]
    %v101 = vld [vmem:[%s10 + $0xc0] sm:$0xf]
    %v102 = vld [vmem:[%s10 + $0xc4] sm:$0xf]
    %v103 = vld [vmem:[%s10 + $0xc8] sm:$0xf]
    %v104 = vld [vmem:[%s10 + $0xcc] sm:$0xf]
    %v105 = vld [vmem:[%s10 + $0xd0] sm:$0xf]
    %v106 = vld [vmem:[%s10 + $0xd4] sm:$0xf]
    %v107 = vld [vmem:[%s10 + $0xd8] sm:$0xf]
    %v108 = vld [vmem:[%s10 + $0xdc] sm:$0xf]
    %v109 = vld [vmem:[%s10 + $0xe0] sm:$0xf]
    %v110 = vld [vmem:[%s10 + $0xe4] sm:$0xf]
    %v111 = vld [vmem:[%s10 + $0xe8] sm:$0xf]
    %v112 = vld [vmem:[%s10 + $0xec] sm:$0xf]
    %v113 = vld [vmem:[%s10 + $0xf0] sm:$0xf]
    %v114 = vld [vmem:[%s10 + $0xf4] sm:$0xf]
    %v115 = vld [vmem:[%s10 + $0xf8] sm:$0xf]
    %v116 = vld [vmem:[%s10 + $0xfc] sm:$0xf]
    %v117 = vld [vmem:[%s0] sm:$0xf]
    %v118 = vld [vmem:[%s0 + $0x4] sm:$0xf]
    %v119 = vld [vmem:[%s0 + $0x8] sm:$0xf]
    %v120 = vld [vmem:[%s0 + $0xc] sm:$0xf]
    %v121 = vld [vmem:[%s0 + $0x10] sm:$0xf]
    %v122 = vld [vmem:[%s0 + $0x14] sm:$0xf]
    %v123 = vld [vmem:[%s0 + $0x18] sm:$0xf]
    %v124 = vld [vmem:[%s0 + $0x1c] sm:$0xf]
    %v125 = vld [vmem:[%s0 + $0x20] sm:$0xf]
    %v126 = vld [vmem:[%s0 + $0x24] sm:$0xf]
    %v127 = vld [vmem:[%s0 + $0x28] sm:$0xf]
    %v128 = vld [vmem:[%s0 + $0x2c] sm:$0xf]
    %v129 = vld [vmem:[%s0 + $0x30] sm:$0xf]
    %v130 = vld [vmem:[%s0 + $0x34] sm:$0xf]
    %v131 = vld [vmem:[%s0 + $0x38] sm:$0xf]
    %v132 = vld [vmem:[%s0 + $0x3c] sm:$0xf]
    %v133 = vld [vmem:[%s6] sm:$0xf]
    %v134 = vld [vmem:[%s6 + $0x4] sm:$0xf]
    %v135 = vld [vmem:[%s6 + $0x8] sm:$0xf]
    %v136 = vlaneseq
    %v137 = vshrl.u32 %v136, 7
    %v138 = vsub.s32 0, %v137
    %v139 = vrot.slane %v46, %v138
    %v156 = vunpack.c.l.b16 %v117
    %v157 = vunpack.c.l.b16 %v118
    %v158 = vunpack.c.l.b16 %v119
    %v159 = vunpack.c.l.b16 %v120
    %v160 = vunpack.c.l.b16 %v121
    %v161 = vunpack.c.l.b16 %v122
    %v162 = vunpack.c.l.b16 %v123
    %v163 = vunpack.c.l.b16 %v124
    %v164 = vunpack.c.l.b16 %v125
    %v165 = vunpack.c.l.b16 %v126
    %v166 = vunpack.c.l.b16 %v127
    %v167 = vunpack.c.l.b16 %v128
    %v168 = vunpack.c.l.b16 %v129
    %v169 = vunpack.c.l.b16 %v130
    %v170 = vunpack.c.l.b16 %v131
    %v171 = vunpack.c.l.b16 %v132
    %v172 = vpack.c.b16 %v157, %v156
    %v173 = vpack.c.b16 %v159, %v158
    %v174 = vpack.c.b16 %v161, %v160
    %v175 = vpack.c.b16 %v163, %v162
    %v176 = vpack.c.b16 %v165, %v164
    %v177 = vpack.c.b16 %v167, %v166
    %v178 = vpack.c.b16 %v169, %v168
    %v179 = vpack.c.b16 %v171, %v170
    %v183 = vunpack.c.l.b16 %v133
    %v184 = vunpack.c.l.b16 %v134
    %v185 = vunpack.c.l.b16 %v135
    %v186 = vpack.c.b16 %v184, %v183
    %v187 = vpack.c.b16 %v185, %v185
    %vm189 = vcmask 195584
    %v191 = vsel %vm189, %v172, 0
    %v194 = vsel %vm189, %v173, 0
    %v197 = vsel %vm189, %v174, 0
    %v200 = vsel %vm189, %v175, 0
    %v203 = vsel %vm189, %v176, 0
    %v206 = vsel %vm189, %v177, 0
    %v209 = vsel %vm189, %v178, 0
    %v212 = vsel %vm189, %v179, 0
    %vm214 = vcmask 1043456
    %v216 = vsel %vm214, %v187, 0
    %218 = vmatprep.subr.bf16.mxu0 0
    %219 = vmatpush1.bf16.msra.mxu0 0
    %220 = vmatprep.subr.bf16.mxu0 0
    %221 = vmatpush1.bf16.msra.mxu0 0
    %222 = vmatprep.subr.bf16.mxu0 0
    %223 = vmatpush1.bf16.msra.mxu0 0
    %224 = vmatprep.subr.bf16.mxu0 0
    %225 = vmatpush1.bf16.msra.mxu0 0
    %226 = vmatprep.subr.bf16.mxu0 0
    %227 = vmatpush1.bf16.msra.mxu0 0
    %228 = vmatprep.subr.bf16.mxu0 0
    %229 = vmatpush1.bf16.msra.mxu0 0
    %230 = vmatprep.subr.bf16.mxu0 0
    %231 = vmatpush1.bf16.msra.mxu0 %v216
    %232 = vmatprep.subr.bf16.mxu0 0
    %233 = vmatpush1.bf16.msra.mxu0 %v186
    %234 = vmatprep.subr.bf16.mxu0 0
    %235 = vmatpush2.bf16.msra.mxu0 0
    %236 = vmatprep.subr.bf16.mxu0 0
    %237 = vmatpush2.bf16.msra.mxu0 0
    %238 = vmatprep.subr.bf16.mxu0 0
    %239 = vmatpush2.bf16.msra.mxu0 0
    %240 = vmatprep.subr.bf16.mxu0 0
    %241 = vmatpush2.bf16.msra.mxu0 0
    %242 = vmatprep.subr.bf16.mxu0 0
    %243 = vmatpush2.bf16.msra.mxu0 0
    %244 = vmatprep.subr.bf16.mxu0 0
    %245 = vmatpush2.bf16.msra.mxu0 0
    %246 = vmatprep.subr.bf16.mxu0 0
    %247 = vmatpush2.bf16.msra.mxu0 0
    %248 = vmatprep.subr.bf16.mxu0 0
    %249 = vmatpush2.bf16.msra.mxu0 0
    %250 = vmatprep.mubr.bf16.mxu0 0
    %251 = vmatmul.mubr.bf16.gmra.mxu0 %v191
    %v252 = vpop.f32.mrf.mxu0
    %v253 = vadd.f32 %v139, %v252
    %v254 = vpop.f32.mrf.mxu0
    %v255 = vpop.f32.mrf.mxu0
    %v256 = vadd.f32 %v139, %v255
    %v257 = vpop.f32.mrf.mxu0
    %258 = vmatprep.mubr.bf16.mxu0 0
    %259 = vmatmul.mubr.bf16.gmra.mxu0 %v194
    %v260 = vpop.f32.mrf.mxu0
    %v261 = vadd.f32 %v139, %v260
    %v262 = vpop.f32.mrf.mxu0
    %v263 = vpop.f32.mrf.mxu0
    %v264 = vadd.f32 %v139, %v263
    %v265 = vpop.f32.mrf.mxu0
    %266 = vmatprep.mubr.bf16.mxu0 0
    %267 = vmatmul.mubr.bf16.gmra.mxu0 %v197
    %v268 = vpop.f32.mrf.mxu0
    %v269 = vadd.f32 %v139, %v268
    %v270 = vpop.f32.mrf.mxu0
    %v271 = vpop.f32.mrf.mxu0
    %v272 = vadd.f32 %v139, %v271
    %v273 = vpop.f32.mrf.mxu0
    %274 = vmatprep.mubr.bf16.mxu0 0
    %275 = vmatmul.mubr.bf16.gmra.mxu0 %v200
    %v276 = vpop.f32.mrf.mxu0
    %v277 = vadd.f32 %v139, %v276
    %v278 = vpop.f32.mrf.mxu0
    %v279 = vpop.f32.mrf.mxu0
    %v280 = vadd.f32 %v139, %v279
    %v281 = vpop.f32.mrf.mxu0
    %282 = vmatprep.mubr.bf16.mxu0 0
    %283 = vmatmul.mubr.bf16.gmra.mxu0 %v203
    %v284 = vpop.f32.mrf.mxu0
    %v285 = vadd.f32 %v139, %v284
    %v286 = vpop.f32.mrf.mxu0
    %v287 = vpop.f32.mrf.mxu0
    %v288 = vadd.f32 %v139, %v287
    %v289 = vpop.f32.mrf.mxu0
    %290 = vmatprep.mubr.bf16.mxu0 0
    %291 = vmatmul.mubr.bf16.gmra.mxu0 %v206
    %v292 = vpop.f32.mrf.mxu0
    %v293 = vadd.f32 %v139, %v292
    %v294 = vpop.f32.mrf.mxu0
    %v295 = vpop.f32.mrf.mxu0
    %v296 = vadd.f32 %v139, %v295
    %v297 = vpop.f32.mrf.mxu0
    %298 = vmatprep.mubr.bf16.mxu0 0
    %299 = vmatmul.mubr.bf16.gmra.mxu0 %v209
    %v300 = vpop.f32.mrf.mxu0
    %v301 = vadd.f32 %v139, %v300
    %v302 = vpop.f32.mrf.mxu0
    %v303 = vpop.f32.mrf.mxu0
    %v304 = vadd.f32 %v139, %v303
    %v305 = vpop.f32.mrf.mxu0
    %306 = vmatprep.mubr.bf16.mxu0 0
    %307 = vmatmul.mubr.bf16.gmra.mxu0 %v212
    %v308 = vpop.f32.mrf.mxu0
    %v309 = vadd.f32 %v139, %v308
    %v310 = vpop.f32.mrf.mxu0
    %v311 = vpop.f32.mrf.mxu0
    %v312 = vadd.f32 %v139, %v311
    %v313 = vpop.f32.mrf.mxu0
    %314 = vdwg.mxu0
    %v315 = vmax.f32 %v253, 0.0
    %v316 = vmax.f32 %v256, 0.0
    %v317 = vmax.f32 %v261, 0.0
    %v318 = vmax.f32 %v264, 0.0
    %v319 = vmax.f32 %v269, 0.0
    %v320 = vmax.f32 %v272, 0.0
    %v321 = vmax.f32 %v277, 0.0
    %v322 = vmax.f32 %v280, 0.0
    %v323 = vmax.f32 %v285, 0.0
    %v324 = vmax.f32 %v288, 0.0
    %v325 = vmax.f32 %v293, 0.0
    %v326 = vmax.f32 %v296, 0.0
    %v327 = vmax.f32 %v301, 0.0
    %v328 = vmax.f32 %v304, 0.0
    %v329 = vmax.f32 %v309, 0.0
    %v330 = vmax.f32 %v312, 0.0
    %v331 = vld [vmem:[%s1] sm:$0xf]
    %v332 = vld [vmem:[%s1 + $0x4] sm:$0xf]
    %v333 = vld [vmem:[%s1 + $0x8] sm:$0xf]
    %v334 = vld [vmem:[%s1 + $0xc] sm:$0xf]
    %v335 = vld [vmem:[%s1 + $0x10] sm:$0xf]
    %v336 = vld [vmem:[%s1 + $0x14] sm:$0xf]
    %v337 = vld [vmem:[%s1 + $0x18] sm:$0xf]
    %v338 = vld [vmem:[%s1 + $0x1c] sm:$0xf]
    %v339 = vld [vmem:[%s1 + $0x20] sm:$0xf]
    %v340 = vld [vmem:[%s1 + $0x24] sm:$0xf]
    %v341 = vld [vmem:[%s1 + $0x28] sm:$0xf]
    %v342 = vld [vmem:[%s1 + $0x2c] sm:$0xf]
    %v343 = vld [vmem:[%s1 + $0x30] sm:$0xf]
    %v344 = vld [vmem:[%s1 + $0x34] sm:$0xf]
    %v345 = vld [vmem:[%s1 + $0x38] sm:$0xf]
    %v346 = vld [vmem:[%s1 + $0x3c] sm:$0xf]
    %v347 = vld [vmem:[%s7] sm:$0xf]
    %v348 = vld [vmem:[%s7 + $0x4] sm:$0xf]
    %v349 = vlaneseq
    %v350 = vshrl.u32 %v349, 7
    %v351 = vsub.s32 0, %v350
    %v352 = vrot.slane %v47, %v351
    %v369 = vunpack.c.l.b16 %v331
    %v370 = vunpack.c.l.b16 %v332
    %v371 = vunpack.c.l.b16 %v333
    %v372 = vunpack.c.l.b16 %v334
    %v373 = vunpack.c.l.b16 %v335
    %v374 = vunpack.c.l.b16 %v336
    %v375 = vunpack.c.l.b16 %v337
    %v376 = vunpack.c.l.b16 %v338
    %v377 = vunpack.c.l.b16 %v339
    %v378 = vunpack.c.l.b16 %v340
    %v379 = vunpack.c.l.b16 %v341
    %v380 = vunpack.c.l.b16 %v342
    %v381 = vunpack.c.l.b16 %v343
    %v382 = vunpack.c.l.b16 %v344
    %v383 = vunpack.c.l.b16 %v345
    %v384 = vunpack.c.l.b16 %v346
    %v385 = vpack.c.b16 %v370, %v369
    %v386 = vpack.c.b16 %v372, %v371
    %v387 = vpack.c.b16 %v374, %v373
    %v388 = vpack.c.b16 %v376, %v375
    %v389 = vpack.c.b16 %v378, %v377
    %v390 = vpack.c.b16 %v380, %v379
    %v391 = vpack.c.b16 %v382, %v381
    %v392 = vpack.c.b16 %v384, %v383
    %v395 = vunpack.c.l.b16 %v347
    %v396 = vunpack.c.l.b16 %v348
    %v397 = vpack.c.b16 %v396, %v395
    %vm399 = vcmask 130048
    %v401 = vsel %vm399, %v385, 0
    %v404 = vsel %vm399, %v386, 0
    %v407 = vsel %vm399, %v387, 0
    %v410 = vsel %vm399, %v388, 0
    %v413 = vsel %vm399, %v389, 0
    %v416 = vsel %vm399, %v390, 0
    %v419 = vsel %vm399, %v391, 0
    %v422 = vsel %vm399, %v392, 0
    %424 = vmatprep.subr.bf16.mxu0 0
    %425 = vmatpush1.bf16.msra.mxu0 0
    %426 = vmatprep.subr.bf16.mxu0 0
    %427 = vmatpush1.bf16.msra.mxu0 0
    %428 = vmatprep.subr.bf16.mxu0 0
    %429 = vmatpush1.bf16.msra.mxu0 0
    %430 = vmatprep.subr.bf16.mxu0 0
    %431 = vmatpush1.bf16.msra.mxu0 0
    %432 = vmatprep.subr.bf16.mxu0 0
    %433 = vmatpush1.bf16.msra.mxu0 0
    %434 = vmatprep.subr.bf16.mxu0 0
    %435 = vmatpush1.bf16.msra.mxu0 0
    %436 = vmatprep.subr.bf16.mxu0 0
    %437 = vmatpush1.bf16.msra.mxu0 0
    %438 = vmatprep.subr.bf16.mxu0 0
    %439 = vmatpush1.bf16.msra.mxu0 %v397
    %440 = vmatprep.subr.bf16.mxu0 0
    %441 = vmatpush2.bf16.msra.mxu0 0
    %442 = vmatprep.subr.bf16.mxu0 0
    %443 = vmatpush2.bf16.msra.mxu0 0
    %444 = vmatprep.subr.bf16.mxu0 0
    %445 = vmatpush2.bf16.msra.mxu0 0
    %446 = vmatprep.subr.bf16.mxu0 0
    %447 = vmatpush2.bf16.msra.mxu0 0
    %448 = vmatprep.subr.bf16.mxu0 0
    %449 = vmatpush2.bf16.msra.mxu0 0
    %450 = vmatprep.subr.bf16.mxu0 0
    %451 = vmatpush2.bf16.msra.mxu0 0
    %452 = vmatprep.subr.bf16.mxu0 0
    %453 = vmatpush2.bf16.msra.mxu0 0
    %454 = vmatprep.subr.bf16.mxu0 0
    %455 = vmatpush2.bf16.msra.mxu0 0
    %456 = vmatprep.mubr.bf16.mxu0 0
    %457 = vmatmul.mubr.bf16.gmra.mxu0 %v401
    %v458 = vpop.f32.mrf.mxu0
    %v459 = vadd.f32 %v352, %v458
    %v460 = vpop.f32.mrf.mxu0
    %v461 = vpop.f32.mrf.mxu0
    %v462 = vadd.f32 %v352, %v461
    %v463 = vpop.f32.mrf.mxu0
    %464 = vmatprep.mubr.bf16.mxu0 0
    %465 = vmatmul.mubr.bf16.gmra.mxu0 %v404
    %v466 = vpop.f32.mrf.mxu0
    %v467 = vadd.f32 %v352, %v466
    %v468 = vpop.f32.mrf.mxu0
    %v469 = vpop.f32.mrf.mxu0
    %v470 = vadd.f32 %v352, %v469
    %v471 = vpop.f32.mrf.mxu0
    %472 = vmatprep.mubr.bf16.mxu0 0
    %473 = vmatmul.mubr.bf16.gmra.mxu0 %v407
    %v474 = vpop.f32.mrf.mxu0
    %v475 = vadd.f32 %v352, %v474
    %v476 = vpop.f32.mrf.mxu0
    %v477 = vpop.f32.mrf.mxu0
    %v478 = vadd.f32 %v352, %v477
    %v479 = vpop.f32.mrf.mxu0
    %480 = vmatprep.mubr.bf16.mxu0 0
    %481 = vmatmul.mubr.bf16.gmra.mxu0 %v410
    %v482 = vpop.f32.mrf.mxu0
    %v483 = vadd.f32 %v352, %v482
    %v484 = vpop.f32.mrf.mxu0
    %v485 = vpop.f32.mrf.mxu0
    %v486 = vadd.f32 %v352, %v485
    %v487 = vpop.f32.mrf.mxu0
    %488 = vmatprep.mubr.bf16.mxu0 0
    %489 = vmatmul.mubr.bf16.gmra.mxu0 %v413
    %v490 = vpop.f32.mrf.mxu0
    %v491 = vadd.f32 %v352, %v490
    %v492 = vpop.f32.mrf.mxu0
    %v493 = vpop.f32.mrf.mxu0
    %v494 = vadd.f32 %v352, %v493
    %v495 = vpop.f32.mrf.mxu0
    %496 = vmatprep.mubr.bf16.mxu0 0
    %497 = vmatmul.mubr.bf16.gmra.mxu0 %v416
    %v498 = vpop.f32.mrf.mxu0
    %v499 = vadd.f32 %v352, %v498
    %v500 = vpop.f32.mrf.mxu0
    %v501 = vpop.f32.mrf.mxu0
    %v502 = vadd.f32 %v352, %v501
    %v503 = vpop.f32.mrf.mxu0
    %504 = vmatprep.mubr.bf16.mxu0 0
    %505 = vmatmul.mubr.bf16.gmra.mxu0 %v419
    %v506 = vpop.f32.mrf.mxu0
    %v507 = vadd.f32 %v352, %v506
    %v508 = vpop.f32.mrf.mxu0
    %v509 = vpop.f32.mrf.mxu0
    %v510 = vadd.f32 %v352, %v509
    %v511 = vpop.f32.mrf.mxu0
    %512 = vmatprep.mubr.bf16.mxu0 0
    %513 = vmatmul.mubr.bf16.gmra.mxu0 %v422
    %v514 = vpop.f32.mrf.mxu0
    %v515 = vadd.f32 %v352, %v514
    %v516 = vpop.f32.mrf.mxu0
    %v517 = vpop.f32.mrf.mxu0
    %v518 = vadd.f32 %v352, %v517
    %v519 = vpop.f32.mrf.mxu0
    %520 = vdwg.mxu0
    %v521 = vmax.f32 %v459, 0.0
    %v522 = vmax.f32 %v462, 0.0
    %v523 = vmax.f32 %v467, 0.0
    %v524 = vmax.f32 %v470, 0.0
    %v525 = vmax.f32 %v475, 0.0
    %v526 = vmax.f32 %v478, 0.0
    %v527 = vmax.f32 %v483, 0.0
    %v528 = vmax.f32 %v486, 0.0
    %v529 = vmax.f32 %v491, 0.0
    %v530 = vmax.f32 %v494, 0.0
    %v531 = vmax.f32 %v499, 0.0
    %v532 = vmax.f32 %v502, 0.0
    %v533 = vmax.f32 %v507, 0.0
    %v534 = vmax.f32 %v510, 0.0
    %v535 = vmax.f32 %v515, 0.0
    %v536 = vmax.f32 %v518, 0.0
    %v537 = vld [vmem:[%s3] sm:$0x1]
    %v538 = vld [vmem:[%s3 + $0x1] sm:$0x1]
    %v539 = vlaneseq
    %v540 = vand.u32 %v539, 127
    %v541 = vld [vmem:[%s5] sm:$0xff]
    %v542 = vld [vmem:[%s5 + $0x8] sm:$0xff]
    %v543 = vld [vmem:[%s5 + $0x10] sm:$0xff]
    %v544 = vld [vmem:[%s5 + $0x18] sm:$0xff]
    %v545 = vld [vmem:[%s5 + $0x20] sm:$0xff]
    %v546 = vld [vmem:[%s5 + $0x28] sm:$0xff]
    %v547 = vld [vmem:[%s5 + $0x30] sm:$0xff]
    %v548 = vld [vmem:[%s5 + $0x38] sm:$0xff]
    %v549 = vld [vmem:[%s5 + $0x40] sm:$0xff]
    %v550 = vld [vmem:[%s5 + $0x48] sm:$0xff]
    %v551 = vld [vmem:[%s5 + $0x50] sm:$0xff]
    %v552 = vld [vmem:[%s5 + $0x58] sm:$0xff]
    %v553 = vld [vmem:[%s5 + $0x60] sm:$0xff]
    %v554 = vld [vmem:[%s5 + $0x68] sm:$0xff]
    %v555 = vld [vmem:[%s5 + $0x70] sm:$0xff]
    %v556 = vld [vmem:[%s5 + $0x78] sm:$0xff]
    %557 = vset.pattern.permute.xlu0 0
    %558 = vperm.xlu0 %557, %v541
    %v559 = vpop.permute.xlu0 %558
    %560 = vset.pattern.permute.xlu0 0
    %561 = vperm.xlu0 %560, %v542
    %v562 = vpop.permute.xlu0 %561
    %563 = vset.pattern.permute.xlu0 0
    %564 = vperm.xlu0 %563, %v543
    %v565 = vpop.permute.xlu0 %564
    %566 = vset.pattern.permute.xlu0 0
    %567 = vperm.xlu0 %566, %v544
    %v568 = vpop.permute.xlu0 %567
    %569 = vset.pattern.permute.xlu0 0
    %570 = vperm.xlu0 %569, %v545
    %v571 = vpop.permute.xlu0 %570
    %572 = vset.pattern.permute.xlu0 0
    %573 = vperm.xlu0 %572, %v546
    %v574 = vpop.permute.xlu0 %573
    %575 = vset.pattern.permute.xlu0 0
    %576 = vperm.xlu0 %575, %v547
    %v577 = vpop.permute.xlu0 %576
    %578 = vset.pattern.permute.xlu0 0
    %579 = vperm.xlu0 %578, %v548
    %v580 = vpop.permute.xlu0 %579
    %581 = vset.pattern.permute.xlu0 0
    %582 = vperm.xlu0 %581, %v549
    %v583 = vpop.permute.xlu0 %582
    %584 = vset.pattern.permute.xlu0 0
    %585 = vperm.xlu0 %584, %v550
    %v586 = vpop.permute.xlu0 %585
    %587 = vset.pattern.permute.xlu0 0
    %588 = vperm.xlu0 %587, %v551
    %v589 = vpop.permute.xlu0 %588
    %590 = vset.pattern.permute.xlu0 0
    %591 = vperm.xlu0 %590, %v552
    %v592 = vpop.permute.xlu0 %591
    %593 = vset.pattern.permute.xlu0 0
    %594 = vperm.xlu0 %593, %v553
    %v595 = vpop.permute.xlu0 %594
    %596 = vset.pattern.permute.xlu0 0
    %597 = vperm.xlu0 %596, %v554
    %v598 = vpop.permute.xlu0 %597
    %599 = vset.pattern.permute.xlu0 0
    %600 = vperm.xlu0 %599, %v555
    %v601 = vpop.permute.xlu0 %600
    %602 = vset.pattern.permute.xlu0 0
    %603 = vperm.xlu0 %602, %v556
    %v604 = vpop.permute.xlu0 %603
    %vm605 = vcmp.eq.s32.totalorder %v540, %v559
    %vm606 = vcmp.eq.s32.totalorder %v540, %v562
    %vm607 = vcmp.eq.s32.totalorder %v540, %v565
    %vm608 = vcmp.eq.s32.totalorder %v540, %v568
    %vm609 = vcmp.eq.s32.totalorder %v540, %v571
    %vm610 = vcmp.eq.s32.totalorder %v540, %v574
    %vm611 = vcmp.eq.s32.totalorder %v540, %v577
    %vm612 = vcmp.eq.s32.totalorder %v540, %v580
    %vm613 = vcmp.eq.s32.totalorder %v540, %v583
    %vm614 = vcmp.eq.s32.totalorder %v540, %v586
    %vm615 = vcmp.eq.s32.totalorder %v540, %v589
    %vm616 = vcmp.eq.s32.totalorder %v540, %v592
    %vm617 = vcmp.eq.s32.totalorder %v540, %v595
    %vm618 = vcmp.eq.s32.totalorder %v540, %v598
    %vm619 = vcmp.eq.s32.totalorder %v540, %v601
    %vm620 = vcmp.eq.s32.totalorder %v540, %v604
    %v621 = vsel %vm605, 1, 0
    %v622 = vsel %vm606, 1, 0
    %v623 = vsel %vm607, 1, 0
    %v624 = vsel %vm608, 1, 0
    %v625 = vsel %vm609, 1, 0
    %v626 = vsel %vm610, 1, 0
    %v627 = vsel %vm611, 1, 0
    %v628 = vsel %vm612, 1, 0
    %v629 = vsel %vm613, 1, 0
    %v630 = vsel %vm614, 1, 0
    %v631 = vsel %vm615, 1, 0
    %v632 = vsel %vm616, 1, 0
    %v633 = vsel %vm617, 1, 0
    %v634 = vsel %vm618, 1, 0
    %v635 = vsel %vm619, 1, 0
    %v636 = vsel %vm620, 1, 0
    %v637 = vcvt.s32.f32 %v621
    %v638 = vcvt.s32.f32 %v622
    %v639 = vcvt.s32.f32 %v623
    %v640 = vcvt.s32.f32 %v624
    %v641 = vcvt.s32.f32 %v625
    %v642 = vcvt.s32.f32 %v626
    %v643 = vcvt.s32.f32 %v627
    %v644 = vcvt.s32.f32 %v628
    %v645 = vcvt.s32.f32 %v629
    %v646 = vcvt.s32.f32 %v630
    %v647 = vcvt.s32.f32 %v631
    %v648 = vcvt.s32.f32 %v632
    %v649 = vcvt.s32.f32 %v633
    %v650 = vcvt.s32.f32 %v634
    %v651 = vcvt.s32.f32 %v635
    %v652 = vcvt.s32.f32 %v636
    %v653 = vpack.c.bf16 %v638, %v637
    %v654 = vpack.c.bf16 %v640, %v639
    %v655 = vpack.c.bf16 %v642, %v641
    %v656 = vpack.c.bf16 %v644, %v643
    %v657 = vpack.c.bf16 %v646, %v645
    %v658 = vpack.c.bf16 %v648, %v647
    %v659 = vpack.c.bf16 %v650, %v649
    %v660 = vpack.c.bf16 %v652, %v651
    %v661 = vlaneseq
    %v662 = vshrl.u32 %v661, 7
    %v663 = vadd.s32 %v662, 8
    %v664 = vadd.s32 %v662, 16
    %v665 = vadd.s32 %v662, 24
    %v666 = vadd.s32 %v662, 32
    %v667 = vadd.s32 %v662, 40
    %v668 = vadd.s32 %v662, 48
    %v669 = vadd.s32 %v662, 56
    %v670 = vadd.s32 %v662, 64
    %v671 = vadd.s32 %v662, 72
    %v672 = vadd.s32 %v662, 80
    %v673 = vadd.s32 %v662, 88
    %v674 = vadd.s32 %v662, 96
    %v675 = vadd.s32 %v662, 104
    %v676 = vadd.s32 %v662, 112
    %v677 = vadd.s32 %v662, 120
    %v678 = vlaneseq
    %v679 = vshrl.u32 %v678, 7
    %v680 = vsub.s32 0, %v679
    %v681 = vrot.slane %v538, %v680
    %vm682 = vcmp.eq.s32.totalorder %v662, %v681
    %vm683 = vcmp.eq.s32.totalorder %v663, %v681
    %vm684 = vcmp.eq.s32.totalorder %v664, %v681
    %vm685 = vcmp.eq.s32.totalorder %v665, %v681
    %vm686 = vcmp.eq.s32.totalorder %v666, %v681
    %vm687 = vcmp.eq.s32.totalorder %v667, %v681
    %vm688 = vcmp.eq.s32.totalorder %v668, %v681
    %vm689 = vcmp.eq.s32.totalorder %v669, %v681
    %vm690 = vcmp.eq.s32.totalorder %v670, %v681
    %vm691 = vcmp.eq.s32.totalorder %v671, %v681
    %vm692 = vcmp.eq.s32.totalorder %v672, %v681
    %vm693 = vcmp.eq.s32.totalorder %v673, %v681
    %vm694 = vcmp.eq.s32.totalorder %v674, %v681
    %vm695 = vcmp.eq.s32.totalorder %v675, %v681
    %vm696 = vcmp.eq.s32.totalorder %v676, %v681
    %vm697 = vcmp.eq.s32.totalorder %v677, %v681
    %v698 = vsel %vm682, 1, 0
    %v699 = vsel %vm683, 1, 0
    %v700 = vsel %vm684, 1, 0
    %v701 = vsel %vm685, 1, 0
    %v702 = vsel %vm686, 1, 0
    %v703 = vsel %vm687, 1, 0
    %v704 = vsel %vm688, 1, 0
    %v705 = vsel %vm689, 1, 0
    %v706 = vsel %vm690, 1, 0
    %v707 = vsel %vm691, 1, 0
    %v708 = vsel %vm692, 1, 0
    %v709 = vsel %vm693, 1, 0
    %v710 = vsel %vm694, 1, 0
    %v711 = vsel %vm695, 1, 0
    %v712 = vsel %vm696, 1, 0
    %v713 = vsel %vm697, 1, 0
    %v714 = vcvt.s32.f32 %v698
    %v715 = vcvt.s32.f32 %v699
    %v716 = vcvt.s32.f32 %v700
    %v717 = vcvt.s32.f32 %v701
    %v718 = vcvt.s32.f32 %v702
    %v719 = vcvt.s32.f32 %v703
    %v720 = vcvt.s32.f32 %v704
    %v721 = vcvt.s32.f32 %v705
    %v722 = vcvt.s32.f32 %v706
    %v723 = vcvt.s32.f32 %v707
    %v724 = vcvt.s32.f32 %v708
    %v725 = vcvt.s32.f32 %v709
    %v726 = vcvt.s32.f32 %v710
    %v727 = vcvt.s32.f32 %v711
    %v728 = vcvt.s32.f32 %v712
    %v729 = vcvt.s32.f32 %v713
    %v730 = vpack.c.bf16 %v715, %v714
    %v731 = vpack.c.bf16 %v717, %v716
    %v732 = vpack.c.bf16 %v719, %v718
    %v733 = vpack.c.bf16 %v721, %v720
    %v734 = vpack.c.bf16 %v723, %v722
    %v735 = vpack.c.bf16 %v725, %v724
    %v736 = vpack.c.bf16 %v727, %v726
    %v737 = vpack.c.bf16 %v729, %v728
    %v738 = vld [vmem:[%s4] sm:$0xff]
    %v739 = vld [vmem:[%s4 + $0x8] sm:$0xff]
    %v740 = vld [vmem:[%s4 + $0x10] sm:$0xff]
    %v741 = vld [vmem:[%s4 + $0x18] sm:$0xff]
    %v742 = vld [vmem:[%s4 + $0x20] sm:$0xff]
    %v743 = vld [vmem:[%s4 + $0x28] sm:$0xff]
    %v744 = vld [vmem:[%s4 + $0x30] sm:$0xff]
    %v745 = vld [vmem:[%s4 + $0x38] sm:$0xff]
    %v746 = vld [vmem:[%s4 + $0x40] sm:$0xff]
    %v747 = vld [vmem:[%s4 + $0x48] sm:$0xff]
    %v748 = vld [vmem:[%s4 + $0x50] sm:$0xff]
    %v749 = vld [vmem:[%s4 + $0x58] sm:$0xff]
    %v750 = vld [vmem:[%s4 + $0x60] sm:$0xff]
    %v751 = vld [vmem:[%s4 + $0x68] sm:$0xff]
    %v752 = vld [vmem:[%s4 + $0x70] sm:$0xff]
    %v753 = vld [vmem:[%s4 + $0x78] sm:$0xff]
    %754 = vset.pattern.permute.xlu0 0
    %755 = vperm.xlu0 %754, %v738
    %v756 = vpop.permute.xlu0 %755
    %757 = vset.pattern.permute.xlu0 0
    %758 = vperm.xlu0 %757, %v739
    %v759 = vpop.permute.xlu0 %758
    %760 = vset.pattern.permute.xlu0 0
    %761 = vperm.xlu0 %760, %v740
    %v762 = vpop.permute.xlu0 %761
    %763 = vset.pattern.permute.xlu0 0
    %764 = vperm.xlu0 %763, %v741
    %v765 = vpop.permute.xlu0 %764
    %766 = vset.pattern.permute.xlu0 0
    %767 = vperm.xlu0 %766, %v742
    %v768 = vpop.permute.xlu0 %767
    %769 = vset.pattern.permute.xlu0 0
    %770 = vperm.xlu0 %769, %v743
    %v771 = vpop.permute.xlu0 %770
    %772 = vset.pattern.permute.xlu0 0
    %773 = vperm.xlu0 %772, %v744
    %v774 = vpop.permute.xlu0 %773
    %775 = vset.pattern.permute.xlu0 0
    %776 = vperm.xlu0 %775, %v745
    %v777 = vpop.permute.xlu0 %776
    %778 = vset.pattern.permute.xlu0 0
    %779 = vperm.xlu0 %778, %v746
    %v780 = vpop.permute.xlu0 %779
    %781 = vset.pattern.permute.xlu0 0
    %782 = vperm.xlu0 %781, %v747
    %v783 = vpop.permute.xlu0 %782
    %784 = vset.pattern.permute.xlu0 0
    %785 = vperm.xlu0 %784, %v748
    %v786 = vpop.permute.xlu0 %785
    %787 = vset.pattern.permute.xlu0 0
    %788 = vperm.xlu0 %787, %v749
    %v789 = vpop.permute.xlu0 %788
    %790 = vset.pattern.permute.xlu0 0
    %791 = vperm.xlu0 %790, %v750
    %v792 = vpop.permute.xlu0 %791
    %793 = vset.pattern.permute.xlu0 0
    %794 = vperm.xlu0 %793, %v751
    %v795 = vpop.permute.xlu0 %794
    %796 = vset.pattern.permute.xlu0 0
    %797 = vperm.xlu0 %796, %v752
    %v798 = vpop.permute.xlu0 %797
    %799 = vset.pattern.permute.xlu0 0
    %800 = vperm.xlu0 %799, %v753
    %v801 = vpop.permute.xlu0 %800
    %vm802 = vcmp.eq.s32.totalorder %v540, %v756
    %vm803 = vcmp.eq.s32.totalorder %v540, %v759
    %vm804 = vcmp.eq.s32.totalorder %v540, %v762
    %vm805 = vcmp.eq.s32.totalorder %v540, %v765
    %vm806 = vcmp.eq.s32.totalorder %v540, %v768
    %vm807 = vcmp.eq.s32.totalorder %v540, %v771
    %vm808 = vcmp.eq.s32.totalorder %v540, %v774
    %vm809 = vcmp.eq.s32.totalorder %v540, %v777
    %vm810 = vcmp.eq.s32.totalorder %v540, %v780
    %vm811 = vcmp.eq.s32.totalorder %v540, %v783
    %vm812 = vcmp.eq.s32.totalorder %v540, %v786
    %vm813 = vcmp.eq.s32.totalorder %v540, %v789
    %vm814 = vcmp.eq.s32.totalorder %v540, %v792
    %vm815 = vcmp.eq.s32.totalorder %v540, %v795
    %vm816 = vcmp.eq.s32.totalorder %v540, %v798
    %vm817 = vcmp.eq.s32.totalorder %v540, %v801
    %v818 = vsel %vm802, 1, 0
    %v819 = vsel %vm803, 1, 0
    %v820 = vsel %vm804, 1, 0
    %v821 = vsel %vm805, 1, 0
    %v822 = vsel %vm806, 1, 0
    %v823 = vsel %vm807, 1, 0
    %v824 = vsel %vm808, 1, 0
    %v825 = vsel %vm809, 1, 0
    %v826 = vsel %vm810, 1, 0
    %v827 = vsel %vm811, 1, 0
    %v828 = vsel %vm812, 1, 0
    %v829 = vsel %vm813, 1, 0
    %v830 = vsel %vm814, 1, 0
    %v831 = vsel %vm815, 1, 0
    %v832 = vsel %vm816, 1, 0
    %v833 = vsel %vm817, 1, 0
    %v834 = vcvt.s32.f32 %v818
    %v835 = vcvt.s32.f32 %v819
    %v836 = vcvt.s32.f32 %v820
    %v837 = vcvt.s32.f32 %v821
    %v838 = vcvt.s32.f32 %v822
    %v839 = vcvt.s32.f32 %v823
    %v840 = vcvt.s32.f32 %v824
    %v841 = vcvt.s32.f32 %v825
    %v842 = vcvt.s32.f32 %v826
    %v843 = vcvt.s32.f32 %v827
    %v844 = vcvt.s32.f32 %v828
    %v845 = vcvt.s32.f32 %v829
    %v846 = vcvt.s32.f32 %v830
    %v847 = vcvt.s32.f32 %v831
    %v848 = vcvt.s32.f32 %v832
    %v849 = vcvt.s32.f32 %v833
    %v850 = vpack.c.bf16 %v835, %v834
    %v851 = vpack.c.bf16 %v837, %v836
    %v852 = vpack.c.bf16 %v839, %v838
    %v853 = vpack.c.bf16 %v841, %v840
    %v854 = vpack.c.bf16 %v843, %v842
    %v855 = vpack.c.bf16 %v845, %v844
    %v856 = vpack.c.bf16 %v847, %v846
    %v857 = vpack.c.bf16 %v849, %v848
    %v858 = vlaneseq
    %v859 = vshrl.u32 %v858, 7
    %v860 = vsub.s32 0, %v859
    %v861 = vrot.slane %v537, %v860
    %vm862 = vcmp.eq.s32.totalorder %v662, %v861
    %vm863 = vcmp.eq.s32.totalorder %v663, %v861
    %vm864 = vcmp.eq.s32.totalorder %v664, %v861
    %vm865 = vcmp.eq.s32.totalorder %v665, %v861
    %vm866 = vcmp.eq.s32.totalorder %v666, %v861
    %vm867 = vcmp.eq.s32.totalorder %v667, %v861
    %vm868 = vcmp.eq.s32.totalorder %v668, %v861
    %vm869 = vcmp.eq.s32.totalorder %v669, %v861
    %vm870 = vcmp.eq.s32.totalorder %v670, %v861
    %vm871 = vcmp.eq.s32.totalorder %v671, %v861
    %vm872 = vcmp.eq.s32.totalorder %v672, %v861
    %vm873 = vcmp.eq.s32.totalorder %v673, %v861
    %vm874 = vcmp.eq.s32.totalorder %v674, %v861
    %vm875 = vcmp.eq.s32.totalorder %v675, %v861
    %vm876 = vcmp.eq.s32.totalorder %v676, %v861
    %vm877 = vcmp.eq.s32.totalorder %v677, %v861
    %v878 = vsel %vm862, 1, 0
    %v879 = vsel %vm863, 1, 0
    %v880 = vsel %vm864, 1, 0
    %v881 = vsel %vm865, 1, 0
    %v882 = vsel %vm866, 1, 0
    %v883 = vsel %vm867, 1, 0
    %v884 = vsel %vm868, 1, 0
    %v885 = vsel %vm869, 1, 0
    %v886 = vsel %vm870, 1, 0
    %v887 = vsel %vm871, 1, 0
    %v888 = vsel %vm872, 1, 0
    %v889 = vsel %vm873, 1, 0
    %v890 = vsel %vm874, 1, 0
    %v891 = vsel %vm875, 1, 0
    %v892 = vsel %vm876, 1, 0
    %v893 = vsel %vm877, 1, 0
    %v894 = vcvt.s32.f32 %v878
    %v895 = vcvt.s32.f32 %v879
    %v896 = vcvt.s32.f32 %v880
    %v897 = vcvt.s32.f32 %v881
    %v898 = vcvt.s32.f32 %v882
    %v899 = vcvt.s32.f32 %v883
    %v900 = vcvt.s32.f32 %v884
    %v901 = vcvt.s32.f32 %v885
    %v902 = vcvt.s32.f32 %v886
    %v903 = vcvt.s32.f32 %v887
    %v904 = vcvt.s32.f32 %v888
    %v905 = vcvt.s32.f32 %v889
    %v906 = vcvt.s32.f32 %v890
    %v907 = vcvt.s32.f32 %v891
    %v908 = vcvt.s32.f32 %v892
    %v909 = vcvt.s32.f32 %v893
    %v910 = vpack.c.bf16 %v895, %v894
    %v911 = vpack.c.bf16 %v897, %v896
    %v912 = vpack.c.bf16 %v899, %v898
    %v913 = vpack.c.bf16 %v901, %v900
    %v914 = vpack.c.bf16 %v903, %v902
    %v915 = vpack.c.bf16 %v905, %v904
    %v916 = vpack.c.bf16 %v907, %v906
    %v917 = vpack.c.bf16 %v909, %v908
    %v918 = vunpack.c.l.bf16 %v910
    %v919 = vunpack.c.h.bf16 %v910
    %v920 = vunpack.c.l.bf16 %v911
    %v921 = vunpack.c.h.bf16 %v911
    %v922 = vunpack.c.l.bf16 %v912
    %v923 = vunpack.c.h.bf16 %v912
    %v924 = vunpack.c.l.bf16 %v913
    %v925 = vunpack.c.h.bf16 %v913
    %v926 = vunpack.c.l.bf16 %v914
    %v927 = vunpack.c.h.bf16 %v914
    %v928 = vunpack.c.l.bf16 %v915
    %v929 = vunpack.c.h.bf16 %v915
    %v930 = vunpack.c.l.bf16 %v916
    %v931 = vunpack.c.h.bf16 %v916
    %v932 = vunpack.c.l.bf16 %v917
    %v933 = vunpack.c.h.bf16 %v917
    %934 = vadd.xlane.f32.xlu0 %v918
    %v935 = vpop.xlane.xlu0 %934
    %936 = vadd.xlane.f32.xlu0 %v919
    %v937 = vpop.xlane.xlu0 %936
    %938 = vadd.xlane.f32.xlu0 %v920
    %v939 = vpop.xlane.xlu0 %938
    %940 = vadd.xlane.f32.xlu0 %v921
    %v941 = vpop.xlane.xlu0 %940
    %942 = vadd.xlane.f32.xlu0 %v922
    %v943 = vpop.xlane.xlu0 %942
    %944 = vadd.xlane.f32.xlu0 %v923
    %v945 = vpop.xlane.xlu0 %944
    %946 = vadd.xlane.f32.xlu0 %v924
    %v947 = vpop.xlane.xlu0 %946
    %948 = vadd.xlane.f32.xlu0 %v925
    %v949 = vpop.xlane.xlu0 %948
    %950 = vadd.xlane.f32.xlu0 %v926
    %v951 = vpop.xlane.xlu0 %950
    %952 = vadd.xlane.f32.xlu0 %v927
    %v953 = vpop.xlane.xlu0 %952
    %954 = vadd.xlane.f32.xlu0 %v928
    %v955 = vpop.xlane.xlu0 %954
    %956 = vadd.xlane.f32.xlu0 %v929
    %v957 = vpop.xlane.xlu0 %956
    %958 = vadd.xlane.f32.xlu0 %v930
    %v959 = vpop.xlane.xlu0 %958
    %960 = vadd.xlane.f32.xlu0 %v931
    %v961 = vpop.xlane.xlu0 %960
    %962 = vadd.xlane.f32.xlu0 %v932
    %v963 = vpop.xlane.xlu0 %962
    %964 = vadd.xlane.f32.xlu0 %v933
    %v965 = vpop.xlane.xlu0 %964
    %v966 = vunpack.c.l.bf16 %v730
    %v967 = vunpack.c.h.bf16 %v730
    %v968 = vunpack.c.l.bf16 %v731
    %v969 = vunpack.c.h.bf16 %v731
    %v970 = vunpack.c.l.bf16 %v732
    %v971 = vunpack.c.h.bf16 %v732
    %v972 = vunpack.c.l.bf16 %v733
    %v973 = vunpack.c.h.bf16 %v733
    %v974 = vunpack.c.l.bf16 %v734
    %v975 = vunpack.c.h.bf16 %v734
    %v976 = vunpack.c.l.bf16 %v735
    %v977 = vunpack.c.h.bf16 %v735
    %v978 = vunpack.c.l.bf16 %v736
    %v979 = vunpack.c.h.bf16 %v736
    %v980 = vunpack.c.l.bf16 %v737
    %v981 = vunpack.c.h.bf16 %v737
    %982 = vadd.xlane.f32.xlu0 %v966
    %v983 = vpop.xlane.xlu0 %982
    %984 = vadd.xlane.f32.xlu0 %v967
    %v985 = vpop.xlane.xlu0 %984
    %986 = vadd.xlane.f32.xlu0 %v968
    %v987 = vpop.xlane.xlu0 %986
    %988 = vadd.xlane.f32.xlu0 %v969
    %v989 = vpop.xlane.xlu0 %988
    %990 = vadd.xlane.f32.xlu0 %v970
    %v991 = vpop.xlane.xlu0 %990
    %992 = vadd.xlane.f32.xlu0 %v971
    %v993 = vpop.xlane.xlu0 %992
    %994 = vadd.xlane.f32.xlu0 %v972
    %v995 = vpop.xlane.xlu0 %994
    %996 = vadd.xlane.f32.xlu0 %v973
    %v997 = vpop.xlane.xlu0 %996
    %998 = vadd.xlane.f32.xlu0 %v974
    %v999 = vpop.xlane.xlu0 %998
    %1000 = vadd.xlane.f32.xlu0 %v975
    %v1001 = vpop.xlane.xlu0 %1000
    %1002 = vadd.xlane.f32.xlu0 %v976
    %v1003 = vpop.xlane.xlu0 %1002
    %1004 = vadd.xlane.f32.xlu0 %v977
    %v1005 = vpop.xlane.xlu0 %1004
    %1006 = vadd.xlane.f32.xlu0 %v978
    %v1007 = vpop.xlane.xlu0 %1006
    %1008 = vadd.xlane.f32.xlu0 %v979
    %v1009 = vpop.xlane.xlu0 %1008
    %1010 = vadd.xlane.f32.xlu0 %v980
    %v1011 = vpop.xlane.xlu0 %1010
    %1012 = vadd.xlane.f32.xlu0 %v981
    %v1013 = vpop.xlane.xlu0 %1012
    %v1014 = vld [vmem:[%s2] sm:$0xf]
    %v1015 = vld [vmem:[%s2 + $0x4] sm:$0xf]
    %v1016 = vld [vmem:[%s2 + $0x8] sm:$0xf]
    %v1017 = vld [vmem:[%s2 + $0xc] sm:$0xf]
    %v1018 = vld [vmem:[%s2 + $0x10] sm:$0xf]
    %v1019 = vld [vmem:[%s2 + $0x14] sm:$0xf]
    %v1020 = vld [vmem:[%s2 + $0x18] sm:$0xf]
    %v1021 = vld [vmem:[%s2 + $0x1c] sm:$0xf]
    %v1022 = vld [vmem:[%s2 + $0x20] sm:$0xf]
    %v1023 = vld [vmem:[%s2 + $0x24] sm:$0xf]
    %v1024 = vld [vmem:[%s2 + $0x28] sm:$0xf]
    %v1025 = vld [vmem:[%s2 + $0x2c] sm:$0xf]
    %v1026 = vld [vmem:[%s2 + $0x30] sm:$0xf]
    %v1027 = vld [vmem:[%s2 + $0x34] sm:$0xf]
    %v1028 = vld [vmem:[%s2 + $0x38] sm:$0xf]
    %v1029 = vld [vmem:[%s2 + $0x3c] sm:$0xf]
    %v1030 = vpack.c.bf16 %v316, %v315
    %v1031 = vpack.c.bf16 %v318, %v317
    %v1032 = vpack.c.bf16 %v320, %v319
    %v1033 = vpack.c.bf16 %v322, %v321
    %v1034 = vpack.c.bf16 %v324, %v323
    %v1035 = vpack.c.bf16 %v326, %v325
    %v1036 = vpack.c.bf16 %v328, %v327
    %v1037 = vpack.c.bf16 %v330, %v329
    %v1038 = vpack.c.bf16 %v522, %v521
    %v1039 = vpack.c.bf16 %v524, %v523
    %v1040 = vpack.c.bf16 %v526, %v525
    %v1041 = vpack.c.bf16 %v528, %v527
    %v1042 = vpack.c.bf16 %v530, %v529
    %v1043 = vpack.c.bf16 %v532, %v531
    %v1044 = vpack.c.bf16 %v534, %v533
    %v1045 = vpack.c.bf16 %v536, %v535
    %1046 = vmatprep.subr.bf16.mxu0 0
    %1047 = vmatpush1.bf16.msra.mxu0 %v1037
    %1048 = vmatprep.subr.bf16.mxu0 0
    %1049 = vmatpush1.bf16.msra.mxu0 %v1036
    %1050 = vmatprep.subr.bf16.mxu0 0
    %1051 = vmatpush1.bf16.msra.mxu0 %v1035
    %1052 = vmatprep.subr.bf16.mxu0 0
    %1053 = vmatpush1.bf16.msra.mxu0 %v1034
    %1054 = vmatprep.subr.bf16.mxu0 0
    %1055 = vmatpush1.bf16.msra.mxu0 %v1033
    %1056 = vmatprep.subr.bf16.mxu0 0
    %1057 = vmatpush1.bf16.msra.mxu0 %v1032
    %1058 = vmatprep.subr.bf16.mxu0 0
    %1059 = vmatpush1.bf16.msra.mxu0 %v1031
    %1060 = vmatprep.subr.bf16.mxu0 0
    %1061 = vmatpush1.bf16.msra.mxu0 %v1030
    %1062 = vmatprep.subr.bf16.mxu0 0
    %1063 = vmatpush2.bf16.msra.mxu0 0
    %1064 = vmatprep.subr.bf16.mxu0 0
    %1065 = vmatpush2.bf16.msra.mxu0 0
    %1066 = vmatprep.subr.bf16.mxu0 0
    %1067 = vmatpush2.bf16.msra.mxu0 0
    %1068 = vmatprep.subr.bf16.mxu0 0
    %1069 = vmatpush2.bf16.msra.mxu0 0
    %1070 = vmatprep.subr.bf16.mxu0 0
    %1071 = vmatpush2.bf16.msra.mxu0 0
    %1072 = vmatprep.subr.bf16.mxu0 0
    %1073 = vmatpush2.bf16.msra.mxu0 0
    %1074 = vmatprep.subr.bf16.mxu0 0
    %1075 = vmatpush2.bf16.msra.mxu0 0
    %1076 = vmatprep.subr.bf16.mxu0 0
    %1077 = vmatpush2.bf16.msra.mxu0 0
    %1078 = vmatprep.mubr.bf16.mxu0 0
    %1079 = vmatmul.mubr.bf16.gmra.mxu0 %v653
    %v1080 = vpop.f32.mrf.mxu0
    %v1081 = vadd.f32 0.0, %v1080
    %v1082 = vpop.f32.mrf.mxu0
    %v1083 = vpop.f32.mrf.mxu0
    %v1084 = vadd.f32 0.0, %v1083
    %v1085 = vpop.f32.mrf.mxu0
    %1086 = vmatprep.mubr.bf16.mxu0 0
    %1087 = vmatmul.mubr.bf16.gmra.mxu0 %v654
    %v1088 = vpop.f32.mrf.mxu0
    %v1089 = vadd.f32 0.0, %v1088
    %v1090 = vpop.f32.mrf.mxu0
    %v1091 = vpop.f32.mrf.mxu0
    %v1092 = vadd.f32 0.0, %v1091
    %v1093 = vpop.f32.mrf.mxu0
    %1094 = vmatprep.mubr.bf16.mxu0 0
    %1095 = vmatmul.mubr.bf16.gmra.mxu0 %v655
    %v1096 = vpop.f32.mrf.mxu0
    %v1097 = vadd.f32 0.0, %v1096
    %v1098 = vpop.f32.mrf.mxu0
    %v1099 = vpop.f32.mrf.mxu0
    %v1100 = vadd.f32 0.0, %v1099
    %v1101 = vpop.f32.mrf.mxu0
    %1102 = vmatprep.mubr.bf16.mxu0 0
    %1103 = vmatmul.mubr.bf16.gmra.mxu0 %v656
    %v1104 = vpop.f32.mrf.mxu0
    %v1105 = vadd.f32 0.0, %v1104
    %v1106 = vpop.f32.mrf.mxu0
    %v1107 = vpop.f32.mrf.mxu0
    %v1108 = vadd.f32 0.0, %v1107
    %v1109 = vpop.f32.mrf.mxu0
    %1110 = vmatprep.mubr.bf16.mxu0 0
    %1111 = vmatmul.mubr.bf16.gmra.mxu0 %v657
    %v1112 = vpop.f32.mrf.mxu0
    %v1113 = vadd.f32 0.0, %v1112
    %v1114 = vpop.f32.mrf.mxu0
    %v1115 = vpop.f32.mrf.mxu0
    %v1116 = vadd.f32 0.0, %v1115
    %v1117 = vpop.f32.mrf.mxu0
    %1118 = vmatprep.mubr.bf16.mxu0 0
    %1119 = vmatmul.mubr.bf16.gmra.mxu0 %v658
    %v1120 = vpop.f32.mrf.mxu0
    %v1121 = vadd.f32 0.0, %v1120
    %v1122 = vpop.f32.mrf.mxu0
    %v1123 = vpop.f32.mrf.mxu0
    %v1124 = vadd.f32 0.0, %v1123
    %v1125 = vpop.f32.mrf.mxu0
    %1126 = vmatprep.mubr.bf16.mxu0 0
    %1127 = vmatmul.mubr.bf16.gmra.mxu0 %v659
    %v1128 = vpop.f32.mrf.mxu0
    %v1129 = vadd.f32 0.0, %v1128
    %v1130 = vpop.f32.mrf.mxu0
    %v1131 = vpop.f32.mrf.mxu0
    %v1132 = vadd.f32 0.0, %v1131
    %v1133 = vpop.f32.mrf.mxu0
    %1134 = vmatprep.mubr.bf16.mxu0 0
    %1135 = vmatmul.mubr.bf16.gmra.mxu0 %v660
    %v1136 = vpop.f32.mrf.mxu0
    %v1137 = vadd.f32 0.0, %v1136
    %v1138 = vpop.f32.mrf.mxu0
    %v1139 = vpop.f32.mrf.mxu0
    %v1140 = vadd.f32 0.0, %v1139
    %v1141 = vpop.f32.mrf.mxu0
    %1142 = vdwg.mxu0
    %1143 = vmatprep.subr.bf16.mxu0 0
    %1144 = vmatpush1.bf16.msra.mxu0 %v1045
    %1145 = vmatprep.subr.bf16.mxu0 0
    %1146 = vmatpush1.bf16.msra.mxu0 %v1044
    %1147 = vmatprep.subr.bf16.mxu0 0
    %1148 = vmatpush1.bf16.msra.mxu0 %v1043
    %1149 = vmatprep.subr.bf16.mxu0 0
    %1150 = vmatpush1.bf16.msra.mxu0 %v1042
    %1151 = vmatprep.subr.bf16.mxu0 0
    %1152 = vmatpush1.bf16.msra.mxu0 %v1041
    %1153 = vmatprep.subr.bf16.mxu0 0
    %1154 = vmatpush1.bf16.msra.mxu0 %v1040
    %1155 = vmatprep.subr.bf16.mxu0 0
    %1156 = vmatpush1.bf16.msra.mxu0 %v1039
    %1157 = vmatprep.subr.bf16.mxu0 0
    %1158 = vmatpush1.bf16.msra.mxu0 %v1038
    %1159 = vmatprep.subr.bf16.mxu0 0
    %1160 = vmatpush2.bf16.msra.mxu0 0
    %1161 = vmatprep.subr.bf16.mxu0 0
    %1162 = vmatpush2.bf16.msra.mxu0 0
    %1163 = vmatprep.subr.bf16.mxu0 0
    %1164 = vmatpush2.bf16.msra.mxu0 0
    %1165 = vmatprep.subr.bf16.mxu0 0
    %1166 = vmatpush2.bf16.msra.mxu0 0
    %1167 = vmatprep.subr.bf16.mxu0 0
    %1168 = vmatpush2.bf16.msra.mxu0 0
    %1169 = vmatprep.subr.bf16.mxu0 0
    %1170 = vmatpush2.bf16.msra.mxu0 0
    %1171 = vmatprep.subr.bf16.mxu0 0
    %1172 = vmatpush2.bf16.msra.mxu0 0
    %1173 = vmatprep.subr.bf16.mxu0 0
    %1174 = vmatpush2.bf16.msra.mxu0 0
    %1175 = vmatprep.mubr.bf16.mxu0 0
    %1176 = vmatmul.mubr.bf16.gmra.mxu0 %v850
    %v1177 = vpop.f32.mrf.mxu0
    %v1178 = vadd.f32 0.0, %v1177
    %v1179 = vpop.f32.mrf.mxu0
    %v1180 = vpop.f32.mrf.mxu0
    %v1181 = vadd.f32 0.0, %v1180
    %v1182 = vpop.f32.mrf.mxu0
    %1183 = vmatprep.mubr.bf16.mxu0 0
    %1184 = vmatmul.mubr.bf16.gmra.mxu0 %v851
    %v1185 = vpop.f32.mrf.mxu0
    %v1186 = vadd.f32 0.0, %v1185
    %v1187 = vpop.f32.mrf.mxu0
    %v1188 = vpop.f32.mrf.mxu0
    %v1189 = vadd.f32 0.0, %v1188
    %v1190 = vpop.f32.mrf.mxu0
    %1191 = vmatprep.mubr.bf16.mxu0 0
    %1192 = vmatmul.mubr.bf16.gmra.mxu0 %v852
    %v1193 = vpop.f32.mrf.mxu0
    %v1194 = vadd.f32 0.0, %v1193
    %v1195 = vpop.f32.mrf.mxu0
    %v1196 = vpop.f32.mrf.mxu0
    %v1197 = vadd.f32 0.0, %v1196
    %v1198 = vpop.f32.mrf.mxu0
    %1199 = vmatprep.mubr.bf16.mxu0 0
    %1200 = vmatmul.mubr.bf16.gmra.mxu0 %v853
    %v1201 = vpop.f32.mrf.mxu0
    %v1202 = vadd.f32 0.0, %v1201
    %v1203 = vpop.f32.mrf.mxu0
    %v1204 = vpop.f32.mrf.mxu0
    %v1205 = vadd.f32 0.0, %v1204
    %v1206 = vpop.f32.mrf.mxu0
    %1207 = vmatprep.mubr.bf16.mxu0 0
    %1208 = vmatmul.mubr.bf16.gmra.mxu0 %v854
    %v1209 = vpop.f32.mrf.mxu0
    %v1210 = vadd.f32 0.0, %v1209
    %v1211 = vpop.f32.mrf.mxu0
    %v1212 = vpop.f32.mrf.mxu0
    %v1213 = vadd.f32 0.0, %v1212
    %v1214 = vpop.f32.mrf.mxu0
    %1215 = vmatprep.mubr.bf16.mxu0 0
    %1216 = vmatmul.mubr.bf16.gmra.mxu0 %v855
    %v1217 = vpop.f32.mrf.mxu0
    %v1218 = vadd.f32 0.0, %v1217
    %v1219 = vpop.f32.mrf.mxu0
    %v1220 = vpop.f32.mrf.mxu0
    %v1221 = vadd.f32 0.0, %v1220
    %v1222 = vpop.f32.mrf.mxu0
    %1223 = vmatprep.mubr.bf16.mxu0 0
    %1224 = vmatmul.mubr.bf16.gmra.mxu0 %v856
    %v1225 = vpop.f32.mrf.mxu0
    %v1226 = vadd.f32 0.0, %v1225
    %v1227 = vpop.f32.mrf.mxu0
    %v1228 = vpop.f32.mrf.mxu0
    %v1229 = vadd.f32 0.0, %v1228
    %v1230 = vpop.f32.mrf.mxu0
    %1231 = vmatprep.mubr.bf16.mxu0 0
    %1232 = vmatmul.mubr.bf16.gmra.mxu0 %v857
    %v1233 = vpop.f32.mrf.mxu0
    %v1234 = vadd.f32 0.0, %v1233
    %v1235 = vpop.f32.mrf.mxu0
    %v1236 = vpop.f32.mrf.mxu0
    %v1237 = vadd.f32 0.0, %v1236
    %v1238 = vpop.f32.mrf.mxu0
    %1239 = vdwg.mxu0
    %v1240 = vpack.c.bf16 %v1084, %v1081
    %v1241 = vpack.c.bf16 %v1092, %v1089
    %v1242 = vpack.c.bf16 %v1100, %v1097
    %v1243 = vpack.c.bf16 %v1108, %v1105
    %v1244 = vpack.c.bf16 %v1116, %v1113
    %v1245 = vpack.c.bf16 %v1124, %v1121
    %v1246 = vpack.c.bf16 %v1132, %v1129
    %v1247 = vpack.c.bf16 %v1140, %v1137
    %v1248 = vld [vmem:[%s8] sm:$0xff]
    %v1249 = vld [vmem:[%s8 + $0x8] sm:$0xff]
    %v1250 = vld [vmem:[%s8 + $0x10] sm:$0xff]
    %v1251 = vld [vmem:[%s8 + $0x18] sm:$0xff]
    %v1252 = vld [vmem:[%s8 + $0x20] sm:$0xff]
    %v1253 = vld [vmem:[%s8 + $0x28] sm:$0xff]
    %v1254 = vld [vmem:[%s8 + $0x30] sm:$0xff]
    %v1255 = vld [vmem:[%s8 + $0x38] sm:$0xff]
    %v1256 = vld [vmem:[%s8 + $0x40] sm:$0xff]
    %v1257 = vld [vmem:[%s8 + $0x48] sm:$0xff]
    %v1258 = vld [vmem:[%s8 + $0x50] sm:$0xff]
    %v1259 = vld [vmem:[%s8 + $0x58] sm:$0xff]
    %v1260 = vld [vmem:[%s8 + $0x60] sm:$0xff]
    %v1261 = vld [vmem:[%s8 + $0x68] sm:$0xff]
    %v1262 = vld [vmem:[%s8 + $0x70] sm:$0xff]
    %v1263 = vld [vmem:[%s8 + $0x78] sm:$0xff]
    %v1280 = vunpack.c.l.b16 %v1248
    %v1281 = vunpack.c.h.b16 %v1248
    %v1282 = vunpack.c.l.b16 %v1249
    %v1283 = vunpack.c.h.b16 %v1249
    %v1284 = vunpack.c.l.b16 %v1250
    %v1285 = vunpack.c.h.b16 %v1250
    %v1286 = vunpack.c.l.b16 %v1251
    %v1287 = vunpack.c.h.b16 %v1251
    %v1288 = vunpack.c.l.b16 %v1252
    %v1289 = vunpack.c.h.b16 %v1252
    %v1290 = vunpack.c.l.b16 %v1253
    %v1291 = vunpack.c.h.b16 %v1253
    %v1292 = vunpack.c.l.b16 %v1254
    %v1293 = vunpack.c.h.b16 %v1254
    %v1294 = vunpack.c.l.b16 %v1255
    %v1295 = vunpack.c.h.b16 %v1255
    %v1296 = vunpack.c.l.b16 %v1256
    %v1297 = vunpack.c.h.b16 %v1256
    %v1298 = vunpack.c.l.b16 %v1257
    %v1299 = vunpack.c.h.b16 %v1257
    %v1300 = vunpack.c.l.b16 %v1258
    %v1301 = vunpack.c.h.b16 %v1258
    %v1302 = vunpack.c.l.b16 %v1259
    %v1303 = vunpack.c.h.b16 %v1259
    %v1304 = vunpack.c.l.b16 %v1260
    %v1305 = vunpack.c.h.b16 %v1260
    %v1306 = vunpack.c.l.b16 %v1261
    %v1307 = vunpack.c.h.b16 %v1261
    %v1308 = vunpack.c.l.b16 %v1262
    %v1309 = vunpack.c.h.b16 %v1262
    %v1310 = vunpack.c.l.b16 %v1263
    %v1311 = vunpack.c.h.b16 %v1263
    %v1312 = vpack.c.b16 %v1282, %v1280
    %v1313 = vpack.c.b16 %v1283, %v1281
    %v1314 = vpack.c.b16 %v1286, %v1284
    %v1315 = vpack.c.b16 %v1287, %v1285
    %v1316 = vpack.c.b16 %v1290, %v1288
    %v1317 = vpack.c.b16 %v1291, %v1289
    %v1318 = vpack.c.b16 %v1294, %v1292
    %v1319 = vpack.c.b16 %v1295, %v1293
    %v1320 = vpack.c.b16 %v1298, %v1296
    %v1321 = vpack.c.b16 %v1299, %v1297
    %v1322 = vpack.c.b16 %v1302, %v1300
    %v1323 = vpack.c.b16 %v1303, %v1301
    %v1324 = vpack.c.b16 %v1306, %v1304
    %v1325 = vpack.c.b16 %v1307, %v1305
    %v1326 = vpack.c.b16 %v1310, %v1308
    %v1327 = vpack.c.b16 %v1311, %v1309
    %1344 = vmatprep.subr.bf16.mxu0 %v1327
    %1345 = vmatpush1.bf16.msra.mxu0 %v1326
    %1346 = vmatprep.subr.bf16.mxu0 %v1325
    %1347 = vmatpush1.bf16.msra.mxu0 %v1324
    %1348 = vmatprep.subr.bf16.mxu0 %v1323
    %1349 = vmatpush1.bf16.msra.mxu0 %v1322
    %1350 = vmatprep.subr.bf16.mxu0 %v1321
    %1351 = vmatpush1.bf16.msra.mxu0 %v1320
    %1352 = vmatprep.subr.bf16.mxu0 %v1319
    %1353 = vmatpush1.bf16.msra.mxu0 %v1318
    %1354 = vmatprep.subr.bf16.mxu0 %v1317
    %1355 = vmatpush1.bf16.msra.mxu0 %v1316
    %1356 = vmatprep.subr.bf16.mxu0 %v1315
    %1357 = vmatpush1.bf16.msra.mxu0 %v1314
    %1358 = vmatprep.subr.bf16.mxu0 %v1313
    %1359 = vmatpush1.bf16.msra.mxu0 %v1312
    %1360 = vmatprep.subr.bf16.mxu0 0
    %1361 = vmatpush2.bf16.msra.mxu0 0
    %1362 = vmatprep.subr.bf16.mxu0 0
    %1363 = vmatpush2.bf16.msra.mxu0 0
    %1364 = vmatprep.subr.bf16.mxu0 0
    %1365 = vmatpush2.bf16.msra.mxu0 0
    %1366 = vmatprep.subr.bf16.mxu0 0
    %1367 = vmatpush2.bf16.msra.mxu0 0
    %1368 = vmatprep.subr.bf16.mxu0 0
    %1369 = vmatpush2.bf16.msra.mxu0 0
    %1370 = vmatprep.subr.bf16.mxu0 0
    %1371 = vmatpush2.bf16.msra.mxu0 0
    %1372 = vmatprep.subr.bf16.mxu0 0
    %1373 = vmatpush2.bf16.msra.mxu0 0
    %1374 = vmatprep.subr.bf16.mxu0 0
    %1375 = vmatpush2.bf16.msra.mxu0 0
    %1376 = vmatprep.mubr.bf16.mxu0 0
    %1377 = vmatmul.mubr.bf16.gmra.mxu0 %v1240
    %v1378 = vpop.f32.mrf.mxu0
    %v1379 = vadd.f32 0.0, %v1378
    %v1380 = vpop.f32.mrf.mxu0
    %v1381 = vadd.f32 0.0, %v1380
    %v1382 = vpop.f32.mrf.mxu0
    %v1383 = vadd.f32 0.0, %v1382
    %v1384 = vpop.f32.mrf.mxu0
    %v1385 = vadd.f32 0.0, %v1384
    %1386 = vmatprep.mubr.bf16.mxu0 0
    %1387 = vmatmul.mubr.bf16.gmra.mxu0 %v1241
    %v1388 = vpop.f32.mrf.mxu0
    %v1389 = vadd.f32 0.0, %v1388
    %v1390 = vpop.f32.mrf.mxu0
    %v1391 = vadd.f32 0.0, %v1390
    %v1392 = vpop.f32.mrf.mxu0
    %v1393 = vadd.f32 0.0, %v1392
    %v1394 = vpop.f32.mrf.mxu0
    %v1395 = vadd.f32 0.0, %v1394
    %1396 = vmatprep.mubr.bf16.mxu0 0
    %1397 = vmatmul.mubr.bf16.gmra.mxu0 %v1242
    %v1398 = vpop.f32.mrf.mxu0
    %v1399 = vadd.f32 0.0, %v1398
    %v1400 = vpop.f32.mrf.mxu0
    %v1401 = vadd.f32 0.0, %v1400
    %v1402 = vpop.f32.mrf.mxu0
    %v1403 = vadd.f32 0.0, %v1402
    %v1404 = vpop.f32.mrf.mxu0
    %v1405 = vadd.f32 0.0, %v1404
    %1406 = vmatprep.mubr.bf16.mxu0 0
    %1407 = vmatmul.mubr.bf16.gmra.mxu0 %v1243
    %v1408 = vpop.f32.mrf.mxu0
    %v1409 = vadd.f32 0.0, %v1408
    %v1410 = vpop.f32.mrf.mxu0
    %v1411 = vadd.f32 0.0, %v1410
    %v1412 = vpop.f32.mrf.mxu0
    %v1413 = vadd.f32 0.0, %v1412
    %v1414 = vpop.f32.mrf.mxu0
    %v1415 = vadd.f32 0.0, %v1414
    %1416 = vmatprep.mubr.bf16.mxu0 0
    %1417 = vmatmul.mubr.bf16.gmra.mxu0 %v1244
    %v1418 = vpop.f32.mrf.mxu0
    %v1419 = vadd.f32 0.0, %v1418
    %v1420 = vpop.f32.mrf.mxu0
    %v1421 = vadd.f32 0.0, %v1420
    %v1422 = vpop.f32.mrf.mxu0
    %v1423 = vadd.f32 0.0, %v1422
    %v1424 = vpop.f32.mrf.mxu0
    %v1425 = vadd.f32 0.0, %v1424
    %1426 = vmatprep.mubr.bf16.mxu0 0
    %1427 = vmatmul.mubr.bf16.gmra.mxu0 %v1245
    %v1428 = vpop.f32.mrf.mxu0
    %v1429 = vadd.f32 0.0, %v1428
    %v1430 = vpop.f32.mrf.mxu0
    %v1431 = vadd.f32 0.0, %v1430
    %v1432 = vpop.f32.mrf.mxu0
    %v1433 = vadd.f32 0.0, %v1432
    %v1434 = vpop.f32.mrf.mxu0
    %v1435 = vadd.f32 0.0, %v1434
    %1436 = vmatprep.mubr.bf16.mxu0 0
    %1437 = vmatmul.mubr.bf16.gmra.mxu0 %v1246
    %v1438 = vpop.f32.mrf.mxu0
    %v1439 = vadd.f32 0.0, %v1438
    %v1440 = vpop.f32.mrf.mxu0
    %v1441 = vadd.f32 0.0, %v1440
    %v1442 = vpop.f32.mrf.mxu0
    %v1443 = vadd.f32 0.0, %v1442
    %v1444 = vpop.f32.mrf.mxu0
    %v1445 = vadd.f32 0.0, %v1444
    %1446 = vmatprep.mubr.bf16.mxu0 0
    %1447 = vmatmul.mubr.bf16.gmra.mxu0 %v1247
    %v1448 = vpop.f32.mrf.mxu0
    %v1449 = vadd.f32 0.0, %v1448
    %v1450 = vpop.f32.mrf.mxu0
    %v1451 = vadd.f32 0.0, %v1450
    %v1452 = vpop.f32.mrf.mxu0
    %v1453 = vadd.f32 0.0, %v1452
    %v1454 = vpop.f32.mrf.mxu0
    %v1455 = vadd.f32 0.0, %v1454
    %1456 = vdwg.mxu0
    %v1457 = vld [vmem:[%s9] sm:$0xff]
    %v1474 = vunpack.c.l.b16 %v1014
    %v1475 = vunpack.c.l.b16 %v1015
    %v1476 = vunpack.c.l.b16 %v1016
    %v1477 = vunpack.c.l.b16 %v1017
    %v1478 = vunpack.c.l.b16 %v1018
    %v1479 = vunpack.c.l.b16 %v1019
    %v1480 = vunpack.c.l.b16 %v1020
    %v1481 = vunpack.c.l.b16 %v1021
    %v1482 = vunpack.c.l.b16 %v1022
    %v1483 = vunpack.c.l.b16 %v1023
    %v1484 = vunpack.c.l.b16 %v1024
    %v1485 = vunpack.c.l.b16 %v1025
    %v1486 = vunpack.c.l.b16 %v1026
    %v1487 = vunpack.c.l.b16 %v1027
    %v1488 = vunpack.c.l.b16 %v1028
    %v1489 = vunpack.c.l.b16 %v1029
    %v1490 = vpack.c.b16 %v1475, %v1474
    %v1491 = vpack.c.b16 %v1477, %v1476
    %v1492 = vpack.c.b16 %v1479, %v1478
    %v1493 = vpack.c.b16 %v1481, %v1480
    %v1494 = vpack.c.b16 %v1483, %v1482
    %v1495 = vpack.c.b16 %v1485, %v1484
    %v1496 = vpack.c.b16 %v1487, %v1486
    %v1497 = vpack.c.b16 %v1489, %v1488
    %v1499 = vunpack.c.l.b16 %v1457
    %v1500 = vunpack.c.h.b16 %v1457
    %v1501 = vpack.c.b16 %v1499, %v1499
    %v1502 = vpack.c.b16 %v1500, %v1500
    %vm1503 = vcmask 64512
    %v1505 = vsel %vm1503, %v1490, 0
    %v1508 = vsel %vm1503, %v1491, 0
    %v1511 = vsel %vm1503, %v1492, 0
    %v1514 = vsel %vm1503, %v1493, 0
    %v1517 = vsel %vm1503, %v1494, 0
    %v1520 = vsel %vm1503, %v1495, 0
    %v1523 = vsel %vm1503, %v1496, 0
    %v1526 = vsel %vm1503, %v1497, 0
    %v1529 = vsel %vm214, %v1501, 0
    %v1532 = vsel %vm214, %v1502, 0
    %1534 = vmatprep.subr.bf16.mxu0 0
    %1535 = vmatpush1.bf16.msra.mxu0 0
    %1536 = vmatprep.subr.bf16.mxu0 0
    %1537 = vmatpush1.bf16.msra.mxu0 0
    %1538 = vmatprep.subr.bf16.mxu0 0
    %1539 = vmatpush1.bf16.msra.mxu0 0
    %1540 = vmatprep.subr.bf16.mxu0 0
    %1541 = vmatpush1.bf16.msra.mxu0 0
    %1542 = vmatprep.subr.bf16.mxu0 0
    %1543 = vmatpush1.bf16.msra.mxu0 0
    %1544 = vmatprep.subr.bf16.mxu0 0
    %1545 = vmatpush1.bf16.msra.mxu0 0
    %1546 = vmatprep.subr.bf16.mxu0 0
    %1547 = vmatpush1.bf16.msra.mxu0 0
    %1548 = vmatprep.subr.bf16.mxu0 %v1532
    %1549 = vmatpush1.bf16.msra.mxu0 %v1529
    %1550 = vmatprep.subr.bf16.mxu0 0
    %1551 = vmatpush2.bf16.msra.mxu0 0
    %1552 = vmatprep.subr.bf16.mxu0 0
    %1553 = vmatpush2.bf16.msra.mxu0 0
    %1554 = vmatprep.subr.bf16.mxu0 0
    %1555 = vmatpush2.bf16.msra.mxu0 0
    %1556 = vmatprep.subr.bf16.mxu0 0
    %1557 = vmatpush2.bf16.msra.mxu0 0
    %1558 = vmatprep.subr.bf16.mxu0 0
    %1559 = vmatpush2.bf16.msra.mxu0 0
    %1560 = vmatprep.subr.bf16.mxu0 0
    %1561 = vmatpush2.bf16.msra.mxu0 0
    %1562 = vmatprep.subr.bf16.mxu0 0
    %1563 = vmatpush2.bf16.msra.mxu0 0
    %1564 = vmatprep.subr.bf16.mxu0 0
    %1565 = vmatpush2.bf16.msra.mxu0 0
    %1566 = vmatprep.mubr.bf16.mxu0 0
    %1567 = vmatmul.mubr.bf16.gmra.mxu0 %v1505
    %v1568 = vpop.f32.mrf.mxu0
    %v1569 = vadd.f32 0.0, %v1568
    %v1570 = vpop.f32.mrf.mxu0
    %v1571 = vadd.f32 0.0, %v1570
    %v1572 = vpop.f32.mrf.mxu0
    %v1573 = vadd.f32 0.0, %v1572
    %v1574 = vpop.f32.mrf.mxu0
    %v1575 = vadd.f32 0.0, %v1574
    %1576 = vmatprep.mubr.bf16.mxu0 0
    %1577 = vmatmul.mubr.bf16.gmra.mxu0 %v1508
    %v1578 = vpop.f32.mrf.mxu0
    %v1579 = vadd.f32 0.0, %v1578
    %v1580 = vpop.f32.mrf.mxu0
    %v1581 = vadd.f32 0.0, %v1580
    %v1582 = vpop.f32.mrf.mxu0
    %v1583 = vadd.f32 0.0, %v1582
    %v1584 = vpop.f32.mrf.mxu0
    %v1585 = vadd.f32 0.0, %v1584
    %1586 = vmatprep.mubr.bf16.mxu0 0
    %1587 = vmatmul.mubr.bf16.gmra.mxu0 %v1511
    %v1588 = vpop.f32.mrf.mxu0
    %v1589 = vadd.f32 0.0, %v1588
    %v1590 = vpop.f32.mrf.mxu0
    %v1591 = vadd.f32 0.0, %v1590
    %v1592 = vpop.f32.mrf.mxu0
    %v1593 = vadd.f32 0.0, %v1592
    %v1594 = vpop.f32.mrf.mxu0
    %v1595 = vadd.f32 0.0, %v1594
    %1596 = vmatprep.mubr.bf16.mxu0 0
    %1597 = vmatmul.mubr.bf16.gmra.mxu0 %v1514
    %v1598 = vpop.f32.mrf.mxu0
    %v1599 = vadd.f32 0.0, %v1598
    %v1600 = vpop.f32.mrf.mxu0
    %v1601 = vadd.f32 0.0, %v1600
    %v1602 = vpop.f32.mrf.mxu0
    %v1603 = vadd.f32 0.0, %v1602
    %v1604 = vpop.f32.mrf.mxu0
    %v1605 = vadd.f32 0.0, %v1604
    %1606 = vmatprep.mubr.bf16.mxu0 0
    %1607 = vmatmul.mubr.bf16.gmra.mxu0 %v1517
    %v1608 = vpop.f32.mrf.mxu0
    %v1609 = vadd.f32 0.0, %v1608
    %v1610 = vpop.f32.mrf.mxu0
    %v1611 = vadd.f32 0.0, %v1610
    %v1612 = vpop.f32.mrf.mxu0
    %v1613 = vadd.f32 0.0, %v1612
    %v1614 = vpop.f32.mrf.mxu0
    %v1615 = vadd.f32 0.0, %v1614
    %1616 = vmatprep.mubr.bf16.mxu0 0
    %1617 = vmatmul.mubr.bf16.gmra.mxu0 %v1520
    %v1618 = vpop.f32.mrf.mxu0
    %v1619 = vadd.f32 0.0, %v1618
    %v1620 = vpop.f32.mrf.mxu0
    %v1621 = vadd.f32 0.0, %v1620
    %v1622 = vpop.f32.mrf.mxu0
    %v1623 = vadd.f32 0.0, %v1622
    %v1624 = vpop.f32.mrf.mxu0
    %v1625 = vadd.f32 0.0, %v1624
    %1626 = vmatprep.mubr.bf16.mxu0 0
    %1627 = vmatmul.mubr.bf16.gmra.mxu0 %v1523
    %v1628 = vpop.f32.mrf.mxu0
    %v1629 = vadd.f32 0.0, %v1628
    %v1630 = vpop.f32.mrf.mxu0
    %v1631 = vadd.f32 0.0, %v1630
    %v1632 = vpop.f32.mrf.mxu0
    %v1633 = vadd.f32 0.0, %v1632
    %v1634 = vpop.f32.mrf.mxu0
    %v1635 = vadd.f32 0.0, %v1634
    %1636 = vmatprep.mubr.bf16.mxu0 0
    %1637 = vmatmul.mubr.bf16.gmra.mxu0 %v1526
    %v1638 = vpop.f32.mrf.mxu0
    %v1639 = vadd.f32 0.0, %v1638
    %v1640 = vpop.f32.mrf.mxu0
    %v1641 = vadd.f32 0.0, %v1640
    %v1642 = vpop.f32.mrf.mxu0
    %v1643 = vadd.f32 0.0, %v1642
    %v1644 = vpop.f32.mrf.mxu0
    %v1645 = vadd.f32 0.0, %v1644
    %1646 = vdwg.mxu0
    %v1647 = vadd.f32 %v1379, %v1569
    %v1648 = vadd.f32 %v1383, %v1573
    %v1649 = vadd.f32 %v1389, %v1579
    %v1650 = vadd.f32 %v1393, %v1583
    %v1651 = vadd.f32 %v1399, %v1589
    %v1652 = vadd.f32 %v1403, %v1593
    %v1653 = vadd.f32 %v1409, %v1599
    %v1654 = vadd.f32 %v1413, %v1603
    %v1655 = vadd.f32 %v1419, %v1609
    %v1656 = vadd.f32 %v1423, %v1613
    %v1657 = vadd.f32 %v1429, %v1619
    %v1658 = vadd.f32 %v1433, %v1623
    %v1659 = vadd.f32 %v1439, %v1629
    %v1660 = vadd.f32 %v1443, %v1633
    %v1661 = vadd.f32 %v1449, %v1639
    %v1662 = vadd.f32 %v1453, %v1643
    %v1663 = vpack.c.bf16 %v1181, %v1178
    %v1664 = vpack.c.bf16 %v1189, %v1186
    %v1665 = vpack.c.bf16 %v1197, %v1194
    %v1666 = vpack.c.bf16 %v1205, %v1202
    %v1667 = vpack.c.bf16 %v1213, %v1210
    %v1668 = vpack.c.bf16 %v1221, %v1218
    %v1669 = vpack.c.bf16 %v1229, %v1226
    %v1670 = vpack.c.bf16 %v1237, %v1234
    %v1687 = vunpack.c.l.b16 %v53
    %v1688 = vunpack.c.l.b16 %v54
    %v1689 = vunpack.c.l.b16 %v55
    %v1690 = vunpack.c.l.b16 %v56
    %v1691 = vunpack.c.l.b16 %v57
    %v1692 = vunpack.c.l.b16 %v58
    %v1693 = vunpack.c.l.b16 %v59
    %v1694 = vunpack.c.l.b16 %v60
    %v1695 = vunpack.c.l.b16 %v61
    %v1696 = vunpack.c.l.b16 %v62
    %v1697 = vunpack.c.l.b16 %v63
    %v1698 = vunpack.c.l.b16 %v64
    %v1699 = vunpack.c.l.b16 %v65
    %v1700 = vunpack.c.l.b16 %v66
    %v1701 = vunpack.c.l.b16 %v67
    %v1702 = vunpack.c.l.b16 %v68
    %v1703 = vpack.c.b16 %v1688, %v1687
    %v1704 = vpack.c.b16 %v1690, %v1689
    %v1705 = vpack.c.b16 %v1692, %v1691
    %v1706 = vpack.c.b16 %v1694, %v1693
    %v1707 = vpack.c.b16 %v1696, %v1695
    %v1708 = vpack.c.b16 %v1698, %v1697
    %v1709 = vpack.c.b16 %v1700, %v1699
    %v1710 = vpack.c.b16 %v1702, %v1701
    %1719 = vmatprep.subr.bf16.mxu0 0
    %1720 = vmatpush1.bf16.msra.mxu0 %v1710
    %1721 = vmatprep.subr.bf16.mxu0 0
    %1722 = vmatpush1.bf16.msra.mxu0 %v1709
    %1723 = vmatprep.subr.bf16.mxu0 0
    %1724 = vmatpush1.bf16.msra.mxu0 %v1708
    %1725 = vmatprep.subr.bf16.mxu0 0
    %1726 = vmatpush1.bf16.msra.mxu0 %v1707
    %1727 = vmatprep.subr.bf16.mxu0 0
    %1728 = vmatpush1.bf16.msra.mxu0 %v1706
    %1729 = vmatprep.subr.bf16.mxu0 0
    %1730 = vmatpush1.bf16.msra.mxu0 %v1705
    %1731 = vmatprep.subr.bf16.mxu0 0
    %1732 = vmatpush1.bf16.msra.mxu0 %v1704
    %1733 = vmatprep.subr.bf16.mxu0 0
    %1734 = vmatpush1.bf16.msra.mxu0 %v1703
    %1735 = vmatprep.subr.bf16.mxu0 0
    %1736 = vmatpush2.bf16.msra.mxu0 0
    %1737 = vmatprep.subr.bf16.mxu0 0
    %1738 = vmatpush2.bf16.msra.mxu0 0
    %1739 = vmatprep.subr.bf16.mxu0 0
    %1740 = vmatpush2.bf16.msra.mxu0 0
    %1741 = vmatprep.subr.bf16.mxu0 0
    %1742 = vmatpush2.bf16.msra.mxu0 0
    %1743 = vmatprep.subr.bf16.mxu0 0
    %1744 = vmatpush2.bf16.msra.mxu0 0
    %1745 = vmatprep.subr.bf16.mxu0 0
    %1746 = vmatpush2.bf16.msra.mxu0 0
    %1747 = vmatprep.subr.bf16.mxu0 0
    %1748 = vmatpush2.bf16.msra.mxu0 0
    %1749 = vmatprep.subr.bf16.mxu0 0
    %1750 = vmatpush2.bf16.msra.mxu0 0
    %1751 = vmatprep.mubr.bf16.mxu0 0
    %1752 = vmatmul.mubr.bf16.gmra.mxu0 %v1663
    %v1753 = vpop.f32.mrf.mxu0
    %v1754 = vadd.f32 0.0, %v1753
    %v1755 = vpop.f32.mrf.mxu0
    %v1756 = vpop.f32.mrf.mxu0
    %v1757 = vadd.f32 0.0, %v1756
    %v1758 = vpop.f32.mrf.mxu0
    %1759 = vmatprep.mubr.bf16.mxu0 0
    %1760 = vmatmul.mubr.bf16.gmra.mxu0 %v1664
    %v1761 = vpop.f32.mrf.mxu0
    %v1762 = vadd.f32 0.0, %v1761
    %v1763 = vpop.f32.mrf.mxu0
    %v1764 = vpop.f32.mrf.mxu0
    %v1765 = vadd.f32 0.0, %v1764
    %v1766 = vpop.f32.mrf.mxu0
    %1767 = vmatprep.mubr.bf16.mxu0 0
    %1768 = vmatmul.mubr.bf16.gmra.mxu0 %v1665
    %v1769 = vpop.f32.mrf.mxu0
    %v1770 = vadd.f32 0.0, %v1769
    %v1771 = vpop.f32.mrf.mxu0
    %v1772 = vpop.f32.mrf.mxu0
    %v1773 = vadd.f32 0.0, %v1772
    %v1774 = vpop.f32.mrf.mxu0
    %1775 = vmatprep.mubr.bf16.mxu0 0
    %1776 = vmatmul.mubr.bf16.gmra.mxu0 %v1666
    %v1777 = vpop.f32.mrf.mxu0
    %v1778 = vadd.f32 0.0, %v1777
    %v1779 = vpop.f32.mrf.mxu0
    %v1780 = vpop.f32.mrf.mxu0
    %v1781 = vadd.f32 0.0, %v1780
    %v1782 = vpop.f32.mrf.mxu0
    %1783 = vmatprep.mubr.bf16.mxu0 0
    %1784 = vmatmul.mubr.bf16.gmra.mxu0 %v1667
    %v1785 = vpop.f32.mrf.mxu0
    %v1786 = vadd.f32 0.0, %v1785
    %v1787 = vpop.f32.mrf.mxu0
    %v1788 = vpop.f32.mrf.mxu0
    %v1789 = vadd.f32 0.0, %v1788
    %v1790 = vpop.f32.mrf.mxu0
    %1791 = vmatprep.mubr.bf16.mxu0 0
    %1792 = vmatmul.mubr.bf16.gmra.mxu0 %v1668
    %v1793 = vpop.f32.mrf.mxu0
    %v1794 = vadd.f32 0.0, %v1793
    %v1795 = vpop.f32.mrf.mxu0
    %v1796 = vpop.f32.mrf.mxu0
    %v1797 = vadd.f32 0.0, %v1796
    %v1798 = vpop.f32.mrf.mxu0
    %1799 = vmatprep.mubr.bf16.mxu0 0
    %1800 = vmatmul.mubr.bf16.gmra.mxu0 %v1669
    %v1801 = vpop.f32.mrf.mxu0
    %v1802 = vadd.f32 0.0, %v1801
    %v1803 = vpop.f32.mrf.mxu0
    %v1804 = vpop.f32.mrf.mxu0
    %v1805 = vadd.f32 0.0, %v1804
    %v1806 = vpop.f32.mrf.mxu0
    %1807 = vmatprep.mubr.bf16.mxu0 0
    %1808 = vmatmul.mubr.bf16.gmra.mxu0 %v1670
    %v1809 = vpop.f32.mrf.mxu0
    %v1810 = vadd.f32 0.0, %v1809
    %v1811 = vpop.f32.mrf.mxu0
    %v1812 = vpop.f32.mrf.mxu0
    %v1813 = vadd.f32 0.0, %v1812
    %v1814 = vpop.f32.mrf.mxu0
    %1815 = vdwg.mxu0
    %v1816 = vadd.f32 %v1647, %v1754
    %v1817 = vadd.f32 %v1648, %v1757
    %v1818 = vadd.f32 %v1649, %v1762
    %v1819 = vadd.f32 %v1650, %v1765
    %v1820 = vadd.f32 %v1651, %v1770
    %v1821 = vadd.f32 %v1652, %v1773
    %v1822 = vadd.f32 %v1653, %v1778
    %v1823 = vadd.f32 %v1654, %v1781
    %v1824 = vadd.f32 %v1655, %v1786
    %v1825 = vadd.f32 %v1656, %v1789
    %v1826 = vadd.f32 %v1657, %v1794
    %v1827 = vadd.f32 %v1658, %v1797
    %v1828 = vadd.f32 %v1659, %v1802
    %v1829 = vadd.f32 %v1660, %v1805
    %v1830 = vadd.f32 %v1661, %v1810
    %v1831 = vadd.f32 %v1662, %v1813
    %v1832 = vlaneseq
    %v1833 = vshrl.u32 %v1832, 7
    %v1834 = vsub.s32 0, %v1833
    %v1835 = vrot.slane %v48, %v1834
    %v1836 = vadd.f32 %v1816, %v1835
    %v1837 = vadd.f32 %v1817, %v1835
    %v1838 = vadd.f32 %v1818, %v1835
    %v1839 = vadd.f32 %v1819, %v1835
    %v1840 = vadd.f32 %v1820, %v1835
    %v1841 = vadd.f32 %v1821, %v1835
    %v1842 = vadd.f32 %v1822, %v1835
    %v1843 = vadd.f32 %v1823, %v1835
    %v1844 = vadd.f32 %v1824, %v1835
    %v1845 = vadd.f32 %v1825, %v1835
    %v1846 = vadd.f32 %v1826, %v1835
    %v1847 = vadd.f32 %v1827, %v1835
    %v1848 = vadd.f32 %v1828, %v1835
    %v1849 = vadd.f32 %v1829, %v1835
    %v1850 = vadd.f32 %v1830, %v1835
    %v1851 = vadd.f32 %v1831, %v1835
    %v1852 = vmax.f32 %v1836, 0.0
    %v1853 = vmax.f32 %v1837, 0.0
    %v1854 = vmax.f32 %v1838, 0.0
    %v1855 = vmax.f32 %v1839, 0.0
    %v1856 = vmax.f32 %v1840, 0.0
    %v1857 = vmax.f32 %v1841, 0.0
    %v1858 = vmax.f32 %v1842, 0.0
    %v1859 = vmax.f32 %v1843, 0.0
    %v1860 = vmax.f32 %v1844, 0.0
    %v1861 = vmax.f32 %v1845, 0.0
    %v1862 = vmax.f32 %v1846, 0.0
    %v1863 = vmax.f32 %v1847, 0.0
    %v1864 = vmax.f32 %v1848, 0.0
    %v1865 = vmax.f32 %v1849, 0.0
    %v1866 = vmax.f32 %v1850, 0.0
    %v1867 = vmax.f32 %v1851, 0.0
    %v1868 = vpack.c.bf16 %v1853, %v1852
    %v1869 = vpack.c.bf16 %v1855, %v1854
    %v1870 = vpack.c.bf16 %v1857, %v1856
    %v1871 = vpack.c.bf16 %v1859, %v1858
    %v1872 = vpack.c.bf16 %v1861, %v1860
    %v1873 = vpack.c.bf16 %v1863, %v1862
    %v1874 = vpack.c.bf16 %v1865, %v1864
    %v1875 = vpack.c.bf16 %v1867, %v1866
    %1876 = vmatprep.subr.bf16.mxu0 0
    %1877 = vmatpush1.bf16.msra.mxu0 %v1875
    %1878 = vmatprep.subr.bf16.mxu0 0
    %1879 = vmatpush1.bf16.msra.mxu0 %v1874
    %1880 = vmatprep.subr.bf16.mxu0 0
    %1881 = vmatpush1.bf16.msra.mxu0 %v1873
    %1882 = vmatprep.subr.bf16.mxu0 0
    %1883 = vmatpush1.bf16.msra.mxu0 %v1872
    %1884 = vmatprep.subr.bf16.mxu0 0
    %1885 = vmatpush1.bf16.msra.mxu0 %v1871
    %1886 = vmatprep.subr.bf16.mxu0 0
    %1887 = vmatpush1.bf16.msra.mxu0 %v1870
    %1888 = vmatprep.subr.bf16.mxu0 0
    %1889 = vmatpush1.bf16.msra.mxu0 %v1869
    %1890 = vmatprep.subr.bf16.mxu0 0
    %1891 = vmatpush1.bf16.msra.mxu0 %v1868
    %1892 = vmatprep.subr.bf16.mxu0 0
    %1893 = vmatpush2.bf16.msra.mxu0 0
    %1894 = vmatprep.subr.bf16.mxu0 0
    %1895 = vmatpush2.bf16.msra.mxu0 0
    %1896 = vmatprep.subr.bf16.mxu0 0
    %1897 = vmatpush2.bf16.msra.mxu0 0
    %1898 = vmatprep.subr.bf16.mxu0 0
    %1899 = vmatpush2.bf16.msra.mxu0 0
    %1900 = vmatprep.subr.bf16.mxu0 0
    %1901 = vmatpush2.bf16.msra.mxu0 0
    %1902 = vmatprep.subr.bf16.mxu0 0
    %1903 = vmatpush2.bf16.msra.mxu0 0
    %1904 = vmatprep.subr.bf16.mxu0 0
    %1905 = vmatpush2.bf16.msra.mxu0 0
    %1906 = vmatprep.subr.bf16.mxu0 0
    %1907 = vmatpush2.bf16.msra.mxu0 0
    %1908 = vmatprep.mubr.bf16.mxu0 0
    %1909 = vmatmul.mubr.bf16.gmra.mxu0 %v910
    %v1910 = vpop.f32.mrf.mxu0
    %v1911 = vadd.f32 0.0, %v1910
    %v1912 = vpop.f32.mrf.mxu0
    %v1913 = vpop.f32.mrf.mxu0
    %v1914 = vadd.f32 0.0, %v1913
    %v1915 = vpop.f32.mrf.mxu0
    %1916 = vmatprep.mubr.bf16.mxu0 0
    %1917 = vmatmul.mubr.bf16.gmra.mxu0 %v911
    %v1918 = vpop.f32.mrf.mxu0
    %v1919 = vadd.f32 0.0, %v1918
    %v1920 = vpop.f32.mrf.mxu0
    %v1921 = vpop.f32.mrf.mxu0
    %v1922 = vadd.f32 0.0, %v1921
    %v1923 = vpop.f32.mrf.mxu0
    %1924 = vmatprep.mubr.bf16.mxu0 0
    %1925 = vmatmul.mubr.bf16.gmra.mxu0 %v912
    %v1926 = vpop.f32.mrf.mxu0
    %v1927 = vadd.f32 0.0, %v1926
    %v1928 = vpop.f32.mrf.mxu0
    %v1929 = vpop.f32.mrf.mxu0
    %v1930 = vadd.f32 0.0, %v1929
    %v1931 = vpop.f32.mrf.mxu0
    %1932 = vmatprep.mubr.bf16.mxu0 0
    %1933 = vmatmul.mubr.bf16.gmra.mxu0 %v913
    %v1934 = vpop.f32.mrf.mxu0
    %v1935 = vadd.f32 0.0, %v1934
    %v1936 = vpop.f32.mrf.mxu0
    %v1937 = vpop.f32.mrf.mxu0
    %v1938 = vadd.f32 0.0, %v1937
    %v1939 = vpop.f32.mrf.mxu0
    %1940 = vmatprep.mubr.bf16.mxu0 0
    %1941 = vmatmul.mubr.bf16.gmra.mxu0 %v914
    %v1942 = vpop.f32.mrf.mxu0
    %v1943 = vadd.f32 0.0, %v1942
    %v1944 = vpop.f32.mrf.mxu0
    %v1945 = vpop.f32.mrf.mxu0
    %v1946 = vadd.f32 0.0, %v1945
    %v1947 = vpop.f32.mrf.mxu0
    %1948 = vmatprep.mubr.bf16.mxu0 0
    %1949 = vmatmul.mubr.bf16.gmra.mxu0 %v915
    %v1950 = vpop.f32.mrf.mxu0
    %v1951 = vadd.f32 0.0, %v1950
    %v1952 = vpop.f32.mrf.mxu0
    %v1953 = vpop.f32.mrf.mxu0
    %v1954 = vadd.f32 0.0, %v1953
    %v1955 = vpop.f32.mrf.mxu0
    %1956 = vmatprep.mubr.bf16.mxu0 0
    %1957 = vmatmul.mubr.bf16.gmra.mxu0 %v916
    %v1958 = vpop.f32.mrf.mxu0
    %v1959 = vadd.f32 0.0, %v1958
    %v1960 = vpop.f32.mrf.mxu0
    %v1961 = vpop.f32.mrf.mxu0
    %v1962 = vadd.f32 0.0, %v1961
    %v1963 = vpop.f32.mrf.mxu0
    %1964 = vmatprep.mubr.bf16.mxu0 0
    %1965 = vmatmul.mubr.bf16.gmra.mxu0 %v917
    %v1966 = vpop.f32.mrf.mxu0
    %v1967 = vadd.f32 0.0, %v1966
    %v1968 = vpop.f32.mrf.mxu0
    %v1969 = vpop.f32.mrf.mxu0
    %v1970 = vadd.f32 0.0, %v1969
    %v1971 = vpop.f32.mrf.mxu0
    %1972 = vdwg.mxu0
    %v1973 = vpack.c.bf16 %v1914, %v1911
    %v1974 = vpack.c.bf16 %v1922, %v1919
    %v1975 = vpack.c.bf16 %v1930, %v1927
    %v1976 = vpack.c.bf16 %v1938, %v1935
    %v1977 = vpack.c.bf16 %v1946, %v1943
    %v1978 = vpack.c.bf16 %v1954, %v1951
    %v1979 = vpack.c.bf16 %v1962, %v1959
    %v1980 = vpack.c.bf16 %v1970, %v1967
    %v1997 = vunpack.c.l.b16 %v85
    %v1998 = vunpack.c.l.b16 %v86
    %v1999 = vunpack.c.l.b16 %v87
    %v2000 = vunpack.c.l.b16 %v88
    %v2001 = vunpack.c.l.b16 %v89
    %v2002 = vunpack.c.l.b16 %v90
    %v2003 = vunpack.c.l.b16 %v91
    %v2004 = vunpack.c.l.b16 %v92
    %v2005 = vunpack.c.l.b16 %v93
    %v2006 = vunpack.c.l.b16 %v94
    %v2007 = vunpack.c.l.b16 %v95
    %v2008 = vunpack.c.l.b16 %v96
    %v2009 = vunpack.c.l.b16 %v97
    %v2010 = vunpack.c.l.b16 %v98
    %v2011 = vunpack.c.l.b16 %v99
    %v2012 = vunpack.c.l.b16 %v100
    %v2013 = vpack.c.b16 %v1998, %v1997
    %v2014 = vpack.c.b16 %v2000, %v1999
    %v2015 = vpack.c.b16 %v2002, %v2001
    %v2016 = vpack.c.b16 %v2004, %v2003
    %v2017 = vpack.c.b16 %v2006, %v2005
    %v2018 = vpack.c.b16 %v2008, %v2007
    %v2019 = vpack.c.b16 %v2010, %v2009
    %v2020 = vpack.c.b16 %v2012, %v2011
    %2029 = vmatprep.subr.bf16.mxu0 0
    %2030 = vmatpush1.bf16.msra.mxu0 %v2020
    %2031 = vmatprep.subr.bf16.mxu0 0
    %2032 = vmatpush1.bf16.msra.mxu0 %v2019
    %2033 = vmatprep.subr.bf16.mxu0 0
    %2034 = vmatpush1.bf16.msra.mxu0 %v2018
    %2035 = vmatprep.subr.bf16.mxu0 0
    %2036 = vmatpush1.bf16.msra.mxu0 %v2017
    %2037 = vmatprep.subr.bf16.mxu0 0
    %2038 = vmatpush1.bf16.msra.mxu0 %v2016
    %2039 = vmatprep.subr.bf16.mxu0 0
    %2040 = vmatpush1.bf16.msra.mxu0 %v2015
    %2041 = vmatprep.subr.bf16.mxu0 0
    %2042 = vmatpush1.bf16.msra.mxu0 %v2014
    %2043 = vmatprep.subr.bf16.mxu0 0
    %2044 = vmatpush1.bf16.msra.mxu0 %v2013
    %2045 = vmatprep.subr.bf16.mxu0 0
    %2046 = vmatpush2.bf16.msra.mxu0 0
    %2047 = vmatprep.subr.bf16.mxu0 0
    %2048 = vmatpush2.bf16.msra.mxu0 0
    %2049 = vmatprep.subr.bf16.mxu0 0
    %2050 = vmatpush2.bf16.msra.mxu0 0
    %2051 = vmatprep.subr.bf16.mxu0 0
    %2052 = vmatpush2.bf16.msra.mxu0 0
    %2053 = vmatprep.subr.bf16.mxu0 0
    %2054 = vmatpush2.bf16.msra.mxu0 0
    %2055 = vmatprep.subr.bf16.mxu0 0
    %2056 = vmatpush2.bf16.msra.mxu0 0
    %2057 = vmatprep.subr.bf16.mxu0 0
    %2058 = vmatpush2.bf16.msra.mxu0 0
    %2059 = vmatprep.subr.bf16.mxu0 0
    %2060 = vmatpush2.bf16.msra.mxu0 0
    %2061 = vmatprep.mubr.bf16.mxu0 0
    %2062 = vmatmul.mubr.bf16.gmra.mxu0 %v1973
    %v2063 = vpop.f32.mrf.mxu0
    %v2064 = vadd.f32 0.0, %v2063
    %v2065 = vpop.f32.mrf.mxu0
    %v2066 = vpop.f32.mrf.mxu0
    %v2067 = vadd.f32 0.0, %v2066
    %v2068 = vpop.f32.mrf.mxu0
    %2069 = vmatprep.mubr.bf16.mxu0 0
    %2070 = vmatmul.mubr.bf16.gmra.mxu0 %v1974
    %v2071 = vpop.f32.mrf.mxu0
    %v2072 = vadd.f32 0.0, %v2071
    %v2073 = vpop.f32.mrf.mxu0
    %v2074 = vpop.f32.mrf.mxu0
    %v2075 = vadd.f32 0.0, %v2074
    %v2076 = vpop.f32.mrf.mxu0
    %2077 = vmatprep.mubr.bf16.mxu0 0
    %2078 = vmatmul.mubr.bf16.gmra.mxu0 %v1975
    %v2079 = vpop.f32.mrf.mxu0
    %v2080 = vadd.f32 0.0, %v2079
    %v2081 = vpop.f32.mrf.mxu0
    %v2082 = vpop.f32.mrf.mxu0
    %v2083 = vadd.f32 0.0, %v2082
    %v2084 = vpop.f32.mrf.mxu0
    %2085 = vmatprep.mubr.bf16.mxu0 0
    %2086 = vmatmul.mubr.bf16.gmra.mxu0 %v1976
    %v2087 = vpop.f32.mrf.mxu0
    %v2088 = vadd.f32 0.0, %v2087
    %v2089 = vpop.f32.mrf.mxu0
    %v2090 = vpop.f32.mrf.mxu0
    %v2091 = vadd.f32 0.0, %v2090
    %v2092 = vpop.f32.mrf.mxu0
    %2093 = vmatprep.mubr.bf16.mxu0 0
    %2094 = vmatmul.mubr.bf16.gmra.mxu0 %v1977
    %v2095 = vpop.f32.mrf.mxu0
    %v2096 = vadd.f32 0.0, %v2095
    %v2097 = vpop.f32.mrf.mxu0
    %v2098 = vpop.f32.mrf.mxu0
    %v2099 = vadd.f32 0.0, %v2098
    %v2100 = vpop.f32.mrf.mxu0
    %2101 = vmatprep.mubr.bf16.mxu0 0
    %2102 = vmatmul.mubr.bf16.gmra.mxu0 %v1978
    %v2103 = vpop.f32.mrf.mxu0
    %v2104 = vadd.f32 0.0, %v2103
    %v2105 = vpop.f32.mrf.mxu0
    %v2106 = vpop.f32.mrf.mxu0
    %v2107 = vadd.f32 0.0, %v2106
    %v2108 = vpop.f32.mrf.mxu0
    %2109 = vmatprep.mubr.bf16.mxu0 0
    %2110 = vmatmul.mubr.bf16.gmra.mxu0 %v1979
    %v2111 = vpop.f32.mrf.mxu0
    %v2112 = vadd.f32 0.0, %v2111
    %v2113 = vpop.f32.mrf.mxu0
    %v2114 = vpop.f32.mrf.mxu0
    %v2115 = vadd.f32 0.0, %v2114
    %v2116 = vpop.f32.mrf.mxu0
    %2117 = vmatprep.mubr.bf16.mxu0 0
    %2118 = vmatmul.mubr.bf16.gmra.mxu0 %v1980
    %v2119 = vpop.f32.mrf.mxu0
    %v2120 = vadd.f32 0.0, %v2119
    %v2121 = vpop.f32.mrf.mxu0
    %v2122 = vpop.f32.mrf.mxu0
    %v2123 = vadd.f32 0.0, %v2122
    %v2124 = vpop.f32.mrf.mxu0
    %2125 = vdwg.mxu0
    %v2126 = vadd.f32 %v521, %v2064
    %v2127 = vadd.f32 %v522, %v2067
    %v2128 = vadd.f32 %v523, %v2072
    %v2129 = vadd.f32 %v524, %v2075
    %v2130 = vadd.f32 %v525, %v2080
    %v2131 = vadd.f32 %v526, %v2083
    %v2132 = vadd.f32 %v527, %v2088
    %v2133 = vadd.f32 %v528, %v2091
    %v2134 = vadd.f32 %v529, %v2096
    %v2135 = vadd.f32 %v530, %v2099
    %v2136 = vadd.f32 %v531, %v2104
    %v2137 = vadd.f32 %v532, %v2107
    %v2138 = vadd.f32 %v533, %v2112
    %v2139 = vadd.f32 %v534, %v2115
    %v2140 = vadd.f32 %v535, %v2120
    %v2141 = vadd.f32 %v536, %v2123
    %v2142 = vlaneseq
    %v2143 = vshrl.u32 %v2142, 7
    %v2144 = vsub.s32 0, %v2143
    %v2145 = vrot.slane %v49, %v2144
    %v2146 = vmul.f32 %v935, %v2145
    %v2147 = vmul.f32 %v937, %v2145
    %v2148 = vmul.f32 %v939, %v2145
    %v2149 = vmul.f32 %v941, %v2145
    %v2150 = vmul.f32 %v943, %v2145
    %v2151 = vmul.f32 %v945, %v2145
    %v2152 = vmul.f32 %v947, %v2145
    %v2153 = vmul.f32 %v949, %v2145
    %v2154 = vmul.f32 %v951, %v2145
    %v2155 = vmul.f32 %v953, %v2145
    %v2156 = vmul.f32 %v955, %v2145
    %v2157 = vmul.f32 %v957, %v2145
    %v2158 = vmul.f32 %v959, %v2145
    %v2159 = vmul.f32 %v961, %v2145
    %v2160 = vmul.f32 %v963, %v2145
    %v2161 = vmul.f32 %v965, %v2145
    %v2162 = vadd.f32 %v2126, %v2146
    %v2163 = vadd.f32 %v2127, %v2147
    %v2164 = vadd.f32 %v2128, %v2148
    %v2165 = vadd.f32 %v2129, %v2149
    %v2166 = vadd.f32 %v2130, %v2150
    %v2167 = vadd.f32 %v2131, %v2151
    %v2168 = vadd.f32 %v2132, %v2152
    %v2169 = vadd.f32 %v2133, %v2153
    %v2170 = vadd.f32 %v2134, %v2154
    %v2171 = vadd.f32 %v2135, %v2155
    %v2172 = vadd.f32 %v2136, %v2156
    %v2173 = vadd.f32 %v2137, %v2157
    %v2174 = vadd.f32 %v2138, %v2158
    %v2175 = vadd.f32 %v2139, %v2159
    %v2176 = vadd.f32 %v2140, %v2160
    %v2177 = vadd.f32 %v2141, %v2161
    %v2178 = vpack.c.bf16 %v2163, %v2162
    %v2179 = vpack.c.bf16 %v2165, %v2164
    %v2180 = vpack.c.bf16 %v2167, %v2166
    %v2181 = vpack.c.bf16 %v2169, %v2168
    %v2182 = vpack.c.bf16 %v2171, %v2170
    %v2183 = vpack.c.bf16 %v2173, %v2172
    %v2184 = vpack.c.bf16 %v2175, %v2174
    %v2185 = vpack.c.bf16 %v2177, %v2176
    %2186 = vmatprep.subr.bf16.mxu0 0
    %2187 = vmatpush1.bf16.msra.mxu0 %v2185
    %2188 = vmatprep.subr.bf16.mxu0 0
    %2189 = vmatpush1.bf16.msra.mxu0 %v2184
    %2190 = vmatprep.subr.bf16.mxu0 0
    %2191 = vmatpush1.bf16.msra.mxu0 %v2183
    %2192 = vmatprep.subr.bf16.mxu0 0
    %2193 = vmatpush1.bf16.msra.mxu0 %v2182
    %2194 = vmatprep.subr.bf16.mxu0 0
    %2195 = vmatpush1.bf16.msra.mxu0 %v2181
    %2196 = vmatprep.subr.bf16.mxu0 0
    %2197 = vmatpush1.bf16.msra.mxu0 %v2180
    %2198 = vmatprep.subr.bf16.mxu0 0
    %2199 = vmatpush1.bf16.msra.mxu0 %v2179
    %2200 = vmatprep.subr.bf16.mxu0 0
    %2201 = vmatpush1.bf16.msra.mxu0 %v2178
    %2202 = vmatprep.subr.bf16.mxu0 0
    %2203 = vmatpush2.bf16.msra.mxu0 0
    %2204 = vmatprep.subr.bf16.mxu0 0
    %2205 = vmatpush2.bf16.msra.mxu0 0
    %2206 = vmatprep.subr.bf16.mxu0 0
    %2207 = vmatpush2.bf16.msra.mxu0 0
    %2208 = vmatprep.subr.bf16.mxu0 0
    %2209 = vmatpush2.bf16.msra.mxu0 0
    %2210 = vmatprep.subr.bf16.mxu0 0
    %2211 = vmatpush2.bf16.msra.mxu0 0
    %2212 = vmatprep.subr.bf16.mxu0 0
    %2213 = vmatpush2.bf16.msra.mxu0 0
    %2214 = vmatprep.subr.bf16.mxu0 0
    %2215 = vmatpush2.bf16.msra.mxu0 0
    %2216 = vmatprep.subr.bf16.mxu0 0
    %2217 = vmatpush2.bf16.msra.mxu0 0
    %2218 = vmatprep.mubr.bf16.mxu0 0
    %2219 = vmatmul.mubr.bf16.gmra.mxu0 %v850
    %v2220 = vpop.f32.mrf.mxu0
    %v2221 = vadd.f32 0.0, %v2220
    %v2222 = vpop.f32.mrf.mxu0
    %v2223 = vpop.f32.mrf.mxu0
    %v2224 = vadd.f32 0.0, %v2223
    %v2225 = vpop.f32.mrf.mxu0
    %2226 = vmatprep.mubr.bf16.mxu0 0
    %2227 = vmatmul.mubr.bf16.gmra.mxu0 %v851
    %v2228 = vpop.f32.mrf.mxu0
    %v2229 = vadd.f32 0.0, %v2228
    %v2230 = vpop.f32.mrf.mxu0
    %v2231 = vpop.f32.mrf.mxu0
    %v2232 = vadd.f32 0.0, %v2231
    %v2233 = vpop.f32.mrf.mxu0
    %2234 = vmatprep.mubr.bf16.mxu0 0
    %2235 = vmatmul.mubr.bf16.gmra.mxu0 %v852
    %v2236 = vpop.f32.mrf.mxu0
    %v2237 = vadd.f32 0.0, %v2236
    %v2238 = vpop.f32.mrf.mxu0
    %v2239 = vpop.f32.mrf.mxu0
    %v2240 = vadd.f32 0.0, %v2239
    %v2241 = vpop.f32.mrf.mxu0
    %2242 = vmatprep.mubr.bf16.mxu0 0
    %2243 = vmatmul.mubr.bf16.gmra.mxu0 %v853
    %v2244 = vpop.f32.mrf.mxu0
    %v2245 = vadd.f32 0.0, %v2244
    %v2246 = vpop.f32.mrf.mxu0
    %v2247 = vpop.f32.mrf.mxu0
    %v2248 = vadd.f32 0.0, %v2247
    %v2249 = vpop.f32.mrf.mxu0
    %2250 = vmatprep.mubr.bf16.mxu0 0
    %2251 = vmatmul.mubr.bf16.gmra.mxu0 %v854
    %v2252 = vpop.f32.mrf.mxu0
    %v2253 = vadd.f32 0.0, %v2252
    %v2254 = vpop.f32.mrf.mxu0
    %v2255 = vpop.f32.mrf.mxu0
    %v2256 = vadd.f32 0.0, %v2255
    %v2257 = vpop.f32.mrf.mxu0
    %2258 = vmatprep.mubr.bf16.mxu0 0
    %2259 = vmatmul.mubr.bf16.gmra.mxu0 %v855
    %v2260 = vpop.f32.mrf.mxu0
    %v2261 = vadd.f32 0.0, %v2260
    %v2262 = vpop.f32.mrf.mxu0
    %v2263 = vpop.f32.mrf.mxu0
    %v2264 = vadd.f32 0.0, %v2263
    %v2265 = vpop.f32.mrf.mxu0
    %2266 = vmatprep.mubr.bf16.mxu0 0
    %2267 = vmatmul.mubr.bf16.gmra.mxu0 %v856
    %v2268 = vpop.f32.mrf.mxu0
    %v2269 = vadd.f32 0.0, %v2268
    %v2270 = vpop.f32.mrf.mxu0
    %v2271 = vpop.f32.mrf.mxu0
    %v2272 = vadd.f32 0.0, %v2271
    %v2273 = vpop.f32.mrf.mxu0
    %2274 = vmatprep.mubr.bf16.mxu0 0
    %2275 = vmatmul.mubr.bf16.gmra.mxu0 %v857
    %v2276 = vpop.f32.mrf.mxu0
    %v2277 = vadd.f32 0.0, %v2276
    %v2278 = vpop.f32.mrf.mxu0
    %v2279 = vpop.f32.mrf.mxu0
    %v2280 = vadd.f32 0.0, %v2279
    %v2281 = vpop.f32.mrf.mxu0
    %2282 = vdwg.mxu0
    %v2283 = vpack.c.bf16 %v2224, %v2221
    %v2284 = vpack.c.bf16 %v2232, %v2229
    %v2285 = vpack.c.bf16 %v2240, %v2237
    %v2286 = vpack.c.bf16 %v2248, %v2245
    %v2287 = vpack.c.bf16 %v2256, %v2253
    %v2288 = vpack.c.bf16 %v2264, %v2261
    %v2289 = vpack.c.bf16 %v2272, %v2269
    %v2290 = vpack.c.bf16 %v2280, %v2277
    %v2307 = vunpack.c.l.b16 %v69
    %v2308 = vunpack.c.l.b16 %v70
    %v2309 = vunpack.c.l.b16 %v71
    %v2310 = vunpack.c.l.b16 %v72
    %v2311 = vunpack.c.l.b16 %v73
    %v2312 = vunpack.c.l.b16 %v74
    %v2313 = vunpack.c.l.b16 %v75
    %v2314 = vunpack.c.l.b16 %v76
    %v2315 = vunpack.c.l.b16 %v77
    %v2316 = vunpack.c.l.b16 %v78
    %v2317 = vunpack.c.l.b16 %v79
    %v2318 = vunpack.c.l.b16 %v80
    %v2319 = vunpack.c.l.b16 %v81
    %v2320 = vunpack.c.l.b16 %v82
    %v2321 = vunpack.c.l.b16 %v83
    %v2322 = vunpack.c.l.b16 %v84
    %v2323 = vpack.c.b16 %v2308, %v2307
    %v2324 = vpack.c.b16 %v2310, %v2309
    %v2325 = vpack.c.b16 %v2312, %v2311
    %v2326 = vpack.c.b16 %v2314, %v2313
    %v2327 = vpack.c.b16 %v2316, %v2315
    %v2328 = vpack.c.b16 %v2318, %v2317
    %v2329 = vpack.c.b16 %v2320, %v2319
    %v2330 = vpack.c.b16 %v2322, %v2321
    %2339 = vmatprep.subr.bf16.mxu0 0
    %2340 = vmatpush1.bf16.msra.mxu0 %v2330
    %2341 = vmatprep.subr.bf16.mxu0 0
    %2342 = vmatpush1.bf16.msra.mxu0 %v2329
    %2343 = vmatprep.subr.bf16.mxu0 0
    %2344 = vmatpush1.bf16.msra.mxu0 %v2328
    %2345 = vmatprep.subr.bf16.mxu0 0
    %2346 = vmatpush1.bf16.msra.mxu0 %v2327
    %2347 = vmatprep.subr.bf16.mxu0 0
    %2348 = vmatpush1.bf16.msra.mxu0 %v2326
    %2349 = vmatprep.subr.bf16.mxu0 0
    %2350 = vmatpush1.bf16.msra.mxu0 %v2325
    %2351 = vmatprep.subr.bf16.mxu0 0
    %2352 = vmatpush1.bf16.msra.mxu0 %v2324
    %2353 = vmatprep.subr.bf16.mxu0 0
    %2354 = vmatpush1.bf16.msra.mxu0 %v2323
    %2355 = vmatprep.subr.bf16.mxu0 0
    %2356 = vmatpush2.bf16.msra.mxu0 0
    %2357 = vmatprep.subr.bf16.mxu0 0
    %2358 = vmatpush2.bf16.msra.mxu0 0
    %2359 = vmatprep.subr.bf16.mxu0 0
    %2360 = vmatpush2.bf16.msra.mxu0 0
    %2361 = vmatprep.subr.bf16.mxu0 0
    %2362 = vmatpush2.bf16.msra.mxu0 0
    %2363 = vmatprep.subr.bf16.mxu0 0
    %2364 = vmatpush2.bf16.msra.mxu0 0
    %2365 = vmatprep.subr.bf16.mxu0 0
    %2366 = vmatpush2.bf16.msra.mxu0 0
    %2367 = vmatprep.subr.bf16.mxu0 0
    %2368 = vmatpush2.bf16.msra.mxu0 0
    %2369 = vmatprep.subr.bf16.mxu0 0
    %2370 = vmatpush2.bf16.msra.mxu0 0
    %2371 = vmatprep.mubr.bf16.mxu0 0
    %2372 = vmatmul.mubr.bf16.gmra.mxu0 %v2283
    %v2373 = vpop.f32.mrf.mxu0
    %v2374 = vadd.f32 %v1571, %v2373
    %v2375 = vpop.f32.mrf.mxu0
    %v2376 = vpop.f32.mrf.mxu0
    %v2377 = vadd.f32 %v1575, %v2376
    %v2378 = vpop.f32.mrf.mxu0
    %2379 = vmatprep.mubr.bf16.mxu0 0
    %2380 = vmatmul.mubr.bf16.gmra.mxu0 %v2284
    %v2381 = vpop.f32.mrf.mxu0
    %v2382 = vadd.f32 %v1581, %v2381
    %v2383 = vpop.f32.mrf.mxu0
    %v2384 = vpop.f32.mrf.mxu0
    %v2385 = vadd.f32 %v1585, %v2384
    %v2386 = vpop.f32.mrf.mxu0
    %2387 = vmatprep.mubr.bf16.mxu0 0
    %2388 = vmatmul.mubr.bf16.gmra.mxu0 %v2285
    %v2389 = vpop.f32.mrf.mxu0
    %v2390 = vadd.f32 %v1591, %v2389
    %v2391 = vpop.f32.mrf.mxu0
    %v2392 = vpop.f32.mrf.mxu0
    %v2393 = vadd.f32 %v1595, %v2392
    %v2394 = vpop.f32.mrf.mxu0
    %2395 = vmatprep.mubr.bf16.mxu0 0
    %2396 = vmatmul.mubr.bf16.gmra.mxu0 %v2286
    %v2397 = vpop.f32.mrf.mxu0
    %v2398 = vadd.f32 %v1601, %v2397
    %v2399 = vpop.f32.mrf.mxu0
    %v2400 = vpop.f32.mrf.mxu0
    %v2401 = vadd.f32 %v1605, %v2400
    %v2402 = vpop.f32.mrf.mxu0
    %2403 = vmatprep.mubr.bf16.mxu0 0
    %2404 = vmatmul.mubr.bf16.gmra.mxu0 %v2287
    %v2405 = vpop.f32.mrf.mxu0
    %v2406 = vadd.f32 %v1611, %v2405
    %v2407 = vpop.f32.mrf.mxu0
    %v2408 = vpop.f32.mrf.mxu0
    %v2409 = vadd.f32 %v1615, %v2408
    %v2410 = vpop.f32.mrf.mxu0
    %2411 = vmatprep.mubr.bf16.mxu0 0
    %2412 = vmatmul.mubr.bf16.gmra.mxu0 %v2288
    %v2413 = vpop.f32.mrf.mxu0
    %v2414 = vadd.f32 %v1621, %v2413
    %v2415 = vpop.f32.mrf.mxu0
    %v2416 = vpop.f32.mrf.mxu0
    %v2417 = vadd.f32 %v1625, %v2416
    %v2418 = vpop.f32.mrf.mxu0
    %2419 = vmatprep.mubr.bf16.mxu0 0
    %2420 = vmatmul.mubr.bf16.gmra.mxu0 %v2289
    %v2421 = vpop.f32.mrf.mxu0
    %v2422 = vadd.f32 %v1631, %v2421
    %v2423 = vpop.f32.mrf.mxu0
    %v2424 = vpop.f32.mrf.mxu0
    %v2425 = vadd.f32 %v1635, %v2424
    %v2426 = vpop.f32.mrf.mxu0
    %2427 = vmatprep.mubr.bf16.mxu0 0
    %2428 = vmatmul.mubr.bf16.gmra.mxu0 %v2290
    %v2429 = vpop.f32.mrf.mxu0
    %v2430 = vadd.f32 %v1641, %v2429
    %v2431 = vpop.f32.mrf.mxu0
    %v2432 = vpop.f32.mrf.mxu0
    %v2433 = vadd.f32 %v1645, %v2432
    %v2434 = vpop.f32.mrf.mxu0
    %2435 = vdwg.mxu0
    %v2436 = vadd.f32 %v2374, %v1381
    %v2437 = vadd.f32 %v2377, %v1385
    %v2438 = vadd.f32 %v2382, %v1391
    %v2439 = vadd.f32 %v2385, %v1395
    %v2440 = vadd.f32 %v2390, %v1401
    %v2441 = vadd.f32 %v2393, %v1405
    %v2442 = vadd.f32 %v2398, %v1411
    %v2443 = vadd.f32 %v2401, %v1415
    %v2444 = vadd.f32 %v2406, %v1421
    %v2445 = vadd.f32 %v2409, %v1425
    %v2446 = vadd.f32 %v2414, %v1431
    %v2447 = vadd.f32 %v2417, %v1435
    %v2448 = vadd.f32 %v2422, %v1441
    %v2449 = vadd.f32 %v2425, %v1445
    %v2450 = vadd.f32 %v2430, %v1451
    %v2451 = vadd.f32 %v2433, %v1455
    %v2452 = vlaneseq
    %v2453 = vshrl.u32 %v2452, 7
    %v2454 = vsub.s32 0, %v2453
    %v2455 = vrot.slane %v50, %v2454
    %v2456 = vadd.f32 %v2436, %v2455
    %v2457 = vadd.f32 %v2437, %v2455
    %v2458 = vadd.f32 %v2438, %v2455
    %v2459 = vadd.f32 %v2439, %v2455
    %v2460 = vadd.f32 %v2440, %v2455
    %v2461 = vadd.f32 %v2441, %v2455
    %v2462 = vadd.f32 %v2442, %v2455
    %v2463 = vadd.f32 %v2443, %v2455
    %v2464 = vadd.f32 %v2444, %v2455
    %v2465 = vadd.f32 %v2445, %v2455
    %v2466 = vadd.f32 %v2446, %v2455
    %v2467 = vadd.f32 %v2447, %v2455
    %v2468 = vadd.f32 %v2448, %v2455
    %v2469 = vadd.f32 %v2449, %v2455
    %v2470 = vadd.f32 %v2450, %v2455
    %v2471 = vadd.f32 %v2451, %v2455
    %v2472 = vmax.f32 %v2456, 0.0
    %v2473 = vmax.f32 %v2457, 0.0
    %v2474 = vmax.f32 %v2458, 0.0
    %v2475 = vmax.f32 %v2459, 0.0
    %v2476 = vmax.f32 %v2460, 0.0
    %v2477 = vmax.f32 %v2461, 0.0
    %v2478 = vmax.f32 %v2462, 0.0
    %v2479 = vmax.f32 %v2463, 0.0
    %v2480 = vmax.f32 %v2464, 0.0
    %v2481 = vmax.f32 %v2465, 0.0
    %v2482 = vmax.f32 %v2466, 0.0
    %v2483 = vmax.f32 %v2467, 0.0
    %v2484 = vmax.f32 %v2468, 0.0
    %v2485 = vmax.f32 %v2469, 0.0
    %v2486 = vmax.f32 %v2470, 0.0
    %v2487 = vmax.f32 %v2471, 0.0
    %v2488 = vpack.c.bf16 %v2473, %v2472
    %v2489 = vpack.c.bf16 %v2475, %v2474
    %v2490 = vpack.c.bf16 %v2477, %v2476
    %v2491 = vpack.c.bf16 %v2479, %v2478
    %v2492 = vpack.c.bf16 %v2481, %v2480
    %v2493 = vpack.c.bf16 %v2483, %v2482
    %v2494 = vpack.c.bf16 %v2485, %v2484
    %v2495 = vpack.c.bf16 %v2487, %v2486
    %2496 = vmatprep.subr.bf16.mxu0 0
    %2497 = vmatpush1.bf16.msra.mxu0 %v2495
    %2498 = vmatprep.subr.bf16.mxu0 0
    %2499 = vmatpush1.bf16.msra.mxu0 %v2494
    %2500 = vmatprep.subr.bf16.mxu0 0
    %2501 = vmatpush1.bf16.msra.mxu0 %v2493
    %2502 = vmatprep.subr.bf16.mxu0 0
    %2503 = vmatpush1.bf16.msra.mxu0 %v2492
    %2504 = vmatprep.subr.bf16.mxu0 0
    %2505 = vmatpush1.bf16.msra.mxu0 %v2491
    %2506 = vmatprep.subr.bf16.mxu0 0
    %2507 = vmatpush1.bf16.msra.mxu0 %v2490
    %2508 = vmatprep.subr.bf16.mxu0 0
    %2509 = vmatpush1.bf16.msra.mxu0 %v2489
    %2510 = vmatprep.subr.bf16.mxu0 0
    %2511 = vmatpush1.bf16.msra.mxu0 %v2488
    %2512 = vmatprep.subr.bf16.mxu0 0
    %2513 = vmatpush2.bf16.msra.mxu0 0
    %2514 = vmatprep.subr.bf16.mxu0 0
    %2515 = vmatpush2.bf16.msra.mxu0 0
    %2516 = vmatprep.subr.bf16.mxu0 0
    %2517 = vmatpush2.bf16.msra.mxu0 0
    %2518 = vmatprep.subr.bf16.mxu0 0
    %2519 = vmatpush2.bf16.msra.mxu0 0
    %2520 = vmatprep.subr.bf16.mxu0 0
    %2521 = vmatpush2.bf16.msra.mxu0 0
    %2522 = vmatprep.subr.bf16.mxu0 0
    %2523 = vmatpush2.bf16.msra.mxu0 0
    %2524 = vmatprep.subr.bf16.mxu0 0
    %2525 = vmatpush2.bf16.msra.mxu0 0
    %2526 = vmatprep.subr.bf16.mxu0 0
    %2527 = vmatpush2.bf16.msra.mxu0 0
    %2528 = vmatprep.mubr.bf16.mxu0 0
    %2529 = vmatmul.mubr.bf16.gmra.mxu0 %v730
    %v2530 = vpop.f32.mrf.mxu0
    %v2531 = vadd.f32 0.0, %v2530
    %v2532 = vpop.f32.mrf.mxu0
    %v2533 = vpop.f32.mrf.mxu0
    %v2534 = vadd.f32 0.0, %v2533
    %v2535 = vpop.f32.mrf.mxu0
    %2536 = vmatprep.mubr.bf16.mxu0 0
    %2537 = vmatmul.mubr.bf16.gmra.mxu0 %v731
    %v2538 = vpop.f32.mrf.mxu0
    %v2539 = vadd.f32 0.0, %v2538
    %v2540 = vpop.f32.mrf.mxu0
    %v2541 = vpop.f32.mrf.mxu0
    %v2542 = vadd.f32 0.0, %v2541
    %v2543 = vpop.f32.mrf.mxu0
    %2544 = vmatprep.mubr.bf16.mxu0 0
    %2545 = vmatmul.mubr.bf16.gmra.mxu0 %v732
    %v2546 = vpop.f32.mrf.mxu0
    %v2547 = vadd.f32 0.0, %v2546
    %v2548 = vpop.f32.mrf.mxu0
    %v2549 = vpop.f32.mrf.mxu0
    %v2550 = vadd.f32 0.0, %v2549
    %v2551 = vpop.f32.mrf.mxu0
    %2552 = vmatprep.mubr.bf16.mxu0 0
    %2553 = vmatmul.mubr.bf16.gmra.mxu0 %v733
    %v2554 = vpop.f32.mrf.mxu0
    %v2555 = vadd.f32 0.0, %v2554
    %v2556 = vpop.f32.mrf.mxu0
    %v2557 = vpop.f32.mrf.mxu0
    %v2558 = vadd.f32 0.0, %v2557
    %v2559 = vpop.f32.mrf.mxu0
    %2560 = vmatprep.mubr.bf16.mxu0 0
    %2561 = vmatmul.mubr.bf16.gmra.mxu0 %v734
    %v2562 = vpop.f32.mrf.mxu0
    %v2563 = vadd.f32 0.0, %v2562
    %v2564 = vpop.f32.mrf.mxu0
    %v2565 = vpop.f32.mrf.mxu0
    %v2566 = vadd.f32 0.0, %v2565
    %v2567 = vpop.f32.mrf.mxu0
    %2568 = vmatprep.mubr.bf16.mxu0 0
    %2569 = vmatmul.mubr.bf16.gmra.mxu0 %v735
    %v2570 = vpop.f32.mrf.mxu0
    %v2571 = vadd.f32 0.0, %v2570
    %v2572 = vpop.f32.mrf.mxu0
    %v2573 = vpop.f32.mrf.mxu0
    %v2574 = vadd.f32 0.0, %v2573
    %v2575 = vpop.f32.mrf.mxu0
    %2576 = vmatprep.mubr.bf16.mxu0 0
    %2577 = vmatmul.mubr.bf16.gmra.mxu0 %v736
    %v2578 = vpop.f32.mrf.mxu0
    %v2579 = vadd.f32 0.0, %v2578
    %v2580 = vpop.f32.mrf.mxu0
    %v2581 = vpop.f32.mrf.mxu0
    %v2582 = vadd.f32 0.0, %v2581
    %v2583 = vpop.f32.mrf.mxu0
    %2584 = vmatprep.mubr.bf16.mxu0 0
    %2585 = vmatmul.mubr.bf16.gmra.mxu0 %v737
    %v2586 = vpop.f32.mrf.mxu0
    %v2587 = vadd.f32 0.0, %v2586
    %v2588 = vpop.f32.mrf.mxu0
    %v2589 = vpop.f32.mrf.mxu0
    %v2590 = vadd.f32 0.0, %v2589
    %v2591 = vpop.f32.mrf.mxu0
    %2592 = vdwg.mxu0
    %v2593 = vpack.c.bf16 %v2534, %v2531
    %v2594 = vpack.c.bf16 %v2542, %v2539
    %v2595 = vpack.c.bf16 %v2550, %v2547
    %v2596 = vpack.c.bf16 %v2558, %v2555
    %v2597 = vpack.c.bf16 %v2566, %v2563
    %v2598 = vpack.c.bf16 %v2574, %v2571
    %v2599 = vpack.c.bf16 %v2582, %v2579
    %v2600 = vpack.c.bf16 %v2590, %v2587
    %v2617 = vunpack.c.l.b16 %v101
    %v2618 = vunpack.c.l.b16 %v102
    %v2619 = vunpack.c.l.b16 %v103
    %v2620 = vunpack.c.l.b16 %v104
    %v2621 = vunpack.c.l.b16 %v105
    %v2622 = vunpack.c.l.b16 %v106
    %v2623 = vunpack.c.l.b16 %v107
    %v2624 = vunpack.c.l.b16 %v108
    %v2625 = vunpack.c.l.b16 %v109
    %v2626 = vunpack.c.l.b16 %v110
    %v2627 = vunpack.c.l.b16 %v111
    %v2628 = vunpack.c.l.b16 %v112
    %v2629 = vunpack.c.l.b16 %v113
    %v2630 = vunpack.c.l.b16 %v114
    %v2631 = vunpack.c.l.b16 %v115
    %v2632 = vunpack.c.l.b16 %v116
    %v2633 = vpack.c.b16 %v2618, %v2617
    %v2634 = vpack.c.b16 %v2620, %v2619
    %v2635 = vpack.c.b16 %v2622, %v2621
    %v2636 = vpack.c.b16 %v2624, %v2623
    %v2637 = vpack.c.b16 %v2626, %v2625
    %v2638 = vpack.c.b16 %v2628, %v2627
    %v2639 = vpack.c.b16 %v2630, %v2629
    %v2640 = vpack.c.b16 %v2632, %v2631
    %2649 = vmatprep.subr.bf16.mxu0 0
    %2650 = vmatpush1.bf16.msra.mxu0 %v2640
    %2651 = vmatprep.subr.bf16.mxu0 0
    %2652 = vmatpush1.bf16.msra.mxu0 %v2639
    %2653 = vmatprep.subr.bf16.mxu0 0
    %2654 = vmatpush1.bf16.msra.mxu0 %v2638
    %2655 = vmatprep.subr.bf16.mxu0 0
    %2656 = vmatpush1.bf16.msra.mxu0 %v2637
    %2657 = vmatprep.subr.bf16.mxu0 0
    %2658 = vmatpush1.bf16.msra.mxu0 %v2636
    %2659 = vmatprep.subr.bf16.mxu0 0
    %2660 = vmatpush1.bf16.msra.mxu0 %v2635
    %2661 = vmatprep.subr.bf16.mxu0 0
    %2662 = vmatpush1.bf16.msra.mxu0 %v2634
    %2663 = vmatprep.subr.bf16.mxu0 0
    %2664 = vmatpush1.bf16.msra.mxu0 %v2633
    %2665 = vmatprep.subr.bf16.mxu0 0
    %2666 = vmatpush2.bf16.msra.mxu0 0
    %2667 = vmatprep.subr.bf16.mxu0 0
    %2668 = vmatpush2.bf16.msra.mxu0 0
    %2669 = vmatprep.subr.bf16.mxu0 0
    %2670 = vmatpush2.bf16.msra.mxu0 0
    %2671 = vmatprep.subr.bf16.mxu0 0
    %2672 = vmatpush2.bf16.msra.mxu0 0
    %2673 = vmatprep.subr.bf16.mxu0 0
    %2674 = vmatpush2.bf16.msra.mxu0 0
    %2675 = vmatprep.subr.bf16.mxu0 0
    %2676 = vmatpush2.bf16.msra.mxu0 0
    %2677 = vmatprep.subr.bf16.mxu0 0
    %2678 = vmatpush2.bf16.msra.mxu0 0
    %2679 = vmatprep.subr.bf16.mxu0 0
    %2680 = vmatpush2.bf16.msra.mxu0 0
    %2681 = vmatprep.mubr.bf16.mxu0 0
    %2682 = vmatmul.mubr.bf16.gmra.mxu0 %v2593
    %v2683 = vpop.f32.mrf.mxu0
    %v2684 = vadd.f32 0.0, %v2683
    %v2685 = vpop.f32.mrf.mxu0
    %v2686 = vpop.f32.mrf.mxu0
    %v2687 = vadd.f32 0.0, %v2686
    %v2688 = vpop.f32.mrf.mxu0
    %2689 = vmatprep.mubr.bf16.mxu0 0
    %2690 = vmatmul.mubr.bf16.gmra.mxu0 %v2594
    %v2691 = vpop.f32.mrf.mxu0
    %v2692 = vadd.f32 0.0, %v2691
    %v2693 = vpop.f32.mrf.mxu0
    %v2694 = vpop.f32.mrf.mxu0
    %v2695 = vadd.f32 0.0, %v2694
    %v2696 = vpop.f32.mrf.mxu0
    %2697 = vmatprep.mubr.bf16.mxu0 0
    %2698 = vmatmul.mubr.bf16.gmra.mxu0 %v2595
    %v2699 = vpop.f32.mrf.mxu0
    %v2700 = vadd.f32 0.0, %v2699
    %v2701 = vpop.f32.mrf.mxu0
    %v2702 = vpop.f32.mrf.mxu0
    %v2703 = vadd.f32 0.0, %v2702
    %v2704 = vpop.f32.mrf.mxu0
    %2705 = vmatprep.mubr.bf16.mxu0 0
    %2706 = vmatmul.mubr.bf16.gmra.mxu0 %v2596
    %v2707 = vpop.f32.mrf.mxu0
    %v2708 = vadd.f32 0.0, %v2707
    %v2709 = vpop.f32.mrf.mxu0
    %v2710 = vpop.f32.mrf.mxu0
    %v2711 = vadd.f32 0.0, %v2710
    %v2712 = vpop.f32.mrf.mxu0
    %2713 = vmatprep.mubr.bf16.mxu0 0
    %2714 = vmatmul.mubr.bf16.gmra.mxu0 %v2597
    %v2715 = vpop.f32.mrf.mxu0
    %v2716 = vadd.f32 0.0, %v2715
    %v2717 = vpop.f32.mrf.mxu0
    %v2718 = vpop.f32.mrf.mxu0
    %v2719 = vadd.f32 0.0, %v2718
    %v2720 = vpop.f32.mrf.mxu0
    %2721 = vmatprep.mubr.bf16.mxu0 0
    %2722 = vmatmul.mubr.bf16.gmra.mxu0 %v2598
    %v2723 = vpop.f32.mrf.mxu0
    %v2724 = vadd.f32 0.0, %v2723
    %v2725 = vpop.f32.mrf.mxu0
    %v2726 = vpop.f32.mrf.mxu0
    %v2727 = vadd.f32 0.0, %v2726
    %v2728 = vpop.f32.mrf.mxu0
    %2729 = vmatprep.mubr.bf16.mxu0 0
    %2730 = vmatmul.mubr.bf16.gmra.mxu0 %v2599
    %v2731 = vpop.f32.mrf.mxu0
    %v2732 = vadd.f32 0.0, %v2731
    %v2733 = vpop.f32.mrf.mxu0
    %v2734 = vpop.f32.mrf.mxu0
    %v2735 = vadd.f32 0.0, %v2734
    %v2736 = vpop.f32.mrf.mxu0
    %2737 = vmatprep.mubr.bf16.mxu0 0
    %2738 = vmatmul.mubr.bf16.gmra.mxu0 %v2600
    %v2739 = vpop.f32.mrf.mxu0
    %v2740 = vadd.f32 0.0, %v2739
    %v2741 = vpop.f32.mrf.mxu0
    %v2742 = vpop.f32.mrf.mxu0
    %v2743 = vadd.f32 0.0, %v2742
    %v2744 = vpop.f32.mrf.mxu0
    %2745 = vdwg.mxu0
    %v2746 = vadd.f32 %v315, %v2684
    %v2747 = vadd.f32 %v316, %v2687
    %v2748 = vadd.f32 %v317, %v2692
    %v2749 = vadd.f32 %v318, %v2695
    %v2750 = vadd.f32 %v319, %v2700
    %v2751 = vadd.f32 %v320, %v2703
    %v2752 = vadd.f32 %v321, %v2708
    %v2753 = vadd.f32 %v322, %v2711
    %v2754 = vadd.f32 %v323, %v2716
    %v2755 = vadd.f32 %v324, %v2719
    %v2756 = vadd.f32 %v325, %v2724
    %v2757 = vadd.f32 %v326, %v2727
    %v2758 = vadd.f32 %v327, %v2732
    %v2759 = vadd.f32 %v328, %v2735
    %v2760 = vadd.f32 %v329, %v2740
    %v2761 = vadd.f32 %v330, %v2743
    %v2762 = vlaneseq
    %v2763 = vshrl.u32 %v2762, 7
    %v2764 = vsub.s32 0, %v2763
    %v2765 = vrot.slane %v51, %v2764
    %v2766 = vmul.f32 %v983, %v2765
    %v2767 = vmul.f32 %v985, %v2765
    %v2768 = vmul.f32 %v987, %v2765
    %v2769 = vmul.f32 %v989, %v2765
    %v2770 = vmul.f32 %v991, %v2765
    %v2771 = vmul.f32 %v993, %v2765
    %v2772 = vmul.f32 %v995, %v2765
    %v2773 = vmul.f32 %v997, %v2765
    %v2774 = vmul.f32 %v999, %v2765
    %v2775 = vmul.f32 %v1001, %v2765
    %v2776 = vmul.f32 %v1003, %v2765
    %v2777 = vmul.f32 %v1005, %v2765
    %v2778 = vmul.f32 %v1007, %v2765
    %v2779 = vmul.f32 %v1009, %v2765
    %v2780 = vmul.f32 %v1011, %v2765
    %v2781 = vmul.f32 %v1013, %v2765
    %v2782 = vadd.f32 %v2746, %v2766
    %v2783 = vadd.f32 %v2747, %v2767
    %v2784 = vadd.f32 %v2748, %v2768
    %v2785 = vadd.f32 %v2749, %v2769
    %v2786 = vadd.f32 %v2750, %v2770
    %v2787 = vadd.f32 %v2751, %v2771
    %v2788 = vadd.f32 %v2752, %v2772
    %v2789 = vadd.f32 %v2753, %v2773
    %v2790 = vadd.f32 %v2754, %v2774
    %v2791 = vadd.f32 %v2755, %v2775
    %v2792 = vadd.f32 %v2756, %v2776
    %v2793 = vadd.f32 %v2757, %v2777
    %v2794 = vadd.f32 %v2758, %v2778
    %v2795 = vadd.f32 %v2759, %v2779
    %v2796 = vadd.f32 %v2760, %v2780
    %v2797 = vadd.f32 %v2761, %v2781
    %v2798 = vld [vmem:[%s12] sm:$0x1]
    %v2799 = vpack.c.bf16 %v2783, %v2782
    %v2800 = vpack.c.bf16 %v2785, %v2784
    %v2801 = vpack.c.bf16 %v2787, %v2786
    %v2802 = vpack.c.bf16 %v2789, %v2788
    %v2803 = vpack.c.bf16 %v2791, %v2790
    %v2804 = vpack.c.bf16 %v2793, %v2792
    %v2805 = vpack.c.bf16 %v2795, %v2794
    %v2806 = vpack.c.bf16 %v2797, %v2796
    %2808 = vset.pattern.permute.xlu0 0
    %2809 = vperm.xlu0 %2808, %v52
    %v2810 = vpop.permute.xlu0 %2809
    %2812 = vmatprep.subr.bf16.mxu0 0
    %2813 = vmatpush1.bf16.xpose.msra.mxu0 %v2806
    %2814 = vmatprep.subr.bf16.mxu0 0
    %2815 = vmatpush1.bf16.xpose.msra.mxu0 %v2805
    %2816 = vmatprep.subr.bf16.mxu0 0
    %2817 = vmatpush1.bf16.xpose.msra.mxu0 %v2804
    %2818 = vmatprep.subr.bf16.mxu0 0
    %2819 = vmatpush1.bf16.xpose.msra.mxu0 %v2803
    %2820 = vmatprep.subr.bf16.mxu0 0
    %2821 = vmatpush1.bf16.xpose.msra.mxu0 %v2802
    %2822 = vmatprep.subr.bf16.mxu0 0
    %2823 = vmatpush1.bf16.xpose.msra.mxu0 %v2801
    %2824 = vmatprep.subr.bf16.mxu0 0
    %2825 = vmatpush1.bf16.xpose.msra.mxu0 %v2800
    %2826 = vmatprep.subr.bf16.mxu0 0
    %2827 = vmatpush1.bf16.xpose.msra.mxu0 %v2799
    %2828 = vmatprep.subr.bf16.mxu0 0
    %2829 = vmatpush2.bf16.xpose.msra.mxu0 0
    %2830 = vmatprep.subr.bf16.mxu0 0
    %2831 = vmatpush2.bf16.xpose.msra.mxu0 0
    %2832 = vmatprep.subr.bf16.mxu0 0
    %2833 = vmatpush2.bf16.xpose.msra.mxu0 0
    %2834 = vmatprep.subr.bf16.mxu0 0
    %2835 = vmatpush2.bf16.xpose.msra.mxu0 0
    %2836 = vmatprep.subr.bf16.mxu0 0
    %2837 = vmatpush2.bf16.xpose.msra.mxu0 0
    %2838 = vmatprep.subr.bf16.mxu0 0
    %2839 = vmatpush2.bf16.xpose.msra.mxu0 0
    %2840 = vmatprep.subr.bf16.mxu0 0
    %2841 = vmatpush2.bf16.xpose.msra.mxu0 0
    %2842 = vmatprep.subr.bf16.mxu0 0
    %2843 = vmatpush2.bf16.xpose.msra.mxu0 0
    %2844 = vmatprep.mubr.bf16.mxu0 0
    %2845 = vmatmul.mubr.bf16.gmra.mxu0 %v2798
    %v2846 = vpop.f32.mrf.mxu0
    %v2847 = vadd.f32 %v2810, %v2846
    %v2848 = vpop.f32.mrf.mxu0
    %v2849 = vpop.f32.mrf.mxu0
    %v2850 = vpop.f32.mrf.mxu0
    %2851 = vdwg.mxu0
    %2852 = vst [vmem:[#allocation2] sm:$0x1] %v2847
    // Predicated region
    $region54: #{tpu_custom_call.1} parent=1 // pred_check
      _
    $region55: #{tpu_custom_call.1} parent=1 // pred_check_branch
      %2854 = sbr.rel (0) target = $region57
    $region56: #{tpu_custom_call.1} parent=1 // pred_region
      %s2856 = ssub.s32 16, 16
      %2857 = vsyncadd [#allocation3], %s2856
      %s2859 = sshll.u32 [#allocation2], 4
      %s2860 = int_to_ptr.vmem [resolvable:$true] %s2859
      %2862 = dma.vmem_to_hbm [thread:$0]  %s2860, 16, %s13, [#allocation3]
    $region57: #{tpu_custom_call.1} parent=1 // pred_fallthru
      _
    // Predicated region
    $region58: #{tpu_custom_call.1} parent=1 // pred_check
      _
    $region59: #{tpu_custom_call.1} parent=1 // pred_check_branch
      %2864 = sbr.rel (0) target = $region61
    $region60: #{tpu_custom_call.1} parent=1 // pred_region
      %2865 = dma.done [#allocation3], 16
    $region61: #{tpu_custom_call.1} parent=1 // pred_fallthru
      _
    %2866 = vsyncpa [#allocation3], 1

</llo_original>
